<compile_context>
chip_gen: v7x
topology: tpu7x:2x2x1
jax: 0.10.0
libtpu: 0.0.40
codegen_flags: <defaults>
</compile_context>

<pallas_src>
import numpy as np
import jax
import jax.numpy as jnp
from jax.experimental import pallas as pl
from jax.experimental.pallas import tpu as pltpu  # noqa: F401  (kept for TPU backend import)

# ---------------- synthetic Dinov2-style config (small) ----------------
IMAGE_SIZE = 28          # image_size // 14 = 2  ->  4 patches
PATCH      = 14
CHANNELS   = 3
HIDDEN     = 32
NUM_HEADS  = 4
HEAD_DIM   = HIDDEN // NUM_HEADS
NUM_LAYERS = 2
MLP_DIM    = 4 * HIDDEN
LN_EPS     = 1e-6
BATCH      = 2

GRID        = IMAGE_SIZE // PATCH
NUM_PATCHES = GRID * GRID
SEQ         = NUM_PATCHES + 1          # use_cls_token=True
ROWS        = BATCH * SEQ              # batch folded into the row dimension
CPP         = CHANNELS * PATCH * PATCH
VIEW_NUM    = 4


def get_1d_sincos_pos_embed_from_grid(embed_dim, pos):
    """Faithful port of the reference numpy helper (used for view_embed)."""
    assert embed_dim % 2 == 0
    omega = np.arange(embed_dim // 2, dtype=np.float64)
    omega /= embed_dim / 2.0
    omega = 1.0 / 10000 ** omega
    pos = pos.reshape(-1)
    out = np.einsum('m,d->md', pos, omega)
    return np.concatenate([np.sin(out), np.cos(out)], axis=1)


# ======================= fused Pallas kernel =======================

def _ln(x, g, b):
    mu = jnp.mean(x, axis=-1, keepdims=True)
    var = jnp.mean((x - mu) ** 2, axis=-1, keepdims=True)
    return (x - mu) * jax.lax.rsqrt(var + LN_EPS) * g + b


def _gelu_tanh(x):
    c = 0.7978845608028654  # sqrt(2/pi)
    return 0.5 * x * (1.0 + jnp.tanh(c * (x + 0.044715 * x * x * x)))


def _encoder_kernel(imgp_ref, maskp_ref, iscls_ref,
                    pw_ref, pb_ref, cls_ref, pos_ref, bias_ref,
                    ln1g_ref, ln1b_ref, wqkv_ref, bqkv_ref, wo_ref, bo_ref, ls1_ref,
                    ln2g_ref, ln2b_ref, w1_ref, b1_ref, w2_ref, b2_ref, ls2_ref,
                    lnfg_ref, lnfb_ref,
                    o_ref):
    # ---- preprocess fused into patch embed ----
    # value_range = (-1, 1):  (x - low)/(high - low), then multiply by mask
    p = (imgp_ref[...] + 1.0) * 0.5 * maskp_ref[...]                      # (ROWS, CPP)
    pe = jnp.dot(p, pw_ref[...], preferred_element_type=jnp.float32) + pb_ref[...]

    # insert cls token at each batch's slot (rows b*SEQ) and add pos embedding
    m = iscls_ref[...]                                                     # (ROWS, 1)
    x = pe * (1.0 - m) + cls_ref[...] * m + pos_ref[...]                   # (ROWS, H)

    attn_bias = bias_ref[...]                                              # (ROWS, ROWS) block-diag 0 / -1e30
    scale = 1.0 / float(np.sqrt(HEAD_DIM))

    for l in range(NUM_LAYERS):                                            # static layer loop
        # --- attention block (pre-LN), fused QKV projection ---
        h = _ln(x, ln1g_ref[l], ln1b_ref[l])
        qkv = jnp.dot(h, wqkv_ref[l], preferred_element_type=jnp.float32) + bqkv_ref[l]  # (ROWS, 3H)
        wo = wo_ref[l]                                                     # (H, H)

        attn = jnp.zeros((ROWS, HIDDEN), jnp.float32)
        for hh in range(NUM_HEADS):                                        # static head loop (4)
            c0 = hh * HEAD_DIM
            qh = qkv[:, c0:c0 + HEAD_DIM]
            kh = qkv[:, HIDDEN + c0:HIDDEN + c0 + HEAD_DIM]
            vh = qkv[:, 2 * HIDDEN + c0:2 * HIDDEN + c0 + HEAD_DIM]
            # scores over the fused rows; cross-batch entries masked out by attn_bias
            s = jax.lax.dot_general(qh, kh, (((1,), (1,)), ((), ())),
                                    preferred_element_type=jnp.float32) * scale
            s = s + attn_bias
            s = s - jnp.max(s, axis=-1, keepdims=True)
            e = jnp.exp(s)
            prob = e * pl.reciprocal(jnp.sum(e, axis=-1, keepdims=True), approx=True)
            ov = jnp.dot(prob, vh, preferred_element_type=jnp.float32)      # (ROWS, HD)
            # accumulate directly through W_o slice: avoids lane-axis concatenate
            attn = attn + jnp.dot(ov, wo[c0:c0 + HEAD_DIM, :],
                                  preferred_element_type=jnp.float32)
        x = x + (attn + bo_ref[l]) * ls1_ref[l]                            # layer_scale1 + residual

        # --- MLP block (pre-LN) ---
        h2 = _ln(x, ln2g_ref[l], ln2b_ref[l])
        mm = jnp.dot(h2, w1_ref[l], preferred_element_type=jnp.float32) + b1_ref[l]
        mm = _gelu_tanh(mm)
        mm = jnp.dot(mm, w2_ref[l], preferred_element_type=jnp.float32) + b2_ref[l]
        x = x + mm * ls2_ref[l]                                            # layer_scale2 + residual

    # final LayerNorm; full-block single store
    o_ref[...] = _ln(x, lnfg_ref[...], lnfb_ref[...]).astype(o_ref.dtype)


# ======================= wrapper (layout glue + single pallas_call) =======================

def _extract_patches(x):
    """NCHW -> (B, N_patches, C*p*p); patch order (gy, gx), inner order (c, ky, kx)."""
    B = x.shape[0]
    x = x.reshape(B, CHANNELS, GRID, PATCH, GRID, PATCH)
    x = x.transpose(0, 2, 4, 1, 3, 5)
    return x.reshape(B, NUM_PATCHES, CPP)


def _with_cls_rows(p):
    """(B, N, CPP) -> (B*SEQ, CPP) with a zero row inserted at each batch's cls slot."""
    B = p.shape[0]
    z = jnp.zeros((B, 1, CPP), p.dtype)
    return jnp.concatenate([z, p], axis=1).reshape(B * SEQ, CPP)


def _build_constants():
    is_cls = np.zeros((ROWS, 1), np.float32)
    is_cls[0::SEQ, 0] = 1.0
    bias = np.full((ROWS, ROWS), -1e30, np.float32)
    for b in range(BATCH):
        bias[b * SEQ:(b + 1) * SEQ, b * SEQ:(b + 1) * SEQ] = 0.0
    return jnp.asarray(is_cls), jnp.asarray(bias)


_IS_CLS, _ATTN_BIAS = _build_constants()


@jax.jit
def _forward_impl(params, image, mask_b):
    img_p = _with_cls_rows(_extract_patches(image))          # (ROWS, CPP)
    mask_p = _with_cls_rows(_extract_patches(mask_b))        # (ROWS, CPP)
    pos_full = jnp.tile(params["pos_embed"], (BATCH, 1))     # (ROWS, H)
    lp = params["layers"]

    out = pl.pallas_call(
        _encoder_kernel,
        out_shape=jax.ShapeDtypeStruct((ROWS, HIDDEN), jnp.float32),
    )(img_p, mask_p, _IS_CLS,
      params["patch_w"], params["patch_b"], params["cls_token"], pos_full, _ATTN_BIAS,
      lp["ln1_g"], lp["ln1_b"], lp["w_qkv"], lp["b_qkv"], lp["wo"], lp["bo"], lp["ls1"],
      lp["ln2_g"], lp["ln2_b"], lp["w1"], lp["b1"], lp["w2"], lp["b2"], lp["ls2"],
      params["ln_g"], params["ln_b"])

    return out.reshape(BATCH, SEQ, HIDDEN)


def single_image_encoder_forward(params, image=None, mask=None, view_dict=None):
    """SingleImageEncoder.forward (view_dict=None path)."""
    assert view_dict is None  # multi-view path depends on per-view inputs; not exercised here
    if mask is None:
        mask_b = jnp.ones_like(image)
    else:
        mask_b = jnp.broadcast_to(mask.astype(image.dtype), image.shape)
    h = _forward_impl(params, image, mask_b)
    # use_cls_token=True -> keep full sequence
    return {"main": h}


# ======================= parameter init =======================

def init_params(key):
    def normal(k, shape, scale=0.02):
        return scale * jax.random.normal(k, shape, jnp.float32)

    def zeros(shape): return jnp.zeros(shape, jnp.float32)
    def ones(shape): return jnp.ones(shape, jnp.float32)

    L = NUM_LAYERS
    keys = jax.random.split(key, 3 + L)
    k_patch, k_cls, k_pos = keys[0], keys[1], keys[2]

    wqkv, wo, w1, w2 = [], [], [], []
    for li in range(L):
        lk = jax.random.split(keys[3 + li], 6)
        wq = normal(lk[0], (HIDDEN, HIDDEN))
        wk = normal(lk[1], (HIDDEN, HIDDEN))
        wv = normal(lk[2], (HIDDEN, HIDDEN))
        wqkv.append(jnp.concatenate([wq, wk, wv], axis=1))   # fused (H, 3H)
        wo.append(normal(lk[3], (HIDDEN, HIDDEN)))
        w1.append(normal(lk[4], (HIDDEN, MLP_DIM)))
        w2.append(normal(lk[5], (MLP_DIM, HIDDEN)))

    layers = {
        "ln1_g": ones((L, 1, HIDDEN)),  "ln1_b": zeros((L, 1, HIDDEN)),
        "w_qkv": jnp.stack(wqkv),       "b_qkv": zeros((L, 1, 3 * HIDDEN)),
        "wo":    jnp.stack(wo),         "bo":    zeros((L, 1, HIDDEN)),
        "ls1":   ones((L, 1, HIDDEN)),                       # Dinov2 layerscale init = 1.0
        "ln2_g": ones((L, 1, HIDDEN)),  "ln2_b": zeros((L, 1, HIDDEN)),
        "w1":    jnp.stack(w1),         "b1":    zeros((L, 1, MLP_DIM)),
        "w2":    jnp.stack(w2),         "b2":    zeros((L, 1, HIDDEN)),
        "ls2":   ones((L, 1, HIDDEN)),
    }

    params = {
        "patch_w": normal(k_patch, (CPP, HIDDEN)),
        "patch_b": zeros((1, HIDDEN)),
        "cls_token": normal(k_cls, (1, HIDDEN)),
        "pos_embed": normal(k_pos, (SEQ, HIDDEN)),
        "ln_g": ones((1, HIDDEN)),
        "ln_b": zeros((1, HIDDEN)),
        "layers": layers,
    }

    # view_embed from ImageEncoder.__init__ (only used in the view_dict path; kept for fidelity)
    ve = get_1d_sincos_pos_embed_from_grid(HIDDEN, np.arange(VIEW_NUM, dtype=np.float32))
    ve = np.repeat(ve[:, None, :], SEQ, axis=1)[None].astype(np.float32)   # (1, 4, SEQ, H)
    params["view_embed"] = jnp.asarray(ve)
    return params


if __name__ == "__main__":
    key = jax.random.PRNGKey(0)
    k_img, k_mask, k_params = jax.random.split(key, 3)
    image = jax.random.uniform(k_img, (BATCH, CHANNELS, IMAGE_SIZE, IMAGE_SIZE),
                               jnp.float32, minval=-1.0, maxval=1.0)
    mask = (jax.random.uniform(k_mask, (BATCH, 1, IMAGE_SIZE, IMAGE_SIZE)) > 0.2).astype(jnp.float32)

    params = init_params(k_params)
    out = single_image_encoder_forward(params, image=image, mask=mask, view_dict=None)
    jax.block_until_ready(out)

    assert out["main"].shape == (BATCH, SEQ, HIDDEN), out["main"].shape
    assert out["main"].dtype == jnp.float32
    assert bool(jnp.all(jnp.isfinite(out["main"])))
    print("KERNEL_OK")
</pallas_src>

<mosaic_0001>
module attributes {stable_mosaic.version = 11 : i64} {
  func.func @_encoder_kernel(%arg0: memref<10x588xf32, #tpu.memory_space<vmem>>, %arg1: memref<10x588xf32, #tpu.memory_space<vmem>>, %arg2: memref<10x1xf32, #tpu.memory_space<vmem>>, %arg3: memref<588x32xf32, #tpu.memory_space<vmem>>, %arg4: memref<1x32xf32, #tpu.memory_space<vmem>>, %arg5: memref<1x32xf32, #tpu.memory_space<vmem>>, %arg6: memref<10x32xf32, #tpu.memory_space<vmem>>, %arg7: memref<10x10xf32, #tpu.memory_space<vmem>>, %arg8: memref<2x1x32xf32, #tpu.memory_space<vmem>>, %arg9: memref<2x1x32xf32, #tpu.memory_space<vmem>>, %arg10: memref<2x32x96xf32, #tpu.memory_space<vmem>>, %arg11: memref<2x1x96xf32, #tpu.memory_space<vmem>>, %arg12: memref<2x32x32xf32, #tpu.memory_space<vmem>>, %arg13: memref<2x1x32xf32, #tpu.memory_space<vmem>>, %arg14: memref<2x1x32xf32, #tpu.memory_space<vmem>>, %arg15: memref<2x1x32xf32, #tpu.memory_space<vmem>>, %arg16: memref<2x1x32xf32, #tpu.memory_space<vmem>>, %arg17: memref<2x32x128xf32, #tpu.memory_space<vmem>>, %arg18: memref<2x1x128xf32, #tpu.memory_space<vmem>>, %arg19: memref<2x128x32xf32, #tpu.memory_space<vmem>>, %arg20: memref<2x1x32xf32, #tpu.memory_space<vmem>>, %arg21: memref<2x1x32xf32, #tpu.memory_space<vmem>>, %arg22: memref<1x32xf32, #tpu.memory_space<vmem>>, %arg23: memref<1x32xf32, #tpu.memory_space<vmem>>, %arg24: memref<10x32xf32, #tpu.memory_space<vmem>>) attributes {dimension_semantics = [], scalar_prefetch = 0 : i64, scratch_operands = 0 : i64, tpu.core_type = #tpu.core_type<tc>} {
    %c0 = arith.constant 0 : index
    %c0_0 = arith.constant 0 : index
    %0 = vector.load %arg0[%c0, %c0_0] : memref<10x588xf32, #tpu.memory_space<vmem>>, vector<10x588xf32>
    %cst = arith.constant 1.000000e+00 : f32
    %1 = vector.broadcast %cst : f32 to vector<10x588xf32>
    %2 = arith.addf %0, %1 : vector<10x588xf32>
    %cst_1 = arith.constant 5.000000e-01 : f32
    %3 = vector.broadcast %cst_1 : f32 to vector<10x588xf32>
    %4 = arith.mulf %2, %3 : vector<10x588xf32>
    %c0_2 = arith.constant 0 : index
    %c0_3 = arith.constant 0 : index
    %5 = vector.load %arg1[%c0_2, %c0_3] : memref<10x588xf32, #tpu.memory_space<vmem>>, vector<10x588xf32>
    %6 = arith.mulf %4, %5 : vector<10x588xf32>
    %c0_4 = arith.constant 0 : index
    %c0_5 = arith.constant 0 : index
    %7 = vector.load %arg3[%c0_4, %c0_5] : memref<588x32xf32, #tpu.memory_space<vmem>>, vector<588x32xf32>
    %cst_6 = arith.constant dense<0.000000e+00> : vector<10x32xf32>
    %8 = tpu.matmul %6, %7, %cst_6 {dimension_numbers = #tpu.dot_dimension_numbers<[1], [0], [0], [1], [0, 0, 1, 1], [], []>} : vector<10x588xf32>, vector<588x32xf32>, vector<10x32xf32> -> vector<10x32xf32>
    %c0_7 = arith.constant 0 : index
    %c0_8 = arith.constant 0 : index
    %9 = vector.load %arg4[%c0_7, %c0_8] : memref<1x32xf32, #tpu.memory_space<vmem>>, vector<1x32xf32>
    %10 = vector.broadcast %9 : vector<1x32xf32> to vector<10x32xf32>
    %11 = arith.addf %8, %10 : vector<10x32xf32>
    %c0_9 = arith.constant 0 : index
    %c0_10 = arith.constant 0 : index
    %12 = vector.load %arg2[%c0_9, %c0_10] : memref<10x1xf32, #tpu.memory_space<vmem>>, vector<10x1xf32>
    %cst_11 = arith.constant 1.000000e+00 : f32
    %13 = vector.broadcast %cst_11 : f32 to vector<10x1xf32>
    %14 = arith.subf %13, %12 : vector<10x1xf32>
    %15 = vector.broadcast %14 : vector<10x1xf32> to vector<10x32xf32>
    %16 = arith.mulf %11, %15 : vector<10x32xf32>
    %c0_12 = arith.constant 0 : index
    %c0_13 = arith.constant 0 : index
    %17 = vector.load %arg5[%c0_12, %c0_13] : memref<1x32xf32, #tpu.memory_space<vmem>>, vector<1x32xf32>
    %18 = vector.broadcast %17 : vector<1x32xf32> to vector<10x32xf32>
    %19 = vector.broadcast %12 : vector<10x1xf32> to vector<10x32xf32>
    %20 = arith.mulf %18, %19 : vector<10x32xf32>
    %21 = arith.addf %16, %20 : vector<10x32xf32>
    %c0_14 = arith.constant 0 : index
    %c0_15 = arith.constant 0 : index
    %22 = vector.load %arg6[%c0_14, %c0_15] : memref<10x32xf32, #tpu.memory_space<vmem>>, vector<10x32xf32>
    %23 = arith.addf %21, %22 : vector<10x32xf32>
    %c0_16 = arith.constant 0 : index
    %c0_17 = arith.constant 0 : index
    %24 = vector.load %arg7[%c0_16, %c0_17] : memref<10x10xf32, #tpu.memory_space<vmem>>, vector<10x10xf32>
    %c0_18 = arith.constant 0 : index
    %c0_19 = arith.constant 0 : index
    %c0_20 = arith.constant 0 : index
    %25 = vector.load %arg8[%c0_18, %c0_19, %c0_20] : memref<2x1x32xf32, #tpu.memory_space<vmem>>, vector<1x1x32xf32>
    %26 = vector.shape_cast %25 : vector<1x1x32xf32> to vector<1x32xf32>
    %c0_21 = arith.constant 0 : index
    %c0_22 = arith.constant 0 : index
    %c0_23 = arith.constant 0 : index
    %27 = vector.load %arg9[%c0_21, %c0_22, %c0_23] : memref<2x1x32xf32, #tpu.memory_space<vmem>>, vector<1x1x32xf32>
    %28 = vector.shape_cast %27 : vector<1x1x32xf32> to vector<1x32xf32>
    %cst_24 = arith.constant dense<0.000000e+00> : vector<10xf32>
    %29 = vector.multi_reduction <add>, %23, %cst_24 [1] : vector<10x32xf32> to vector<10xf32>
    %30 = vector.shape_cast %29 : vector<10xf32> to vector<10x1xf32>
    %cst_25 = arith.constant 3.200000e+01 : f32
    %31 = vector.broadcast %cst_25 : f32 to vector<10x1xf32>
    %32 = arith.divf %30, %31 : vector<10x1xf32>
    %33 = vector.broadcast %32 : vector<10x1xf32> to vector<10x32xf32>
    %34 = arith.subf %23, %33 : vector<10x32xf32>
    %35 = arith.mulf %34, %34 : vector<10x32xf32>
    %cst_26 = arith.constant dense<0.000000e+00> : vector<10xf32>
    %36 = vector.multi_reduction <add>, %35, %cst_26 [1] : vector<10x32xf32> to vector<10xf32>
    %37 = vector.shape_cast %36 : vector<10xf32> to vector<10x1xf32>
    %cst_27 = arith.constant 3.200000e+01 : f32
    %38 = vector.broadcast %cst_27 : f32 to vector<10x1xf32>
    %39 = arith.divf %37, %38 : vector<10x1xf32>
    %40 = vector.broadcast %32 : vector<10x1xf32> to vector<10x32xf32>
    %41 = arith.subf %23, %40 : vector<10x32xf32>
    %cst_28 = arith.constant 9.99999997E-7 : f32
    %42 = vector.broadcast %cst_28 : f32 to vector<10x1xf32>
    %43 = arith.addf %39, %42 : vector<10x1xf32>
    %44 = math.rsqrt %43 : vector<10x1xf32>
    %45 = vector.broadcast %44 : vector<10x1xf32> to vector<10x32xf32>
    %46 = arith.mulf %41, %45 : vector<10x32xf32>
    %47 = vector.broadcast %26 : vector<1x32xf32> to vector<10x32xf32>
    %48 = arith.mulf %46, %47 : vector<10x32xf32>
    %49 = vector.broadcast %28 : vector<1x32xf32> to vector<10x32xf32>
    %50 = arith.addf %48, %49 : vector<10x32xf32>
    %c0_29 = arith.constant 0 : index
    %c0_30 = arith.constant 0 : index
    %c0_31 = arith.constant 0 : index
    %51 = vector.load %arg10[%c0_29, %c0_30, %c0_31] : memref<2x32x96xf32, #tpu.memory_space<vmem>>, vector<1x32x96xf32>
    %52 = vector.shape_cast %51 : vector<1x32x96xf32> to vector<32x96xf32>
    %cst_32 = arith.constant dense<0.000000e+00> : vector<10x96xf32>
    %53 = tpu.matmul %50, %52, %cst_32 {dimension_numbers = #tpu.dot_dimension_numbers<[1], [0], [0], [1], [0, 0, 1, 1], [], []>} : vector<10x32xf32>, vector<32x96xf32>, vector<10x96xf32> -> vector<10x96xf32>
    %c0_33 = arith.constant 0 : index
    %c0_34 = arith.constant 0 : index
    %c0_35 = arith.constant 0 : index
    %54 = vector.load %arg11[%c0_33, %c0_34, %c0_35] : memref<2x1x96xf32, #tpu.memory_space<vmem>>, vector<1x1x96xf32>
    %55 = vector.shape_cast %54 : vector<1x1x96xf32> to vector<1x96xf32>
    %56 = vector.broadcast %55 : vector<1x96xf32> to vector<10x96xf32>
    %57 = arith.addf %53, %56 : vector<10x96xf32>
    %c0_36 = arith.constant 0 : index
    %c0_37 = arith.constant 0 : index
    %c0_38 = arith.constant 0 : index
    %58 = vector.load %arg12[%c0_36, %c0_37, %c0_38] : memref<2x32x32xf32, #tpu.memory_space<vmem>>, vector<1x32x32xf32>
    %59 = vector.shape_cast %58 : vector<1x32x32xf32> to vector<32x32xf32>
    %cst_39 = arith.constant 0.000000e+00 : f32
    %60 = vector.broadcast %cst_39 : f32 to vector<10x32xf32>
    %61 = vector.extract_strided_slice %57 {offsets = [0, 0], sizes = [10, 8], strides = [1, 1]} : vector<10x96xf32> to vector<10x8xf32>
    %62 = vector.extract_strided_slice %57 {offsets = [0, 32], sizes = [10, 8], strides = [1, 1]} : vector<10x96xf32> to vector<10x8xf32>
    %63 = vector.extract_strided_slice %57 {offsets = [0, 64], sizes = [10, 8], strides = [1, 1]} : vector<10x96xf32> to vector<10x8xf32>
    %cst_40 = arith.constant dense<0.000000e+00> : vector<10x10xf32>
    %64 = tpu.matmul %61, %62, %cst_40 {dimension_numbers = #tpu.dot_dimension_numbers<[1], [1], [0], [0], [0, 0, 1, 0], [], []>} : vector<10x8xf32>, vector<10x8xf32>, vector<10x10xf32> -> vector<10x10xf32>
    %cst_41 = arith.constant 0.353553385 : f32
    %65 = vector.broadcast %cst_41 : f32 to vector<10x10xf32>
    %66 = arith.mulf %64, %65 : vector<10x10xf32>
    %67 = arith.addf %66, %24 : vector<10x10xf32>
    %cst_42 = arith.constant dense<0xFF800000> : vector<10xf32>
    %68 = vector.multi_reduction <maximumf>, %67, %cst_42 [1] : vector<10x10xf32> to vector<10xf32>
    %69 = vector.shape_cast %68 : vector<10xf32> to vector<10x1xf32>
    %70 = vector.broadcast %69 : vector<10x1xf32> to vector<10x10xf32>
    %71 = arith.subf %67, %70 : vector<10x10xf32>
    %72 = math.exp %71 : vector<10x10xf32>
    %cst_43 = arith.constant dense<0.000000e+00> : vector<10xf32>
    %73 = vector.multi_reduction <add>, %72, %cst_43 [1] : vector<10x10xf32> to vector<10xf32>
    %74 = vector.shape_cast %73 : vector<10xf32> to vector<10x1xf32>
    %75 = tpu.reciprocal %74 {approx = true} : vector<10x1xf32> -> vector<10x1xf32>
    %76 = vector.broadcast %75 : vector<10x1xf32> to vector<10x10xf32>
    %77 = arith.mulf %72, %76 : vector<10x10xf32>
    %cst_44 = arith.constant dense<0.000000e+00> : vector<10x8xf32>
    %78 = tpu.matmul %77, %63, %cst_44 {dimension_numbers = #tpu.dot_dimension_numbers<[1], [0], [0], [1], [0, 0, 1, 1], [], []>} : vector<10x10xf32>, vector<10x8xf32>, vector<10x8xf32> -> vector<10x8xf32>
    %79 = vector.extract_strided_slice %59 {offsets = [0, 0], sizes = [8, 32], strides = [1, 1]} : vector<32x32xf32> to vector<8x32xf32>
    %cst_45 = arith.constant dense<0.000000e+00> : vector<10x32xf32>
    %80 = tpu.matmul %78, %79, %cst_45 {dimension_numbers = #tpu.dot_dimension_numbers<[1], [0], [0], [1], [0, 0, 1, 1], [], []>} : vector<10x8xf32>, vector<8x32xf32>, vector<10x32xf32> -> vector<10x32xf32>
    %81 = arith.addf %60, %80 : vector<10x32xf32>
    %82 = vector.extract_strided_slice %57 {offsets = [0, 8], sizes = [10, 8], strides = [1, 1]} : vector<10x96xf32> to vector<10x8xf32>
    %83 = vector.extract_strided_slice %57 {offsets = [0, 40], sizes = [10, 8], strides = [1, 1]} : vector<10x96xf32> to vector<10x8xf32>
    %84 = vector.extract_strided_slice %57 {offsets = [0, 72], sizes = [10, 8], strides = [1, 1]} : vector<10x96xf32> to vector<10x8xf32>
    %cst_46 = arith.constant dense<0.000000e+00> : vector<10x10xf32>
    %85 = tpu.matmul %82, %83, %cst_46 {dimension_numbers = #tpu.dot_dimension_numbers<[1], [1], [0], [0], [0, 0, 1, 0], [], []>} : vector<10x8xf32>, vector<10x8xf32>, vector<10x10xf32> -> vector<10x10xf32>
    %cst_47 = arith.constant 0.353553385 : f32
    %86 = vector.broadcast %cst_47 : f32 to vector<10x10xf32>
    %87 = arith.mulf %85, %86 : vector<10x10xf32>
    %88 = arith.addf %87, %24 : vector<10x10xf32>
    %cst_48 = arith.constant dense<0xFF800000> : vector<10xf32>
    %89 = vector.multi_reduction <maximumf>, %88, %cst_48 [1] : vector<10x10xf32> to vector<10xf32>
    %90 = vector.shape_cast %89 : vector<10xf32> to vector<10x1xf32>
    %91 = vector.broadcast %90 : vector<10x1xf32> to vector<10x10xf32>
    %92 = arith.subf %88, %91 : vector<10x10xf32>
    %93 = math.exp %92 : vector<10x10xf32>
    %cst_49 = arith.constant dense<0.000000e+00> : vector<10xf32>
    %94 = vector.multi_reduction <add>, %93, %cst_49 [1] : vector<10x10xf32> to vector<10xf32>
    %95 = vector.shape_cast %94 : vector<10xf32> to vector<10x1xf32>
    %96 = tpu.reciprocal %95 {approx = true} : vector<10x1xf32> -> vector<10x1xf32>
    %97 = vector.broadcast %96 : vector<10x1xf32> to vector<10x10xf32>
    %98 = arith.mulf %93, %97 : vector<10x10xf32>
    %cst_50 = arith.constant dense<0.000000e+00> : vector<10x8xf32>
    %99 = tpu.matmul %98, %84, %cst_50 {dimension_numbers = #tpu.dot_dimension_numbers<[1], [0], [0], [1], [0, 0, 1, 1], [], []>} : vector<10x10xf32>, vector<10x8xf32>, vector<10x8xf32> -> vector<10x8xf32>
    %100 = vector.extract_strided_slice %59 {offsets = [8, 0], sizes = [8, 32], strides = [1, 1]} : vector<32x32xf32> to vector<8x32xf32>
    %cst_51 = arith.constant dense<0.000000e+00> : vector<10x32xf32>
    %101 = tpu.matmul %99, %100, %cst_51 {dimension_numbers = #tpu.dot_dimension_numbers<[1], [0], [0], [1], [0, 0, 1, 1], [], []>} : vector<10x8xf32>, vector<8x32xf32>, vector<10x32xf32> -> vector<10x32xf32>
    %102 = arith.addf %81, %101 : vector<10x32xf32>
    %103 = vector.extract_strided_slice %57 {offsets = [0, 16], sizes = [10, 8], strides = [1, 1]} : vector<10x96xf32> to vector<10x8xf32>
    %104 = vector.extract_strided_slice %57 {offsets = [0, 48], sizes = [10, 8], strides = [1, 1]} : vector<10x96xf32> to vector<10x8xf32>
    %105 = vector.extract_strided_slice %57 {offsets = [0, 80], sizes = [10, 8], strides = [1, 1]} : vector<10x96xf32> to vector<10x8xf32>
    %cst_52 = arith.constant dense<0.000000e+00> : vector<10x10xf32>
    %106 = tpu.matmul %103, %104, %cst_52 {dimension_numbers = #tpu.dot_dimension_numbers<[1], [1], [0], [0], [0, 0, 1, 0], [], []>} : vector<10x8xf32>, vector<10x8xf32>, vector<10x10xf32> -> vector<10x10xf32>
    %cst_53 = arith.constant 0.353553385 : f32
    %107 = vector.broadcast %cst_53 : f32 to vector<10x10xf32>
    %108 = arith.mulf %106, %107 : vector<10x10xf32>
    %109 = arith.addf %108, %24 : vector<10x10xf32>
    %cst_54 = arith.constant dense<0xFF800000> : vector<10xf32>
    %110 = vector.multi_reduction <maximumf>, %109, %cst_54 [1] : vector<10x10xf32> to vector<10xf32>
    %111 = vector.shape_cast %110 : vector<10xf32> to vector<10x1xf32>
    %112 = vector.broadcast %111 : vector<10x1xf32> to vector<10x10xf32>
    %113 = arith.subf %109, %112 : vector<10x10xf32>
    %114 = math.exp %113 : vector<10x10xf32>
    %cst_55 = arith.constant dense<0.000000e+00> : vector<10xf32>
    %115 = vector.multi_reduction <add>, %114, %cst_55 [1] : vector<10x10xf32> to vector<10xf32>
    %116 = vector.shape_cast %115 : vector<10xf32> to vector<10x1xf32>
    %117 = tpu.reciprocal %116 {approx = true} : vector<10x1xf32> -> vector<10x1xf32>
    %118 = vector.broadcast %117 : vector<10x1xf32> to vector<10x10xf32>
    %119 = arith.mulf %114, %118 : vector<10x10xf32>
    %cst_56 = arith.constant dense<0.000000e+00> : vector<10x8xf32>
    %120 = tpu.matmul %119, %105, %cst_56 {dimension_numbers = #tpu.dot_dimension_numbers<[1], [0], [0], [1], [0, 0, 1, 1], [], []>} : vector<10x10xf32>, vector<10x8xf32>, vector<10x8xf32> -> vector<10x8xf32>
    %121 = vector.extract_strided_slice %59 {offsets = [16, 0], sizes = [8, 32], strides = [1, 1]} : vector<32x32xf32> to vector<8x32xf32>
    %cst_57 = arith.constant dense<0.000000e+00> : vector<10x32xf32>
    %122 = tpu.matmul %120, %121, %cst_57 {dimension_numbers = #tpu.dot_dimension_numbers<[1], [0], [0], [1], [0, 0, 1, 1], [], []>} : vector<10x8xf32>, vector<8x32xf32>, vector<10x32xf32> -> vector<10x32xf32>
    %123 = arith.addf %102, %122 : vector<10x32xf32>
    %124 = vector.extract_strided_slice %57 {offsets = [0, 24], sizes = [10, 8], strides = [1, 1]} : vector<10x96xf32> to vector<10x8xf32>
    %125 = vector.extract_strided_slice %57 {offsets = [0, 56], sizes = [10, 8], strides = [1, 1]} : vector<10x96xf32> to vector<10x8xf32>
    %126 = vector.extract_strided_slice %57 {offsets = [0, 88], sizes = [10, 8], strides = [1, 1]} : vector<10x96xf32> to vector<10x8xf32>
    %cst_58 = arith.constant dense<0.000000e+00> : vector<10x10xf32>
    %127 = tpu.matmul %124, %125, %cst_58 {dimension_numbers = #tpu.dot_dimension_numbers<[1], [1], [0], [0], [0, 0, 1, 0], [], []>} : vector<10x8xf32>, vector<10x8xf32>, vector<10x10xf32> -> vector<10x10xf32>
    %cst_59 = arith.constant 0.353553385 : f32
    %128 = vector.broadcast %cst_59 : f32 to vector<10x10xf32>
    %129 = arith.mulf %127, %128 : vector<10x10xf32>
    %130 = arith.addf %129, %24 : vector<10x10xf32>
    %cst_60 = arith.constant dense<0xFF800000> : vector<10xf32>
    %131 = vector.multi_reduction <maximumf>, %130, %cst_60 [1] : vector<10x10xf32> to vector<10xf32>
    %132 = vector.shape_cast %131 : vector<10xf32> to vector<10x1xf32>
    %133 = vector.broadcast %132 : vector<10x1xf32> to vector<10x10xf32>
    %134 = arith.subf %130, %133 : vector<10x10xf32>
    %135 = math.exp %134 : vector<10x10xf32>
    %cst_61 = arith.constant dense<0.000000e+00> : vector<10xf32>
    %136 = vector.multi_reduction <add>, %135, %cst_61 [1] : vector<10x10xf32> to vector<10xf32>
    %137 = vector.shape_cast %136 : vector<10xf32> to vector<10x1xf32>
    %138 = tpu.reciprocal %137 {approx = true} : vector<10x1xf32> -> vector<10x1xf32>
    %139 = vector.broadcast %138 : vector<10x1xf32> to vector<10x10xf32>
    %140 = arith.mulf %135, %139 : vector<10x10xf32>
    %cst_62 = arith.constant dense<0.000000e+00> : vector<10x8xf32>
    %141 = tpu.matmul %140, %126, %cst_62 {dimension_numbers = #tpu.dot_dimension_numbers<[1], [0], [0], [1], [0, 0, 1, 1], [], []>} : vector<10x10xf32>, vector<10x8xf32>, vector<10x8xf32> -> vector<10x8xf32>
    %142 = vector.extract_strided_slice %59 {offsets = [24, 0], sizes = [8, 32], strides = [1, 1]} : vector<32x32xf32> to vector<8x32xf32>
    %cst_63 = arith.constant dense<0.000000e+00> : vector<10x32xf32>
    %143 = tpu.matmul %141, %142, %cst_63 {dimension_numbers = #tpu.dot_dimension_numbers<[1], [0], [0], [1], [0, 0, 1, 1], [], []>} : vector<10x8xf32>, vector<8x32xf32>, vector<10x32xf32> -> vector<10x32xf32>
    %144 = arith.addf %123, %143 : vector<10x32xf32>
    %c0_64 = arith.constant 0 : index
    %c0_65 = arith.constant 0 : index
    %c0_66 = arith.constant 0 : index
    %145 = vector.load %arg13[%c0_64, %c0_65, %c0_66] : memref<2x1x32xf32, #tpu.memory_space<vmem>>, vector<1x1x32xf32>
    %146 = vector.shape_cast %145 : vector<1x1x32xf32> to vector<1x32xf32>
    %147 = vector.broadcast %146 : vector<1x32xf32> to vector<10x32xf32>
    %148 = arith.addf %144, %147 : vector<10x32xf32>
    %c0_67 = arith.constant 0 : index
    %c0_68 = arith.constant 0 : index
    %c0_69 = arith.constant 0 : index
    %149 = vector.load %arg14[%c0_67, %c0_68, %c0_69] : memref<2x1x32xf32, #tpu.memory_space<vmem>>, vector<1x1x32xf32>
    %150 = vector.shape_cast %149 : vector<1x1x32xf32> to vector<1x32xf32>
    %151 = vector.broadcast %150 : vector<1x32xf32> to vector<10x32xf32>
    %152 = arith.mulf %148, %151 : vector<10x32xf32>
    %153 = arith.addf %23, %152 : vector<10x32xf32>
    %c0_70 = arith.constant 0 : index
    %c0_71 = arith.constant 0 : index
    %c0_72 = arith.constant 0 : index
    %154 = vector.load %arg15[%c0_70, %c0_71, %c0_72] : memref<2x1x32xf32, #tpu.memory_space<vmem>>, vector<1x1x32xf32>
    %155 = vector.shape_cast %154 : vector<1x1x32xf32> to vector<1x32xf32>
    %c0_73 = arith.constant 0 : index
    %c0_74 = arith.constant 0 : index
    %c0_75 = arith.constant 0 : index
    %156 = vector.load %arg16[%c0_73, %c0_74, %c0_75] : memref<2x1x32xf32, #tpu.memory_space<vmem>>, vector<1x1x32xf32>
    %157 = vector.shape_cast %156 : vector<1x1x32xf32> to vector<1x32xf32>
    %cst_76 = arith.constant dense<0.000000e+00> : vector<10xf32>
    %158 = vector.multi_reduction <add>, %153, %cst_76 [1] : vector<10x32xf32> to vector<10xf32>
    %159 = vector.shape_cast %158 : vector<10xf32> to vector<10x1xf32>
    %cst_77 = arith.constant 3.200000e+01 : f32
    %160 = vector.broadcast %cst_77 : f32 to vector<10x1xf32>
    %161 = arith.divf %159, %160 : vector<10x1xf32>
    %162 = vector.broadcast %161 : vector<10x1xf32> to vector<10x32xf32>
    %163 = arith.subf %153, %162 : vector<10x32xf32>
    %164 = arith.mulf %163, %163 : vector<10x32xf32>
    %cst_78 = arith.constant dense<0.000000e+00> : vector<10xf32>
    %165 = vector.multi_reduction <add>, %164, %cst_78 [1] : vector<10x32xf32> to vector<10xf32>
    %166 = vector.shape_cast %165 : vector<10xf32> to vector<10x1xf32>
    %cst_79 = arith.constant 3.200000e+01 : f32
    %167 = vector.broadcast %cst_79 : f32 to vector<10x1xf32>
    %168 = arith.divf %166, %167 : vector<10x1xf32>
    %169 = vector.broadcast %161 : vector<10x1xf32> to vector<10x32xf32>
    %170 = arith.subf %153, %169 : vector<10x32xf32>
    %cst_80 = arith.constant 9.99999997E-7 : f32
    %171 = vector.broadcast %cst_80 : f32 to vector<10x1xf32>
    %172 = arith.addf %168, %171 : vector<10x1xf32>
    %173 = math.rsqrt %172 : vector<10x1xf32>
    %174 = vector.broadcast %173 : vector<10x1xf32> to vector<10x32xf32>
    %175 = arith.mulf %170, %174 : vector<10x32xf32>
    %176 = vector.broadcast %155 : vector<1x32xf32> to vector<10x32xf32>
    %177 = arith.mulf %175, %176 : vector<10x32xf32>
    %178 = vector.broadcast %157 : vector<1x32xf32> to vector<10x32xf32>
    %179 = arith.addf %177, %178 : vector<10x32xf32>
    %c0_81 = arith.constant 0 : index
    %c0_82 = arith.constant 0 : index
    %c0_83 = arith.constant 0 : index
    %180 = vector.load %arg17[%c0_81, %c0_82, %c0_83] : memref<2x32x128xf32, #tpu.memory_space<vmem>>, vector<1x32x128xf32>
    %181 = vector.shape_cast %180 : vector<1x32x128xf32> to vector<32x128xf32>
    %cst_84 = arith.constant dense<0.000000e+00> : vector<10x128xf32>
    %182 = tpu.matmul %179, %181, %cst_84 {dimension_numbers = #tpu.dot_dimension_numbers<[1], [0], [0], [1], [0, 0, 1, 1], [], []>} : vector<10x32xf32>, vector<32x128xf32>, vector<10x128xf32> -> vector<10x128xf32>
    %c0_85 = arith.constant 0 : index
    %c0_86 = arith.constant 0 : index
    %c0_87 = arith.constant 0 : index
    %183 = vector.load %arg18[%c0_85, %c0_86, %c0_87] : memref<2x1x128xf32, #tpu.memory_space<vmem>>, vector<1x1x128xf32>
    %184 = vector.shape_cast %183 : vector<1x1x128xf32> to vector<1x128xf32>
    %185 = vector.broadcast %184 : vector<1x128xf32> to vector<10x128xf32>
    %186 = arith.addf %182, %185 : vector<10x128xf32>
    %cst_88 = arith.constant 5.000000e-01 : f32
    %187 = vector.broadcast %cst_88 : f32 to vector<10x128xf32>
    %188 = arith.mulf %187, %186 : vector<10x128xf32>
    %cst_89 = arith.constant 4.471500e-02 : f32
    %189 = vector.broadcast %cst_89 : f32 to vector<10x128xf32>
    %190 = arith.mulf %189, %186 : vector<10x128xf32>
    %191 = arith.mulf %190, %186 : vector<10x128xf32>
    %192 = arith.mulf %191, %186 : vector<10x128xf32>
    %193 = arith.addf %186, %192 : vector<10x128xf32>
    %cst_90 = arith.constant 0.797884583 : f32
    %194 = vector.broadcast %cst_90 : f32 to vector<10x128xf32>
    %195 = arith.mulf %194, %193 : vector<10x128xf32>
    %196 = math.tanh %195 : vector<10x128xf32>
    %cst_91 = arith.constant 1.000000e+00 : f32
    %197 = vector.broadcast %cst_91 : f32 to vector<10x128xf32>
    %198 = arith.addf %197, %196 : vector<10x128xf32>
    %199 = arith.mulf %188, %198 : vector<10x128xf32>
    %c0_92 = arith.constant 0 : index
    %c0_93 = arith.constant 0 : index
    %c0_94 = arith.constant 0 : index
    %200 = vector.load %arg19[%c0_92, %c0_93, %c0_94] : memref<2x128x32xf32, #tpu.memory_space<vmem>>, vector<1x128x32xf32>
    %201 = vector.shape_cast %200 : vector<1x128x32xf32> to vector<128x32xf32>
    %cst_95 = arith.constant dense<0.000000e+00> : vector<10x32xf32>
    %202 = tpu.matmul %199, %201, %cst_95 {dimension_numbers = #tpu.dot_dimension_numbers<[1], [0], [0], [1], [0, 0, 1, 1], [], []>} : vector<10x128xf32>, vector<128x32xf32>, vector<10x32xf32> -> vector<10x32xf32>
    %c0_96 = arith.constant 0 : index
    %c0_97 = arith.constant 0 : index
    %c0_98 = arith.constant 0 : index
    %203 = vector.load %arg20[%c0_96, %c0_97, %c0_98] : memref<2x1x32xf32, #tpu.memory_space<vmem>>, vector<1x1x32xf32>
    %204 = vector.shape_cast %203 : vector<1x1x32xf32> to vector<1x32xf32>
    %205 = vector.broadcast %204 : vector<1x32xf32> to vector<10x32xf32>
    %206 = arith.addf %202, %205 : vector<10x32xf32>
    %c0_99 = arith.constant 0 : index
    %c0_100 = arith.constant 0 : index
    %c0_101 = arith.constant 0 : index
    %207 = vector.load %arg21[%c0_99, %c0_100, %c0_101] : memref<2x1x32xf32, #tpu.memory_space<vmem>>, vector<1x1x32xf32>
    %208 = vector.shape_cast %207 : vector<1x1x32xf32> to vector<1x32xf32>
    %209 = vector.broadcast %208 : vector<1x32xf32> to vector<10x32xf32>
    %210 = arith.mulf %206, %209 : vector<10x32xf32>
    %211 = arith.addf %153, %210 : vector<10x32xf32>
    %c1 = arith.constant 1 : index
    %c0_102 = arith.constant 0 : index
    %c0_103 = arith.constant 0 : index
    %212 = vector.load %arg8[%c1, %c0_102, %c0_103] : memref<2x1x32xf32, #tpu.memory_space<vmem>>, vector<1x1x32xf32>
    %213 = vector.shape_cast %212 : vector<1x1x32xf32> to vector<1x32xf32>
    %c1_104 = arith.constant 1 : index
    %c0_105 = arith.constant 0 : index
    %c0_106 = arith.constant 0 : index
    %214 = vector.load %arg9[%c1_104, %c0_105, %c0_106] : memref<2x1x32xf32, #tpu.memory_space<vmem>>, vector<1x1x32xf32>
    %215 = vector.shape_cast %214 : vector<1x1x32xf32> to vector<1x32xf32>
    %cst_107 = arith.constant dense<0.000000e+00> : vector<10xf32>
    %216 = vector.multi_reduction <add>, %211, %cst_107 [1] : vector<10x32xf32> to vector<10xf32>
    %217 = vector.shape_cast %216 : vector<10xf32> to vector<10x1xf32>
    %cst_108 = arith.constant 3.200000e+01 : f32
    %218 = vector.broadcast %cst_108 : f32 to vector<10x1xf32>
    %219 = arith.divf %217, %218 : vector<10x1xf32>
    %220 = vector.broadcast %219 : vector<10x1xf32> to vector<10x32xf32>
    %221 = arith.subf %211, %220 : vector<10x32xf32>
    %222 = arith.mulf %221, %221 : vector<10x32xf32>
    %cst_109 = arith.constant dense<0.000000e+00> : vector<10xf32>
    %223 = vector.multi_reduction <add>, %222, %cst_109 [1] : vector<10x32xf32> to vector<10xf32>
    %224 = vector.shape_cast %223 : vector<10xf32> to vector<10x1xf32>
    %cst_110 = arith.constant 3.200000e+01 : f32
    %225 = vector.broadcast %cst_110 : f32 to vector<10x1xf32>
    %226 = arith.divf %224, %225 : vector<10x1xf32>
    %227 = vector.broadcast %219 : vector<10x1xf32> to vector<10x32xf32>
    %228 = arith.subf %211, %227 : vector<10x32xf32>
    %cst_111 = arith.constant 9.99999997E-7 : f32
    %229 = vector.broadcast %cst_111 : f32 to vector<10x1xf32>
    %230 = arith.addf %226, %229 : vector<10x1xf32>
    %231 = math.rsqrt %230 : vector<10x1xf32>
    %232 = vector.broadcast %231 : vector<10x1xf32> to vector<10x32xf32>
    %233 = arith.mulf %228, %232 : vector<10x32xf32>
    %234 = vector.broadcast %213 : vector<1x32xf32> to vector<10x32xf32>
    %235 = arith.mulf %233, %234 : vector<10x32xf32>
    %236 = vector.broadcast %215 : vector<1x32xf32> to vector<10x32xf32>
    %237 = arith.addf %235, %236 : vector<10x32xf32>
    %c1_112 = arith.constant 1 : index
    %c0_113 = arith.constant 0 : index
    %c0_114 = arith.constant 0 : index
    %238 = vector.load %arg10[%c1_112, %c0_113, %c0_114] : memref<2x32x96xf32, #tpu.memory_space<vmem>>, vector<1x32x96xf32>
    %239 = vector.shape_cast %238 : vector<1x32x96xf32> to vector<32x96xf32>
    %cst_115 = arith.constant dense<0.000000e+00> : vector<10x96xf32>
    %240 = tpu.matmul %237, %239, %cst_115 {dimension_numbers = #tpu.dot_dimension_numbers<[1], [0], [0], [1], [0, 0, 1, 1], [], []>} : vector<10x32xf32>, vector<32x96xf32>, vector<10x96xf32> -> vector<10x96xf32>
    %c1_116 = arith.constant 1 : index
    %c0_117 = arith.constant 0 : index
    %c0_118 = arith.constant 0 : index
    %241 = vector.load %arg11[%c1_116, %c0_117, %c0_118] : memref<2x1x96xf32, #tpu.memory_space<vmem>>, vector<1x1x96xf32>
    %242 = vector.shape_cast %241 : vector<1x1x96xf32> to vector<1x96xf32>
    %243 = vector.broadcast %242 : vector<1x96xf32> to vector<10x96xf32>
    %244 = arith.addf %240, %243 : vector<10x96xf32>
    %c1_119 = arith.constant 1 : index
    %c0_120 = arith.constant 0 : index
    %c0_121 = arith.constant 0 : index
    %245 = vector.load %arg12[%c1_119, %c0_120, %c0_121] : memref<2x32x32xf32, #tpu.memory_space<vmem>>, vector<1x32x32xf32>
    %246 = vector.shape_cast %245 : vector<1x32x32xf32> to vector<32x32xf32>
    %cst_122 = arith.constant 0.000000e+00 : f32
    %247 = vector.broadcast %cst_122 : f32 to vector<10x32xf32>
    %248 = vector.extract_strided_slice %244 {offsets = [0, 0], sizes = [10, 8], strides = [1, 1]} : vector<10x96xf32> to vector<10x8xf32>
    %249 = vector.extract_strided_slice %244 {offsets = [0, 32], sizes = [10, 8], strides = [1, 1]} : vector<10x96xf32> to vector<10x8xf32>
    %250 = vector.extract_strided_slice %244 {offsets = [0, 64], sizes = [10, 8], strides = [1, 1]} : vector<10x96xf32> to vector<10x8xf32>
    %cst_123 = arith.constant dense<0.000000e+00> : vector<10x10xf32>
    %251 = tpu.matmul %248, %249, %cst_123 {dimension_numbers = #tpu.dot_dimension_numbers<[1], [1], [0], [0], [0, 0, 1, 0], [], []>} : vector<10x8xf32>, vector<10x8xf32>, vector<10x10xf32> -> vector<10x10xf32>
    %cst_124 = arith.constant 0.353553385 : f32
    %252 = vector.broadcast %cst_124 : f32 to vector<10x10xf32>
    %253 = arith.mulf %251, %252 : vector<10x10xf32>
    %254 = arith.addf %253, %24 : vector<10x10xf32>
    %cst_125 = arith.constant dense<0xFF800000> : vector<10xf32>
    %255 = vector.multi_reduction <maximumf>, %254, %cst_125 [1] : vector<10x10xf32> to vector<10xf32>
    %256 = vector.shape_cast %255 : vector<10xf32> to vector<10x1xf32>
    %257 = vector.broadcast %256 : vector<10x1xf32> to vector<10x10xf32>
    %258 = arith.subf %254, %257 : vector<10x10xf32>
    %259 = math.exp %258 : vector<10x10xf32>
    %cst_126 = arith.constant dense<0.000000e+00> : vector<10xf32>
    %260 = vector.multi_reduction <add>, %259, %cst_126 [1] : vector<10x10xf32> to vector<10xf32>
    %261 = vector.shape_cast %260 : vector<10xf32> to vector<10x1xf32>
    %262 = tpu.reciprocal %261 {approx = true} : vector<10x1xf32> -> vector<10x1xf32>
    %263 = vector.broadcast %262 : vector<10x1xf32> to vector<10x10xf32>
    %264 = arith.mulf %259, %263 : vector<10x10xf32>
    %cst_127 = arith.constant dense<0.000000e+00> : vector<10x8xf32>
    %265 = tpu.matmul %264, %250, %cst_127 {dimension_numbers = #tpu.dot_dimension_numbers<[1], [0], [0], [1], [0, 0, 1, 1], [], []>} : vector<10x10xf32>, vector<10x8xf32>, vector<10x8xf32> -> vector<10x8xf32>
    %266 = vector.extract_strided_slice %246 {offsets = [0, 0], sizes = [8, 32], strides = [1, 1]} : vector<32x32xf32> to vector<8x32xf32>
    %cst_128 = arith.constant dense<0.000000e+00> : vector<10x32xf32>
    %267 = tpu.matmul %265, %266, %cst_128 {dimension_numbers = #tpu.dot_dimension_numbers<[1], [0], [0], [1], [0, 0, 1, 1], [], []>} : vector<10x8xf32>, vector<8x32xf32>, vector<10x32xf32> -> vector<10x32xf32>
    %268 = arith.addf %247, %267 : vector<10x32xf32>
    %269 = vector.extract_strided_slice %244 {offsets = [0, 8], sizes = [10, 8], strides = [1, 1]} : vector<10x96xf32> to vector<10x8xf32>
    %270 = vector.extract_strided_slice %244 {offsets = [0, 40], sizes = [10, 8], strides = [1, 1]} : vector<10x96xf32> to vector<10x8xf32>
    %271 = vector.extract_strided_slice %244 {offsets = [0, 72], sizes = [10, 8], strides = [1, 1]} : vector<10x96xf32> to vector<10x8xf32>
    %cst_129 = arith.constant dense<0.000000e+00> : vector<10x10xf32>
    %272 = tpu.matmul %269, %270, %cst_129 {dimension_numbers = #tpu.dot_dimension_numbers<[1], [1], [0], [0], [0, 0, 1, 0], [], []>} : vector<10x8xf32>, vector<10x8xf32>, vector<10x10xf32> -> vector<10x10xf32>
    %cst_130 = arith.constant 0.353553385 : f32
    %273 = vector.broadcast %cst_130 : f32 to vector<10x10xf32>
    %274 = arith.mulf %272, %273 : vector<10x10xf32>
    %275 = arith.addf %274, %24 : vector<10x10xf32>
    %cst_131 = arith.constant dense<0xFF800000> : vector<10xf32>
    %276 = vector.multi_reduction <maximumf>, %275, %cst_131 [1] : vector<10x10xf32> to vector<10xf32>
    %277 = vector.shape_cast %276 : vector<10xf32> to vector<10x1xf32>
    %278 = vector.broadcast %277 : vector<10x1xf32> to vector<10x10xf32>
    %279 = arith.subf %275, %278 : vector<10x10xf32>
    %280 = math.exp %279 : vector<10x10xf32>
    %cst_132 = arith.constant dense<0.000000e+00> : vector<10xf32>
    %281 = vector.multi_reduction <add>, %280, %cst_132 [1] : vector<10x10xf32> to vector<10xf32>
    %282 = vector.shape_cast %281 : vector<10xf32> to vector<10x1xf32>
    %283 = tpu.reciprocal %282 {approx = true} : vector<10x1xf32> -> vector<10x1xf32>
    %284 = vector.broadcast %283 : vector<10x1xf32> to vector<10x10xf32>
    %285 = arith.mulf %280, %284 : vector<10x10xf32>
    %cst_133 = arith.constant dense<0.000000e+00> : vector<10x8xf32>
    %286 = tpu.matmul %285, %271, %cst_133 {dimension_numbers = #tpu.dot_dimension_numbers<[1], [0], [0], [1], [0, 0, 1, 1], [], []>} : vector<10x10xf32>, vector<10x8xf32>, vector<10x8xf32> -> vector<10x8xf32>
    %287 = vector.extract_strided_slice %246 {offsets = [8, 0], sizes = [8, 32], strides = [1, 1]} : vector<32x32xf32> to vector<8x32xf32>
    %cst_134 = arith.constant dense<0.000000e+00> : vector<10x32xf32>
    %288 = tpu.matmul %286, %287, %cst_134 {dimension_numbers = #tpu.dot_dimension_numbers<[1], [0], [0], [1], [0, 0, 1, 1], [], []>} : vector<10x8xf32>, vector<8x32xf32>, vector<10x32xf32> -> vector<10x32xf32>
    %289 = arith.addf %268, %288 : vector<10x32xf32>
    %290 = vector.extract_strided_slice %244 {offsets = [0, 16], sizes = [10, 8], strides = [1, 1]} : vector<10x96xf32> to vector<10x8xf32>
    %291 = vector.extract_strided_slice %244 {offsets = [0, 48], sizes = [10, 8], strides = [1, 1]} : vector<10x96xf32> to vector<10x8xf32>
    %292 = vector.extract_strided_slice %244 {offsets = [0, 80], sizes = [10, 8], strides = [1, 1]} : vector<10x96xf32> to vector<10x8xf32>
    %cst_135 = arith.constant dense<0.000000e+00> : vector<10x10xf32>
    %293 = tpu.matmul %290, %291, %cst_135 {dimension_numbers = #tpu.dot_dimension_numbers<[1], [1], [0], [0], [0, 0, 1, 0], [], []>} : vector<10x8xf32>, vector<10x8xf32>, vector<10x10xf32> -> vector<10x10xf32>
    %cst_136 = arith.constant 0.353553385 : f32
    %294 = vector.broadcast %cst_136 : f32 to vector<10x10xf32>
    %295 = arith.mulf %293, %294 : vector<10x10xf32>
    %296 = arith.addf %295, %24 : vector<10x10xf32>
    %cst_137 = arith.constant dense<0xFF800000> : vector<10xf32>
    %297 = vector.multi_reduction <maximumf>, %296, %cst_137 [1] : vector<10x10xf32> to vector<10xf32>
    %298 = vector.shape_cast %297 : vector<10xf32> to vector<10x1xf32>
    %299 = vector.broadcast %298 : vector<10x1xf32> to vector<10x10xf32>
    %300 = arith.subf %296, %299 : vector<10x10xf32>
    %301 = math.exp %300 : vector<10x10xf32>
    %cst_138 = arith.constant dense<0.000000e+00> : vector<10xf32>
    %302 = vector.multi_reduction <add>, %301, %cst_138 [1] : vector<10x10xf32> to vector<10xf32>
    %303 = vector.shape_cast %302 : vector<10xf32> to vector<10x1xf32>
    %304 = tpu.reciprocal %303 {approx = true} : vector<10x1xf32> -> vector<10x1xf32>
    %305 = vector.broadcast %304 : vector<10x1xf32> to vector<10x10xf32>
    %306 = arith.mulf %301, %305 : vector<10x10xf32>
    %cst_139 = arith.constant dense<0.000000e+00> : vector<10x8xf32>
    %307 = tpu.matmul %306, %292, %cst_139 {dimension_numbers = #tpu.dot_dimension_numbers<[1], [0], [0], [1], [0, 0, 1, 1], [], []>} : vector<10x10xf32>, vector<10x8xf32>, vector<10x8xf32> -> vector<10x8xf32>
    %308 = vector.extract_strided_slice %246 {offsets = [16, 0], sizes = [8, 32], strides = [1, 1]} : vector<32x32xf32> to vector<8x32xf32>
    %cst_140 = arith.constant dense<0.000000e+00> : vector<10x32xf32>
    %309 = tpu.matmul %307, %308, %cst_140 {dimension_numbers = #tpu.dot_dimension_numbers<[1], [0], [0], [1], [0, 0, 1, 1], [], []>} : vector<10x8xf32>, vector<8x32xf32>, vector<10x32xf32> -> vector<10x32xf32>
    %310 = arith.addf %289, %309 : vector<10x32xf32>
    %311 = vector.extract_strided_slice %244 {offsets = [0, 24], sizes = [10, 8], strides = [1, 1]} : vector<10x96xf32> to vector<10x8xf32>
    %312 = vector.extract_strided_slice %244 {offsets = [0, 56], sizes = [10, 8], strides = [1, 1]} : vector<10x96xf32> to vector<10x8xf32>
    %313 = vector.extract_strided_slice %244 {offsets = [0, 88], sizes = [10, 8], strides = [1, 1]} : vector<10x96xf32> to vector<10x8xf32>
    %cst_141 = arith.constant dense<0.000000e+00> : vector<10x10xf32>
    %314 = tpu.matmul %311, %312, %cst_141 {dimension_numbers = #tpu.dot_dimension_numbers<[1], [1], [0], [0], [0, 0, 1, 0], [], []>} : vector<10x8xf32>, vector<10x8xf32>, vector<10x10xf32> -> vector<10x10xf32>
    %cst_142 = arith.constant 0.353553385 : f32
    %315 = vector.broadcast %cst_142 : f32 to vector<10x10xf32>
    %316 = arith.mulf %314, %315 : vector<10x10xf32>
    %317 = arith.addf %316, %24 : vector<10x10xf32>
    %cst_143 = arith.constant dense<0xFF800000> : vector<10xf32>
    %318 = vector.multi_reduction <maximumf>, %317, %cst_143 [1] : vector<10x10xf32> to vector<10xf32>
    %319 = vector.shape_cast %318 : vector<10xf32> to vector<10x1xf32>
    %320 = vector.broadcast %319 : vector<10x1xf32> to vector<10x10xf32>
    %321 = arith.subf %317, %320 : vector<10x10xf32>
    %322 = math.exp %321 : vector<10x10xf32>
    %cst_144 = arith.constant dense<0.000000e+00> : vector<10xf32>
    %323 = vector.multi_reduction <add>, %322, %cst_144 [1] : vector<10x10xf32> to vector<10xf32>
    %324 = vector.shape_cast %323 : vector<10xf32> to vector<10x1xf32>
    %325 = tpu.reciprocal %324 {approx = true} : vector<10x1xf32> -> vector<10x1xf32>
    %326 = vector.broadcast %325 : vector<10x1xf32> to vector<10x10xf32>
    %327 = arith.mulf %322, %326 : vector<10x10xf32>
    %cst_145 = arith.constant dense<0.000000e+00> : vector<10x8xf32>
    %328 = tpu.matmul %327, %313, %cst_145 {dimension_numbers = #tpu.dot_dimension_numbers<[1], [0], [0], [1], [0, 0, 1, 1], [], []>} : vector<10x10xf32>, vector<10x8xf32>, vector<10x8xf32> -> vector<10x8xf32>
    %329 = vector.extract_strided_slice %246 {offsets = [24, 0], sizes = [8, 32], strides = [1, 1]} : vector<32x32xf32> to vector<8x32xf32>
    %cst_146 = arith.constant dense<0.000000e+00> : vector<10x32xf32>
    %330 = tpu.matmul %328, %329, %cst_146 {dimension_numbers = #tpu.dot_dimension_numbers<[1], [0], [0], [1], [0, 0, 1, 1], [], []>} : vector<10x8xf32>, vector<8x32xf32>, vector<10x32xf32> -> vector<10x32xf32>
    %331 = arith.addf %310, %330 : vector<10x32xf32>
    %c1_147 = arith.constant 1 : index
    %c0_148 = arith.constant 0 : index
    %c0_149 = arith.constant 0 : index
    %332 = vector.load %arg13[%c1_147, %c0_148, %c0_149] : memref<2x1x32xf32, #tpu.memory_space<vmem>>, vector<1x1x32xf32>
    %333 = vector.shape_cast %332 : vector<1x1x32xf32> to vector<1x32xf32>
    %334 = vector.broadcast %333 : vector<1x32xf32> to vector<10x32xf32>
    %335 = arith.addf %331, %334 : vector<10x32xf32>
    %c1_150 = arith.constant 1 : index
    %c0_151 = arith.constant 0 : index
    %c0_152 = arith.constant 0 : index
    %336 = vector.load %arg14[%c1_150, %c0_151, %c0_152] : memref<2x1x32xf32, #tpu.memory_space<vmem>>, vector<1x1x32xf32>
    %337 = vector.shape_cast %336 : vector<1x1x32xf32> to vector<1x32xf32>
    %338 = vector.broadcast %337 : vector<1x32xf32> to vector<10x32xf32>
    %339 = arith.mulf %335, %338 : vector<10x32xf32>
    %340 = arith.addf %211, %339 : vector<10x32xf32>
    %c1_153 = arith.constant 1 : index
    %c0_154 = arith.constant 0 : index
    %c0_155 = arith.constant 0 : index
    %341 = vector.load %arg15[%c1_153, %c0_154, %c0_155] : memref<2x1x32xf32, #tpu.memory_space<vmem>>, vector<1x1x32xf32>
    %342 = vector.shape_cast %341 : vector<1x1x32xf32> to vector<1x32xf32>
    %c1_156 = arith.constant 1 : index
    %c0_157 = arith.constant 0 : index
    %c0_158 = arith.constant 0 : index
    %343 = vector.load %arg16[%c1_156, %c0_157, %c0_158] : memref<2x1x32xf32, #tpu.memory_space<vmem>>, vector<1x1x32xf32>
    %344 = vector.shape_cast %343 : vector<1x1x32xf32> to vector<1x32xf32>
    %cst_159 = arith.constant dense<0.000000e+00> : vector<10xf32>
    %345 = vector.multi_reduction <add>, %340, %cst_159 [1] : vector<10x32xf32> to vector<10xf32>
    %346 = vector.shape_cast %345 : vector<10xf32> to vector<10x1xf32>
    %cst_160 = arith.constant 3.200000e+01 : f32
    %347 = vector.broadcast %cst_160 : f32 to vector<10x1xf32>
    %348 = arith.divf %346, %347 : vector<10x1xf32>
    %349 = vector.broadcast %348 : vector<10x1xf32> to vector<10x32xf32>
    %350 = arith.subf %340, %349 : vector<10x32xf32>
    %351 = arith.mulf %350, %350 : vector<10x32xf32>
    %cst_161 = arith.constant dense<0.000000e+00> : vector<10xf32>
    %352 = vector.multi_reduction <add>, %351, %cst_161 [1] : vector<10x32xf32> to vector<10xf32>
    %353 = vector.shape_cast %352 : vector<10xf32> to vector<10x1xf32>
    %cst_162 = arith.constant 3.200000e+01 : f32
    %354 = vector.broadcast %cst_162 : f32 to vector<10x1xf32>
    %355 = arith.divf %353, %354 : vector<10x1xf32>
    %356 = vector.broadcast %348 : vector<10x1xf32> to vector<10x32xf32>
    %357 = arith.subf %340, %356 : vector<10x32xf32>
    %cst_163 = arith.constant 9.99999997E-7 : f32
    %358 = vector.broadcast %cst_163 : f32 to vector<10x1xf32>
    %359 = arith.addf %355, %358 : vector<10x1xf32>
    %360 = math.rsqrt %359 : vector<10x1xf32>
    %361 = vector.broadcast %360 : vector<10x1xf32> to vector<10x32xf32>
    %362 = arith.mulf %357, %361 : vector<10x32xf32>
    %363 = vector.broadcast %342 : vector<1x32xf32> to vector<10x32xf32>
    %364 = arith.mulf %362, %363 : vector<10x32xf32>
    %365 = vector.broadcast %344 : vector<1x32xf32> to vector<10x32xf32>
    %366 = arith.addf %364, %365 : vector<10x32xf32>
    %c1_164 = arith.constant 1 : index
    %c0_165 = arith.constant 0 : index
    %c0_166 = arith.constant 0 : index
    %367 = vector.load %arg17[%c1_164, %c0_165, %c0_166] : memref<2x32x128xf32, #tpu.memory_space<vmem>>, vector<1x32x128xf32>
    %368 = vector.shape_cast %367 : vector<1x32x128xf32> to vector<32x128xf32>
    %cst_167 = arith.constant dense<0.000000e+00> : vector<10x128xf32>
    %369 = tpu.matmul %366, %368, %cst_167 {dimension_numbers = #tpu.dot_dimension_numbers<[1], [0], [0], [1], [0, 0, 1, 1], [], []>} : vector<10x32xf32>, vector<32x128xf32>, vector<10x128xf32> -> vector<10x128xf32>
    %c1_168 = arith.constant 1 : index
    %c0_169 = arith.constant 0 : index
    %c0_170 = arith.constant 0 : index
    %370 = vector.load %arg18[%c1_168, %c0_169, %c0_170] : memref<2x1x128xf32, #tpu.memory_space<vmem>>, vector<1x1x128xf32>
    %371 = vector.shape_cast %370 : vector<1x1x128xf32> to vector<1x128xf32>
    %372 = vector.broadcast %371 : vector<1x128xf32> to vector<10x128xf32>
    %373 = arith.addf %369, %372 : vector<10x128xf32>
    %cst_171 = arith.constant 5.000000e-01 : f32
    %374 = vector.broadcast %cst_171 : f32 to vector<10x128xf32>
    %375 = arith.mulf %374, %373 : vector<10x128xf32>
    %cst_172 = arith.constant 4.471500e-02 : f32
    %376 = vector.broadcast %cst_172 : f32 to vector<10x128xf32>
    %377 = arith.mulf %376, %373 : vector<10x128xf32>
    %378 = arith.mulf %377, %373 : vector<10x128xf32>
    %379 = arith.mulf %378, %373 : vector<10x128xf32>
    %380 = arith.addf %373, %379 : vector<10x128xf32>
    %cst_173 = arith.constant 0.797884583 : f32
    %381 = vector.broadcast %cst_173 : f32 to vector<10x128xf32>
    %382 = arith.mulf %381, %380 : vector<10x128xf32>
    %383 = math.tanh %382 : vector<10x128xf32>
    %cst_174 = arith.constant 1.000000e+00 : f32
    %384 = vector.broadcast %cst_174 : f32 to vector<10x128xf32>
    %385 = arith.addf %384, %383 : vector<10x128xf32>
    %386 = arith.mulf %375, %385 : vector<10x128xf32>
    %c1_175 = arith.constant 1 : index
    %c0_176 = arith.constant 0 : index
    %c0_177 = arith.constant 0 : index
    %387 = vector.load %arg19[%c1_175, %c0_176, %c0_177] : memref<2x128x32xf32, #tpu.memory_space<vmem>>, vector<1x128x32xf32>
    %388 = vector.shape_cast %387 : vector<1x128x32xf32> to vector<128x32xf32>
    %cst_178 = arith.constant dense<0.000000e+00> : vector<10x32xf32>
    %389 = tpu.matmul %386, %388, %cst_178 {dimension_numbers = #tpu.dot_dimension_numbers<[1], [0], [0], [1], [0, 0, 1, 1], [], []>} : vector<10x128xf32>, vector<128x32xf32>, vector<10x32xf32> -> vector<10x32xf32>
    %c1_179 = arith.constant 1 : index
    %c0_180 = arith.constant 0 : index
    %c0_181 = arith.constant 0 : index
    %390 = vector.load %arg20[%c1_179, %c0_180, %c0_181] : memref<2x1x32xf32, #tpu.memory_space<vmem>>, vector<1x1x32xf32>
    %391 = vector.shape_cast %390 : vector<1x1x32xf32> to vector<1x32xf32>
    %392 = vector.broadcast %391 : vector<1x32xf32> to vector<10x32xf32>
    %393 = arith.addf %389, %392 : vector<10x32xf32>
    %c1_182 = arith.constant 1 : index
    %c0_183 = arith.constant 0 : index
    %c0_184 = arith.constant 0 : index
    %394 = vector.load %arg21[%c1_182, %c0_183, %c0_184] : memref<2x1x32xf32, #tpu.memory_space<vmem>>, vector<1x1x32xf32>
    %395 = vector.shape_cast %394 : vector<1x1x32xf32> to vector<1x32xf32>
    %396 = vector.broadcast %395 : vector<1x32xf32> to vector<10x32xf32>
    %397 = arith.mulf %393, %396 : vector<10x32xf32>
    %398 = arith.addf %340, %397 : vector<10x32xf32>
    %c0_185 = arith.constant 0 : index
    %c0_186 = arith.constant 0 : index
    %399 = vector.load %arg22[%c0_185, %c0_186] : memref<1x32xf32, #tpu.memory_space<vmem>>, vector<1x32xf32>
    %c0_187 = arith.constant 0 : index
    %c0_188 = arith.constant 0 : index
    %400 = vector.load %arg23[%c0_187, %c0_188] : memref<1x32xf32, #tpu.memory_space<vmem>>, vector<1x32xf32>
    %cst_189 = arith.constant dense<0.000000e+00> : vector<10xf32>
    %401 = vector.multi_reduction <add>, %398, %cst_189 [1] : vector<10x32xf32> to vector<10xf32>
    %402 = vector.shape_cast %401 : vector<10xf32> to vector<10x1xf32>
    %cst_190 = arith.constant 3.200000e+01 : f32
    %403 = vector.broadcast %cst_190 : f32 to vector<10x1xf32>
    %404 = arith.divf %402, %403 : vector<10x1xf32>
    %405 = vector.broadcast %404 : vector<10x1xf32> to vector<10x32xf32>
    %406 = arith.subf %398, %405 : vector<10x32xf32>
    %407 = arith.mulf %406, %406 : vector<10x32xf32>
    %cst_191 = arith.constant dense<0.000000e+00> : vector<10xf32>
    %408 = vector.multi_reduction <add>, %407, %cst_191 [1] : vector<10x32xf32> to vector<10xf32>
    %409 = vector.shape_cast %408 : vector<10xf32> to vector<10x1xf32>
    %cst_192 = arith.constant 3.200000e+01 : f32
    %410 = vector.broadcast %cst_192 : f32 to vector<10x1xf32>
    %411 = arith.divf %409, %410 : vector<10x1xf32>
    %412 = vector.broadcast %404 : vector<10x1xf32> to vector<10x32xf32>
    %413 = arith.subf %398, %412 : vector<10x32xf32>
    %cst_193 = arith.constant 9.99999997E-7 : f32
    %414 = vector.broadcast %cst_193 : f32 to vector<10x1xf32>
    %415 = arith.addf %411, %414 : vector<10x1xf32>
    %416 = math.rsqrt %415 : vector<10x1xf32>
    %417 = vector.broadcast %416 : vector<10x1xf32> to vector<10x32xf32>
    %418 = arith.mulf %413, %417 : vector<10x32xf32>
    %419 = vector.broadcast %399 : vector<1x32xf32> to vector<10x32xf32>
    %420 = arith.mulf %418, %419 : vector<10x32xf32>
    %421 = vector.broadcast %400 : vector<1x32xf32> to vector<10x32xf32>
    %422 = arith.addf %420, %421 : vector<10x32xf32>
    %c0_194 = arith.constant 0 : index
    %c0_195 = arith.constant 0 : index
    %423 = vector.load %arg24[%c0_194, %c0_195] : memref<10x32xf32, #tpu.memory_space<vmem>>, vector<10x32xf32>
    tpu.vector_store %arg24[%c0_194, %c0_195], %422 {strides = array<i32>} : memref<10x32xf32, #tpu.memory_space<vmem>>, vector<10x32xf32>,
    return
  }
}

</mosaic_0001>

<llo_original>
// kernel: tile.9
$region0: #{tile.9}
  %s0 = inlined_call_operand.vmem [shape: f32[2,5,32], index: 0, kind: input, shape index: {}]
  %s1 = inlined_call_operand.vmem [shape: f32[10,32], index: 1, kind: output, shape index: {}]
  %v2 = vld [vmem:[%s0] sm:$0x1f]
  %vm3 = vcmask 261120
  %4 = vst.msk [vmem:[%s1] sm:$0x1f] %vm3, %v2
  %s5 = scalar_lea.vmem %s0, 8
  %v6 = vld [vmem:[%s5] sm:$0x1f]
  %vm7 = vcmask 261120
  %s8 = scalar_lea.vmem %s1, 5
  %9 = vst.msk [vmem:[%s8] sm:$0x1f] %vm7, %v6

// kernel: _forward_impl.1
$region0: #{_forward_impl.1}
  #allocation0 [shape = 'u32[]', space=smem, size = 0x4, offset = 0x4, fixed_abs, tag = 'smem constant byte address 0x4 - core index']
  #allocation1 [shape = 'u32[144,128]{1,0:T(1,128)}', space=vmem, size = 0x12000, scoped, tag = 'internal scratch']
  %s0 = inlined_call_operand.vmem [shape: f32[10,588], index: 0, kind: input, shape index: {}]
  %s1 = inlined_call_operand.vmem [shape: f32[10,588], index: 1, kind: input, shape index: {}]
  %s2 = inlined_call_operand.vmem [shape: f32[10,1], index: 2, kind: input, shape index: {}]
  %s3 = inlined_call_operand.vmem [shape: f32[588,32], index: 3, kind: input, shape index: {}]
  %s4 = inlined_call_operand.vmem [shape: f32[1,32], index: 4, kind: input, shape index: {}]
  %s5 = inlined_call_operand.vmem [shape: f32[1,32], index: 5, kind: input, shape index: {}]
  %s6 = inlined_call_operand.vmem [shape: f32[10,32], index: 6, kind: input, shape index: {}]
  %s7 = inlined_call_operand.vmem [shape: f32[10,10], index: 7, kind: input, shape index: {}]
  %s8 = inlined_call_operand.vmem [shape: f32[2,1,32], index: 8, kind: input, shape index: {}]
  %s9 = inlined_call_operand.vmem [shape: f32[2,1,32], index: 9, kind: input, shape index: {}]
  %s10 = inlined_call_operand.vmem [shape: f32[2,32,96], index: 10, kind: input, shape index: {}]
  %s11 = inlined_call_operand.vmem [shape: f32[2,1,96], index: 11, kind: input, shape index: {}]
  %s12 = inlined_call_operand.vmem [shape: f32[2,32,32], index: 12, kind: input, shape index: {}]
  %s13 = inlined_call_operand.vmem [shape: f32[2,1,32], index: 13, kind: input, shape index: {}]
  %s14 = inlined_call_operand.vmem [shape: f32[2,1,32], index: 14, kind: input, shape index: {}]
  %s15 = inlined_call_operand.vmem [shape: f32[2,1,32], index: 15, kind: input, shape index: {}]
  %s16 = inlined_call_operand.vmem [shape: f32[2,1,32], index: 16, kind: input, shape index: {}]
  %s17 = inlined_call_operand.vmem [shape: f32[2,32,128], index: 17, kind: input, shape index: {}]
  %s18 = inlined_call_operand.vmem [shape: f32[2,1,128], index: 18, kind: input, shape index: {}]
  %s19 = inlined_call_operand.vmem [shape: f32[2,128,32], index: 19, kind: input, shape index: {}]
  %s20 = inlined_call_operand.vmem [shape: f32[2,1,32], index: 20, kind: input, shape index: {}]
  %s21 = inlined_call_operand.vmem [shape: f32[2,1,32], index: 21, kind: input, shape index: {}]
  %s22 = inlined_call_operand.vmem [shape: f32[1,32], index: 22, kind: input, shape index: {}]
  %s23 = inlined_call_operand.vmem [shape: f32[1,32], index: 23, kind: input, shape index: {}]
  %s24 = inlined_call_operand.vmem [shape: f32[10,32], index: 24, kind: output, shape index: {}]
  %s25 = sld [smem:[#allocation0]]
  $region106: #{_forward_impl.1} parent=0
    _
  %s27 = ssub.s32 1, %s25
  %s28 = scalar_select 0, %s27, %s25
  // Predicated region
  $region2: #{_forward_impl.1} parent=0 // pred_check
    _
  $region3: #{_forward_impl.1} parent=0 // pred_check_branch
    %30 = sbr.rel (0) target = $region5
  $region4: #{_forward_impl.1} parent=0 // pred_region
    _
  $region5: #{_forward_impl.1} parent=0 // pred_fallthru
    _
  // Predicated region
  $region6: #{_forward_impl.1} parent=0 // pred_check
    _
  $region7: #{_forward_impl.1} parent=0 // pred_check_branch
    %32 = sbr.rel (0) target = $region9
  $region8: #{_forward_impl.1} parent=0 // pred_region
    _
  $region9: #{_forward_impl.1} parent=0 // pred_fallthru
    _
  // Predicated region
  $region10: #{_forward_impl.1} parent=0 // pred_check
    _
  $region11: #{_forward_impl.1} parent=0 // pred_check_branch
    %34 = sbr.rel (0) target = $region13
  $region12: #{_forward_impl.1} parent=0 // pred_region
    _
  $region13: #{_forward_impl.1} parent=0 // pred_fallthru
    _
  // Predicated region
  $region14: #{_forward_impl.1} parent=0 // pred_check
    _
  $region15: #{_forward_impl.1} parent=0 // pred_check_branch
    %36 = sbr.rel (0) target = $region17
  $region16: #{_forward_impl.1} parent=0 // pred_region
    _
  $region17: #{_forward_impl.1} parent=0 // pred_fallthru
    _
  // Predicated region
  $region18: #{_forward_impl.1} parent=0 // pred_check
    _
  $region19: #{_forward_impl.1} parent=0 // pred_check_branch
    %38 = sbr.rel (0) target = $region21
  $region20: #{_forward_impl.1} parent=0 // pred_region
    _
  $region21: #{_forward_impl.1} parent=0 // pred_fallthru
    _
  // Predicated region
  $region22: #{_forward_impl.1} parent=0 // pred_check
    _
  $region23: #{_forward_impl.1} parent=0 // pred_check_branch
    %40 = sbr.rel (0) target = $region25
  $region24: #{_forward_impl.1} parent=0 // pred_region
    _
  $region25: #{_forward_impl.1} parent=0 // pred_fallthru
    _
  // Predicated region
  $region26: #{_forward_impl.1} parent=0 // pred_check
    _
  $region27: #{_forward_impl.1} parent=0 // pred_check_branch
    %42 = sbr.rel (0) target = $region29
  $region28: #{_forward_impl.1} parent=0 // pred_region
    _
  $region29: #{_forward_impl.1} parent=0 // pred_fallthru
    _
  // Predicated region
  $region30: #{_forward_impl.1} parent=0 // pred_check
    _
  $region31: #{_forward_impl.1} parent=0 // pred_check_branch
    %44 = sbr.rel (0) target = $region33
  $region32: #{_forward_impl.1} parent=0 // pred_region
    _
  $region33: #{_forward_impl.1} parent=0 // pred_fallthru
    _
  // Predicated region
  $region34: #{_forward_impl.1} parent=0 // pred_check
    _
  $region35: #{_forward_impl.1} parent=0 // pred_check_branch
    %46 = sbr.rel (0) target = $region37
  $region36: #{_forward_impl.1} parent=0 // pred_region
    _
  $region37: #{_forward_impl.1} parent=0 // pred_fallthru
    _
  // Predicated region
  $region38: #{_forward_impl.1} parent=0 // pred_check
    _
  $region39: #{_forward_impl.1} parent=0 // pred_check_branch
    %48 = sbr.rel (0) target = $region41
  $region40: #{_forward_impl.1} parent=0 // pred_region
    _
  $region41: #{_forward_impl.1} parent=0 // pred_fallthru
    _
  // Predicated region
  $region42: #{_forward_impl.1} parent=0 // pred_check
    _
  $region43: #{_forward_impl.1} parent=0 // pred_check_branch
    %50 = sbr.rel (0) target = $region45
  $region44: #{_forward_impl.1} parent=0 // pred_region
    _
  $region45: #{_forward_impl.1} parent=0 // pred_fallthru
    _
  // Predicated region
  $region46: #{_forward_impl.1} parent=0 // pred_check
    _
  $region47: #{_forward_impl.1} parent=0 // pred_check_branch
    %52 = sbr.rel (0) target = $region49
  $region48: #{_forward_impl.1} parent=0 // pred_region
    _
  $region49: #{_forward_impl.1} parent=0 // pred_fallthru
    _
  // Predicated region
  $region50: #{_forward_impl.1} parent=0 // pred_check
    _
  $region51: #{_forward_impl.1} parent=0 // pred_check_branch
    %54 = sbr.rel (0) target = $region53
  $region52: #{_forward_impl.1} parent=0 // pred_region
    _
  $region53: #{_forward_impl.1} parent=0 // pred_fallthru
    _
  // Predicated region
  $region54: #{_forward_impl.1} parent=0 // pred_check
    _
  $region55: #{_forward_impl.1} parent=0 // pred_check_branch
    %56 = sbr.rel (0) target = $region57
  $region56: #{_forward_impl.1} parent=0 // pred_region
    _
  $region57: #{_forward_impl.1} parent=0 // pred_fallthru
    _
  // Predicated region
  $region58: #{_forward_impl.1} parent=0 // pred_check
    _
  $region59: #{_forward_impl.1} parent=0 // pred_check_branch
    %58 = sbr.rel (0) target = $region61
  $region60: #{_forward_impl.1} parent=0 // pred_region
    _
  $region61: #{_forward_impl.1} parent=0 // pred_fallthru
    _
  // Predicated region
  $region62: #{_forward_impl.1} parent=0 // pred_check
    _
  $region63: #{_forward_impl.1} parent=0 // pred_check_branch
    %60 = sbr.rel (0) target = $region65
  $region64: #{_forward_impl.1} parent=0 // pred_region
    _
  $region65: #{_forward_impl.1} parent=0 // pred_fallthru
    _
  // Predicated region
  $region66: #{_forward_impl.1} parent=0 // pred_check
    _
  $region67: #{_forward_impl.1} parent=0 // pred_check_branch
    %62 = sbr.rel (0) target = $region69
  $region68: #{_forward_impl.1} parent=0 // pred_region
    _
  $region69: #{_forward_impl.1} parent=0 // pred_fallthru
    _
  // Predicated region
  $region70: #{_forward_impl.1} parent=0 // pred_check
    _
  $region71: #{_forward_impl.1} parent=0 // pred_check_branch
    %64 = sbr.rel (0) target = $region73
  $region72: #{_forward_impl.1} parent=0 // pred_region
    _
  $region73: #{_forward_impl.1} parent=0 // pred_fallthru
    _
  // Predicated region
  $region74: #{_forward_impl.1} parent=0 // pred_check
    _
  $region75: #{_forward_impl.1} parent=0 // pred_check_branch
    %66 = sbr.rel (0) target = $region77
  $region76: #{_forward_impl.1} parent=0 // pred_region
    _
  $region77: #{_forward_impl.1} parent=0 // pred_fallthru
    _
  // Predicated region
  $region78: #{_forward_impl.1} parent=0 // pred_check
    _
  $region79: #{_forward_impl.1} parent=0 // pred_check_branch
    %68 = sbr.rel (0) target = $region81
  $region80: #{_forward_impl.1} parent=0 // pred_region
    _
  $region81: #{_forward_impl.1} parent=0 // pred_fallthru
    _
  // Predicated region
  $region82: #{_forward_impl.1} parent=0 // pred_check
    _
  $region83: #{_forward_impl.1} parent=0 // pred_check_branch
    %70 = sbr.rel (0) target = $region85
  $region84: #{_forward_impl.1} parent=0 // pred_region
    _
  $region85: #{_forward_impl.1} parent=0 // pred_fallthru
    _
  // Predicated region
  $region86: #{_forward_impl.1} parent=0 // pred_check
    _
  $region87: #{_forward_impl.1} parent=0 // pred_check_branch
    %72 = sbr.rel (0) target = $region89
  $region88: #{_forward_impl.1} parent=0 // pred_region
    _
  $region89: #{_forward_impl.1} parent=0 // pred_fallthru
    _
  // Predicated region
  $region90: #{_forward_impl.1} parent=0 // pred_check
    _
  $region91: #{_forward_impl.1} parent=0 // pred_check_branch
    %74 = sbr.rel (0) target = $region93
  $region92: #{_forward_impl.1} parent=0 // pred_region
    _
  $region93: #{_forward_impl.1} parent=0 // pred_fallthru
    _
  // Predicated region
  $region94: #{_forward_impl.1} parent=0 // pred_check
    _
  $region95: #{_forward_impl.1} parent=0 // pred_check_branch
    %76 = sbr.rel (0) target = $region97
  $region96: #{_forward_impl.1} parent=0 // pred_region
    _
  $region97: #{_forward_impl.1} parent=0 // pred_fallthru
    _
  %v77 = vld [vmem:[%s0] sm:$0xff]
  %v78 = vld [vmem:[%s0 + $0x8] sm:$0xff]
  %v79 = vld [vmem:[%s0 + $0x10] sm:$0xff]
  %v80 = vld [vmem:[%s0 + $0x18] sm:$0xff]
  %v81 = vld [vmem:[%s0 + $0x20] sm:$0xff]
  %v82 = vld [vmem:[%s0 + $0x28] sm:$0x3]
  %v83 = vld [vmem:[%s0 + $0x30] sm:$0x3]
  %v84 = vld [vmem:[%s0 + $0x38] sm:$0x3]
  %v85 = vld [vmem:[%s0 + $0x40] sm:$0x3]
  %v86 = vld [vmem:[%s0 + $0x48] sm:$0x3]
  %v87 = vadd.f32 %v77, 1.0
  %v88 = vadd.f32 %v78, 1.0
  %v89 = vadd.f32 %v79, 1.0
  %v90 = vadd.f32 %v80, 1.0
  %v91 = vadd.f32 %v81, 1.0
  %v92 = vadd.f32 %v82, 1.0
  %v93 = vadd.f32 %v83, 1.0
  %v94 = vadd.f32 %v84, 1.0
  %v95 = vadd.f32 %v85, 1.0
  %v96 = vadd.f32 %v86, 1.0
  %v97 = vmul.f32 %v87, 0.5
  %v98 = vmul.f32 %v88, 0.5
  %v99 = vmul.f32 %v89, 0.5
  %v100 = vmul.f32 %v90, 0.5
  %v101 = vmul.f32 %v91, 0.5
  %v102 = vmul.f32 %v92, 0.5
  %v103 = vmul.f32 %v93, 0.5
  %v104 = vmul.f32 %v94, 0.5
  %v105 = vmul.f32 %v95, 0.5
  %v106 = vmul.f32 %v96, 0.5
  %v107 = vld [vmem:[%s1] sm:$0xff]
  %v108 = vld [vmem:[%s1 + $0x8] sm:$0xff]
  %v109 = vld [vmem:[%s1 + $0x10] sm:$0xff]
  %v110 = vld [vmem:[%s1 + $0x18] sm:$0xff]
  %v111 = vld [vmem:[%s1 + $0x20] sm:$0xff]
  %v112 = vld [vmem:[%s1 + $0x28] sm:$0x3]
  %v113 = vld [vmem:[%s1 + $0x30] sm:$0x3]
  %v114 = vld [vmem:[%s1 + $0x38] sm:$0x3]
  %v115 = vld [vmem:[%s1 + $0x40] sm:$0x3]
  %v116 = vld [vmem:[%s1 + $0x48] sm:$0x3]
  %v117 = vmul.f32 %v97, %v107
  %v118 = vmul.f32 %v98, %v108
  %v119 = vmul.f32 %v99, %v109
  %v120 = vmul.f32 %v100, %v110
  %v121 = vmul.f32 %v101, %v111
  %v122 = vmul.f32 %v102, %v112
  %v123 = vmul.f32 %v103, %v113
  %v124 = vmul.f32 %v104, %v114
  %v125 = vmul.f32 %v105, %v115
  %v126 = vmul.f32 %v106, %v116
  %v127 = vld [vmem:[%s3] sm:$0xff]
  %v128 = vld [vmem:[%s3 + $0x8] sm:$0xff]
  %v129 = vld [vmem:[%s3 + $0x10] sm:$0xff]
  %v130 = vld [vmem:[%s3 + $0x18] sm:$0xff]
  %v131 = vld [vmem:[%s3 + $0x20] sm:$0xff]
  %v132 = vld [vmem:[%s3 + $0x28] sm:$0xff]
  %v133 = vld [vmem:[%s3 + $0x30] sm:$0xff]
  %v134 = vld [vmem:[%s3 + $0x38] sm:$0xff]
  %v135 = vld [vmem:[%s3 + $0x40] sm:$0xff]
  %v136 = vld [vmem:[%s3 + $0x48] sm:$0xff]
  %v137 = vld [vmem:[%s3 + $0x50] sm:$0xff]
  %v138 = vld [vmem:[%s3 + $0x58] sm:$0xff]
  %v139 = vld [vmem:[%s3 + $0x60] sm:$0xff]
  %v140 = vld [vmem:[%s3 + $0x68] sm:$0xff]
  %v141 = vld [vmem:[%s3 + $0x70] sm:$0xff]
  %v142 = vld [vmem:[%s3 + $0x78] sm:$0xff]
  %v143 = vld [vmem:[%s3 + $0x80] sm:$0xff]
  %v144 = vld [vmem:[%s3 + $0x88] sm:$0xff]
  %v145 = vld [vmem:[%s3 + $0x90] sm:$0xff]
  %v146 = vld [vmem:[%s3 + $0x98] sm:$0xff]
  %v147 = vld [vmem:[%s3 + $0xa0] sm:$0xff]
  %v148 = vld [vmem:[%s3 + $0xa8] sm:$0xff]
  %v149 = vld [vmem:[%s3 + $0xb0] sm:$0xff]
  %v150 = vld [vmem:[%s3 + $0xb8] sm:$0xff]
  %v151 = vld [vmem:[%s3 + $0xc0] sm:$0xff]
  %v152 = vld [vmem:[%s3 + $0xc8] sm:$0xff]
  %v153 = vld [vmem:[%s3 + $0xd0] sm:$0xff]
  %v154 = vld [vmem:[%s3 + $0xd8] sm:$0xff]
  %v155 = vld [vmem:[%s3 + $0xe0] sm:$0xff]
  %v156 = vld [vmem:[%s3 + $0xe8] sm:$0xff]
  %v157 = vld [vmem:[%s3 + $0xf0] sm:$0xff]
  %v158 = vld [vmem:[%s3 + $0xf8] sm:$0xff]
  %v159 = vld [vmem:[%s3 + $0x100] sm:$0xff]
  %v160 = vld [vmem:[%s3 + $0x108] sm:$0xff]
  %v161 = vld [vmem:[%s3 + $0x110] sm:$0xff]
  %v162 = vld [vmem:[%s3 + $0x118] sm:$0xff]
  %v163 = vld [vmem:[%s3 + $0x120] sm:$0xff]
  %v164 = vld [vmem:[%s3 + $0x128] sm:$0xff]
  %v165 = vld [vmem:[%s3 + $0x130] sm:$0xff]
  %v166 = vld [vmem:[%s3 + $0x138] sm:$0xff]
  %v167 = vld [vmem:[%s3 + $0x140] sm:$0xff]
  %v168 = vld [vmem:[%s3 + $0x148] sm:$0xff]
  %v169 = vld [vmem:[%s3 + $0x150] sm:$0xff]
  %v170 = vld [vmem:[%s3 + $0x158] sm:$0xff]
  %v171 = vld [vmem:[%s3 + $0x160] sm:$0xff]
  %v172 = vld [vmem:[%s3 + $0x168] sm:$0xff]
  %v173 = vld [vmem:[%s3 + $0x170] sm:$0xff]
  %v174 = vld [vmem:[%s3 + $0x178] sm:$0xff]
  %v175 = vld [vmem:[%s3 + $0x180] sm:$0xff]
  %v176 = vld [vmem:[%s3 + $0x188] sm:$0xff]
  %v177 = vld [vmem:[%s3 + $0x190] sm:$0xff]
  %v178 = vld [vmem:[%s3 + $0x198] sm:$0xff]
  %v179 = vld [vmem:[%s3 + $0x1a0] sm:$0xff]
  %v180 = vld [vmem:[%s3 + $0x1a8] sm:$0xff]
  %v181 = vld [vmem:[%s3 + $0x1b0] sm:$0xff]
  %v182 = vld [vmem:[%s3 + $0x1b8] sm:$0xff]
  %v183 = vld [vmem:[%s3 + $0x1c0] sm:$0xff]
  %v184 = vld [vmem:[%s3 + $0x1c8] sm:$0xff]
  %v185 = vld [vmem:[%s3 + $0x1d0] sm:$0xff]
  %v186 = vld [vmem:[%s3 + $0x1d8] sm:$0xff]
  %v187 = vld [vmem:[%s3 + $0x1e0] sm:$0xff]
  %v188 = vld [vmem:[%s3 + $0x1e8] sm:$0xff]
  %v189 = vld [vmem:[%s3 + $0x1f0] sm:$0xff]
  %v190 = vld [vmem:[%s3 + $0x1f8] sm:$0xff]
  %v191 = vld [vmem:[%s3 + $0x200] sm:$0xff]
  %v192 = vld [vmem:[%s3 + $0x208] sm:$0xff]
  %v193 = vld [vmem:[%s3 + $0x210] sm:$0xff]
  %v194 = vld [vmem:[%s3 + $0x218] sm:$0xff]
  %v195 = vld [vmem:[%s3 + $0x220] sm:$0xff]
  %v196 = vld [vmem:[%s3 + $0x228] sm:$0xff]
  %v197 = vld [vmem:[%s3 + $0x230] sm:$0xff]
  %v198 = vld [vmem:[%s3 + $0x238] sm:$0xff]
  %v199 = vld [vmem:[%s3 + $0x240] sm:$0xff]
  %v200 = vld [vmem:[%s3 + $0x248] sm:$0xf]
  %v201 = vld [vmem:[%s4] sm:$0x1]
  %v203 = vlaneseq
  %v204 = vshrl.u32 %v203, 7
  %v205 = vsub.s32 0, %v204
  %v206 = vrot.slane %v201, %v205
  %vm208 = vcmask 621568
  %v210 = vsel %vm208, %v121, 0
  %v213 = vsel %vm208, %v126, 0
  %vm215 = vcmask 1043456
  %v217 = vsel %vm215, %v200, 0
  %219 = vmatprep.subr.mxu0 0.0
  %220 = vmatpush1.msra.mxu0 %v127
  %221 = vmatprep.subr.mxu0 0.0
  %222 = vmatpush1.msra.mxu0 %v128
  %223 = vmatprep.subr.mxu0 0.0
  %224 = vmatpush1.msra.mxu0 %v129
  %225 = vmatprep.subr.mxu0 0.0
  %226 = vmatpush1.msra.mxu0 %v130
  %227 = vmatprep.subr.mxu0 0.0
  %228 = vmatpush1.msra.mxu0 %v131
  %229 = vmatprep.subr.mxu0 0.0
  %230 = vmatpush1.msra.mxu0 %v132
  %231 = vmatprep.subr.mxu0 0.0
  %232 = vmatpush1.msra.mxu0 %v133
  %233 = vmatprep.subr.mxu0 0.0
  %234 = vmatpush1.msra.mxu0 %v134
  %235 = vmatprep.subr.mxu0 0.0
  %236 = vmatpush1.msra.mxu0 %v135
  %237 = vmatprep.subr.mxu0 0.0
  %238 = vmatpush1.msra.mxu0 %v136
  %239 = vmatprep.subr.mxu0 0.0
  %240 = vmatpush1.msra.mxu0 %v137
  %241 = vmatprep.subr.mxu0 0.0
  %242 = vmatpush1.msra.mxu0 %v138
  %243 = vmatprep.subr.mxu0 0.0
  %244 = vmatpush1.msra.mxu0 %v139
  %245 = vmatprep.subr.mxu0 0.0
  %246 = vmatpush1.msra.mxu0 %v140
  %247 = vmatprep.subr.mxu0 0.0
  %248 = vmatpush1.msra.mxu0 %v141
  %249 = vmatprep.subr.mxu0 0.0
  %250 = vmatpush1.msra.mxu0 %v142
  %251 = vmatprep.subr.mxu0 0.0
  %252 = vmatpush1.msra.mxu0 %v143
  %253 = vmatprep.subr.mxu0 0.0
  %254 = vmatpush1.msra.mxu0 %v144
  %255 = vmatprep.subr.mxu0 0.0
  %256 = vmatpush1.msra.mxu0 %v145
  %257 = vmatprep.subr.mxu0 0.0
  %258 = vmatpush1.msra.mxu0 %v146
  %259 = vmatprep.subr.mxu0 0.0
  %260 = vmatpush1.msra.mxu0 %v147
  %261 = vmatprep.subr.mxu0 0.0
  %262 = vmatpush1.msra.mxu0 %v148
  %263 = vmatprep.subr.mxu0 0.0
  %264 = vmatpush1.msra.mxu0 %v149
  %265 = vmatprep.subr.mxu0 0.0
  %266 = vmatpush1.msra.mxu0 %v150
  %267 = vmatprep.subr.mxu0 0.0
  %268 = vmatpush1.msra.mxu0 %v151
  %269 = vmatprep.subr.mxu0 0.0
  %270 = vmatpush1.msra.mxu0 %v152
  %271 = vmatprep.subr.mxu0 0.0
  %272 = vmatpush1.msra.mxu0 %v153
  %273 = vmatprep.subr.mxu0 0.0
  %274 = vmatpush1.msra.mxu0 %v154
  %275 = vmatprep.subr.mxu0 0.0
  %276 = vmatpush1.msra.mxu0 %v155
  %277 = vmatprep.subr.mxu0 0.0
  %278 = vmatpush1.msra.mxu0 %v156
  %279 = vmatprep.subr.mxu0 0.0
  %280 = vmatpush1.msra.mxu0 %v157
  %281 = vmatprep.subr.mxu0 0.0
  %282 = vmatpush1.msra.mxu0 %v158
  %283 = vmatprep.mubr.f32.mxu0 %v118
  %284 = vmatmul.mubr.f32.gmra.mrb[0].mxu0 %v117
  %v285 = vpop.f32.mrb[0].mxu0
  %v286 = vadd.f32 %v206, %v285
  %v287 = vpop.f32.mrb[0].mxu0
  %288 = vmatprep.mubr.f32.mxu0 %v123
  %289 = vmatmul.mubr.f32.gmra.mrb[0].mxu0 %v122
  %v290 = vpop.f32.mrb[0].mxu0
  %v291 = vadd.f32 %v206, %v290
  %v292 = vpop.f32.mrb[0].mxu0
  %293 = vdwg.mxu0
  %294 = vmatprep.subr.mxu0 0.0
  %295 = vmatpush1.msra.mxu0 %v159
  %296 = vmatprep.subr.mxu0 0.0
  %297 = vmatpush1.msra.mxu0 %v160
  %298 = vmatprep.subr.mxu0 0.0
  %299 = vmatpush1.msra.mxu0 %v161
  %300 = vmatprep.subr.mxu0 0.0
  %301 = vmatpush1.msra.mxu0 %v162
  %302 = vmatprep.subr.mxu0 0.0
  %303 = vmatpush1.msra.mxu0 %v163
  %304 = vmatprep.subr.mxu0 0.0
  %305 = vmatpush1.msra.mxu0 %v164
  %306 = vmatprep.subr.mxu0 0.0
  %307 = vmatpush1.msra.mxu0 %v165
  %308 = vmatprep.subr.mxu0 0.0
  %309 = vmatpush1.msra.mxu0 %v166
  %310 = vmatprep.subr.mxu0 0.0
  %311 = vmatpush1.msra.mxu0 %v167
  %312 = vmatprep.subr.mxu0 0.0
  %313 = vmatpush1.msra.mxu0 %v168
  %314 = vmatprep.subr.mxu0 0.0
  %315 = vmatpush1.msra.mxu0 %v169
  %316 = vmatprep.subr.mxu0 0.0
  %317 = vmatpush1.msra.mxu0 %v170
  %318 = vmatprep.subr.mxu0 0.0
  %319 = vmatpush1.msra.mxu0 %v171
  %320 = vmatprep.subr.mxu0 0.0
  %321 = vmatpush1.msra.mxu0 %v172
  %322 = vmatprep.subr.mxu0 0.0
  %323 = vmatpush1.msra.mxu0 %v173
  %324 = vmatprep.subr.mxu0 0.0
  %325 = vmatpush1.msra.mxu0 %v174
  %326 = vmatprep.subr.mxu0 0.0
  %327 = vmatpush1.msra.mxu0 %v175
  %328 = vmatprep.subr.mxu0 0.0
  %329 = vmatpush1.msra.mxu0 %v176
  %330 = vmatprep.subr.mxu0 0.0
  %331 = vmatpush1.msra.mxu0 %v177
  %332 = vmatprep.subr.mxu0 0.0
  %333 = vmatpush1.msra.mxu0 %v178
  %334 = vmatprep.subr.mxu0 0.0
  %335 = vmatpush1.msra.mxu0 %v179
  %336 = vmatprep.subr.mxu0 0.0
  %337 = vmatpush1.msra.mxu0 %v180
  %338 = vmatprep.subr.mxu0 0.0
  %339 = vmatpush1.msra.mxu0 %v181
  %340 = vmatprep.subr.mxu0 0.0
  %341 = vmatpush1.msra.mxu0 %v182
  %342 = vmatprep.subr.mxu0 0.0
  %343 = vmatpush1.msra.mxu0 %v183
  %344 = vmatprep.subr.mxu0 0.0
  %345 = vmatpush1.msra.mxu0 %v184
  %346 = vmatprep.subr.mxu0 0.0
  %347 = vmatpush1.msra.mxu0 %v185
  %348 = vmatprep.subr.mxu0 0.0
  %349 = vmatpush1.msra.mxu0 %v186
  %350 = vmatprep.subr.mxu0 0.0
  %351 = vmatpush1.msra.mxu0 %v187
  %352 = vmatprep.subr.mxu0 0.0
  %353 = vmatpush1.msra.mxu0 %v188
  %354 = vmatprep.subr.mxu0 0.0
  %355 = vmatpush1.msra.mxu0 %v189
  %356 = vmatprep.subr.mxu0 0.0
  %357 = vmatpush1.msra.mxu0 %v190
  %358 = vmatprep.mubr.f32.mxu0 %v120
  %359 = vmatmul.mubr.f32.gmra.mrb[0].mxu0 %v119
  %v360 = vpop.f32.mrb[0].mxu0
  %v361 = vadd.f32 %v286, %v360
  %v362 = vpop.f32.mrb[0].mxu0
  %363 = vmatprep.mubr.f32.mxu0 %v125
  %364 = vmatmul.mubr.f32.gmra.mrb[0].mxu0 %v124
  %v365 = vpop.f32.mrb[0].mxu0
  %v366 = vadd.f32 %v291, %v365
  %v367 = vpop.f32.mrb[0].mxu0
  %368 = vdwg.mxu0
  %369 = vmatprep.subr.mxu0 0.0
  %370 = vmatpush1.msra.mxu0 %v191
  %371 = vmatprep.subr.mxu0 0.0
  %372 = vmatpush1.msra.mxu0 %v192
  %373 = vmatprep.subr.mxu0 0.0
  %374 = vmatpush1.msra.mxu0 %v193
  %375 = vmatprep.subr.mxu0 0.0
  %376 = vmatpush1.msra.mxu0 %v194
  %377 = vmatprep.subr.mxu0 0.0
  %378 = vmatpush1.msra.mxu0 %v195
  %379 = vmatprep.subr.mxu0 0.0
  %380 = vmatpush1.msra.mxu0 %v196
  %381 = vmatprep.subr.mxu0 0.0
  %382 = vmatpush1.msra.mxu0 %v197
  %383 = vmatprep.subr.mxu0 0.0
  %384 = vmatpush1.msra.mxu0 %v198
  %385 = vmatprep.subr.mxu0 0.0
  %386 = vmatpush1.msra.mxu0 %v199
  %387 = vmatprep.subr.mxu0 0.0
  %388 = vmatpush1.msra.mxu0 %v217
  %389 = vmatprep.subr.mxu0 0.0
  %390 = vmatpush1.msra.mxu0 0.0
  %391 = vmatprep.subr.mxu0 0.0
  %392 = vmatpush1.msra.mxu0 0.0
  %393 = vmatprep.subr.mxu0 0.0
  %394 = vmatpush1.msra.mxu0 0.0
  %395 = vmatprep.subr.mxu0 0.0
  %396 = vmatpush1.msra.mxu0 0.0
  %397 = vmatprep.subr.mxu0 0.0
  %398 = vmatpush1.msra.mxu0 0.0
  %399 = vmatprep.subr.mxu0 0.0
  %400 = vmatpush1.msra.mxu0 0.0
  %401 = vmatprep.subr.mxu0 0.0
  %402 = vmatpush1.msra.mxu0 0.0
  %403 = vmatprep.subr.mxu0 0.0
  %404 = vmatpush1.msra.mxu0 0.0
  %405 = vmatprep.subr.mxu0 0.0
  %406 = vmatpush1.msra.mxu0 0.0
  %407 = vmatprep.subr.mxu0 0.0
  %408 = vmatpush1.msra.mxu0 0.0
  %409 = vmatprep.subr.mxu0 0.0
  %410 = vmatpush1.msra.mxu0 0.0
  %411 = vmatprep.subr.mxu0 0.0
  %412 = vmatpush1.msra.mxu0 0.0
  %413 = vmatprep.subr.mxu0 0.0
  %414 = vmatpush1.msra.mxu0 0.0
  %415 = vmatprep.subr.mxu0 0.0
  %416 = vmatpush1.msra.mxu0 0.0
  %417 = vmatprep.subr.mxu0 0.0
  %418 = vmatpush1.msra.mxu0 0.0
  %419 = vmatprep.subr.mxu0 0.0
  %420 = vmatpush1.msra.mxu0 0.0
  %421 = vmatprep.subr.mxu0 0.0
  %422 = vmatpush1.msra.mxu0 0.0
  %423 = vmatprep.subr.mxu0 0.0
  %424 = vmatpush1.msra.mxu0 0.0
  %425 = vmatprep.subr.mxu0 0.0
  %426 = vmatpush1.msra.mxu0 0.0
  %427 = vmatprep.subr.mxu0 0.0
  %428 = vmatpush1.msra.mxu0 0.0
  %429 = vmatprep.subr.mxu0 0.0
  %430 = vmatpush1.msra.mxu0 0.0
  %431 = vmatprep.subr.mxu0 0.0
  %432 = vmatpush1.msra.mxu0 0.0
  %433 = vmatprep.mubr.f32.mxu0 0.0
  %434 = vmatmul.mubr.f32.gmra.mrb[0].mxu0 %v210
  %v435 = vpop.f32.mrb[0].mxu0
  %v436 = vadd.f32 %v361, %v435
  %v437 = vpop.f32.mrb[0].mxu0
  %438 = vmatprep.mubr.f32.mxu0 0.0
  %439 = vmatmul.mubr.f32.gmra.mrb[0].mxu0 %v213
  %v440 = vpop.f32.mrb[0].mxu0
  %v441 = vadd.f32 %v366, %v440
  %v442 = vpop.f32.mrb[0].mxu0
  %443 = vdwg.mxu0
  %v444 = vld [vmem:[%s2] sm:$0xff]
  %v445 = vld [vmem:[%s2 + $0x8] sm:$0x3]
  %v446 = vsub.f32 1.0, %v444
  %v447 = vsub.f32 1.0, %v445
  %449 = vset.pattern.permute.xlu0 0
  %450 = vperm.xlu0 %449, %v446
  %v451 = vpop.permute.xlu0 %450
  %454 = vset.pattern.permute.xlu0 0
  %455 = vperm.xlu0 %454, %v447
  %v456 = vpop.permute.xlu0 %455
  %v458 = vmul.f32 %v436, %v451
  %v459 = vmul.f32 %v441, %v456
  %v460 = vld [vmem:[%s5] sm:$0x1]
  %v462 = vlaneseq
  %v463 = vshrl.u32 %v462, 7
  %v464 = vsub.s32 0, %v463
  %v465 = vrot.slane %v460, %v464
  %468 = vset.pattern.permute.xlu0 0
  %469 = vperm.xlu0 %468, %v444
  %v470 = vpop.permute.xlu0 %469
  %473 = vset.pattern.permute.xlu0 0
  %474 = vperm.xlu0 %473, %v445
  %v475 = vpop.permute.xlu0 %474
  %v477 = vmul.f32 %v465, %v470
  %v478 = vmul.f32 %v465, %v475
  %v479 = vadd.f32 %v458, %v477
  %v480 = vadd.f32 %v459, %v478
  %v481 = vld [vmem:[%s6] sm:$0xff]
  %v482 = vld [vmem:[%s6 + $0x8] sm:$0x3]
  %v483 = vadd.f32 %v479, %v481
  %v484 = vadd.f32 %v480, %v482
  %v485 = vld [vmem:[%s7] sm:$0xff]
  %v486 = vld [vmem:[%s7 + $0x8] sm:$0x3]
  %v487 = vld [vmem:[%s8] sm:$0x1]
  %v488 = vld [vmem:[%s9] sm:$0x1]
  %vm489 = vcmask 261120
  %v490 = vsel %vm489, %v483, 0.0
  %491 = vadd.xlane.f32.xlu0 %v490
  %v492 = vpop.xlane.xlu0 %491
  %vm493 = vcmask 254976
  %v494 = vsel %vm493, %v484, 0.0
  %495 = vadd.xlane.f32.xlu0 %v494
  %v496 = vpop.xlane.xlu0 %495
  %v497 = vrcp.pop 32.0
  %v498 = vmul.f32 %v492, %v497
  %v499 = vmul.f32 %v496, %v497
  %v500 = vsub.f32 %v483, %v498
  %v501 = vsub.f32 %v484, %v499
  %v502 = vmul.f32 %v500, %v500
  %v503 = vmul.f32 %v501, %v501
  %v504 = vsel %vm489, %v502, 0.0
  %505 = vadd.xlane.f32.xlu0 %v504
  %v506 = vpop.xlane.xlu0 %505
  %v507 = vsel %vm493, %v503, 0.0
  %508 = vadd.xlane.f32.xlu0 %v507
  %v509 = vpop.xlane.xlu0 %508
  %v510 = vmul.f32 %v506, %v497
  %v511 = vmul.f32 %v509, %v497
  %v512 = vadd.f32 %v510, 1e-06
  %v513 = vadd.f32 %v511, 1e-06
  %v514 = vrsqrt.pop %v512
  %v515 = vrsqrt.pop %v513
  %v516 = vmul.f32 %v500, %v514
  %v517 = vmul.f32 %v501, %v515
  %v519 = vlaneseq
  %v520 = vshrl.u32 %v519, 7
  %v521 = vsub.s32 0, %v520
  %v522 = vrot.slane %v487, %v521
  %v524 = vmul.f32 %v516, %v522
  %v525 = vmul.f32 %v517, %v522
  %v527 = vlaneseq
  %v528 = vshrl.u32 %v527, 7
  %v529 = vsub.s32 0, %v528
  %v530 = vrot.slane %v488, %v529
  %v532 = vadd.f32 %v524, %v530
  %v533 = vadd.f32 %v525, %v530
  %v534 = vld [vmem:[%s10] sm:$0xff]
  %v535 = vld [vmem:[%s10 + $0x8] sm:$0xff]
  %v536 = vld [vmem:[%s10 + $0x10] sm:$0xff]
  %v537 = vld [vmem:[%s10 + $0x18] sm:$0xff]
  %v538 = vld [vmem:[%s11] sm:$0x1]
  %v540 = vlaneseq
  %v541 = vshrl.u32 %v540, 7
  %v542 = vsub.s32 0, %v541
  %v543 = vrot.slane %v538, %v542
  %v546 = vsel %vm489, %v532, 0
  %v549 = vsel %vm489, %v533, 0
  %551 = vmatprep.subr.mxu0 0.0
  %552 = vmatpush1.msra.mxu0 %v534
  %553 = vmatprep.subr.mxu0 0.0
  %554 = vmatpush1.msra.mxu0 %v535
  %555 = vmatprep.subr.mxu0 0.0
  %556 = vmatpush1.msra.mxu0 %v536
  %557 = vmatprep.subr.mxu0 0.0
  %558 = vmatpush1.msra.mxu0 %v537
  %559 = vmatprep.subr.mxu0 0.0
  %560 = vmatpush1.msra.mxu0 0.0
  %561 = vmatprep.subr.mxu0 0.0
  %562 = vmatpush1.msra.mxu0 0.0
  %563 = vmatprep.subr.mxu0 0.0
  %564 = vmatpush1.msra.mxu0 0.0
  %565 = vmatprep.subr.mxu0 0.0
  %566 = vmatpush1.msra.mxu0 0.0
  %567 = vmatprep.subr.mxu0 0.0
  %568 = vmatpush1.msra.mxu0 0.0
  %569 = vmatprep.subr.mxu0 0.0
  %570 = vmatpush1.msra.mxu0 0.0
  %571 = vmatprep.subr.mxu0 0.0
  %572 = vmatpush1.msra.mxu0 0.0
  %573 = vmatprep.subr.mxu0 0.0
  %574 = vmatpush1.msra.mxu0 0.0
  %575 = vmatprep.subr.mxu0 0.0
  %576 = vmatpush1.msra.mxu0 0.0
  %577 = vmatprep.subr.mxu0 0.0
  %578 = vmatpush1.msra.mxu0 0.0
  %579 = vmatprep.subr.mxu0 0.0
  %580 = vmatpush1.msra.mxu0 0.0
  %581 = vmatprep.subr.mxu0 0.0
  %582 = vmatpush1.msra.mxu0 0.0
  %583 = vmatprep.subr.mxu0 0.0
  %584 = vmatpush1.msra.mxu0 0.0
  %585 = vmatprep.subr.mxu0 0.0
  %586 = vmatpush1.msra.mxu0 0.0
  %587 = vmatprep.subr.mxu0 0.0
  %588 = vmatpush1.msra.mxu0 0.0
  %589 = vmatprep.subr.mxu0 0.0
  %590 = vmatpush1.msra.mxu0 0.0
  %591 = vmatprep.subr.mxu0 0.0
  %592 = vmatpush1.msra.mxu0 0.0
  %593 = vmatprep.subr.mxu0 0.0
  %594 = vmatpush1.msra.mxu0 0.0
  %595 = vmatprep.subr.mxu0 0.0
  %596 = vmatpush1.msra.mxu0 0.0
  %597 = vmatprep.subr.mxu0 0.0
  %598 = vmatpush1.msra.mxu0 0.0
  %599 = vmatprep.subr.mxu0 0.0
  %600 = vmatpush1.msra.mxu0 0.0
  %601 = vmatprep.subr.mxu0 0.0
  %602 = vmatpush1.msra.mxu0 0.0
  %603 = vmatprep.subr.mxu0 0.0
  %604 = vmatpush1.msra.mxu0 0.0
  %605 = vmatprep.subr.mxu0 0.0
  %606 = vmatpush1.msra.mxu0 0.0
  %607 = vmatprep.subr.mxu0 0.0
  %608 = vmatpush1.msra.mxu0 0.0
  %609 = vmatprep.subr.mxu0 0.0
  %610 = vmatpush1.msra.mxu0 0.0
  %611 = vmatprep.subr.mxu0 0.0
  %612 = vmatpush1.msra.mxu0 0.0
  %613 = vmatprep.subr.mxu0 0.0
  %614 = vmatpush1.msra.mxu0 0.0
  %615 = vmatprep.mubr.f32.mxu0 0.0
  %616 = vmatmul.mubr.f32.gmra.mrb[0].mxu0 %v546
  %v617 = vpop.f32.mrb[0].mxu0
  %v618 = vadd.f32 %v543, %v617
  %v619 = vpop.f32.mrb[0].mxu0
  %620 = vmatprep.mubr.f32.mxu0 0.0
  %621 = vmatmul.mubr.f32.gmra.mrb[0].mxu0 %v549
  %v622 = vpop.f32.mrb[0].mxu0
  %v623 = vadd.f32 %v543, %v622
  %v624 = vpop.f32.mrb[0].mxu0
  %625 = vdwg.mxu0
  %v626 = vld [vmem:[%s12] sm:$0xff]
  %v627 = vld [vmem:[%s12 + $0x8] sm:$0xff]
  %v628 = vld [vmem:[%s12 + $0x10] sm:$0xff]
  %v629 = vld [vmem:[%s12 + $0x18] sm:$0xff]
  %632 = vrot.lane.b32.xlu0 %v618, 96
  %v633 = vpop.permute.xlu0 %632
  %634 = vrot.lane.b32.xlu0 %v623, 96
  %v635 = vpop.permute.xlu0 %634
  %vm636 = vcmask 64512
  %v637 = vsel %vm636, %v618, 0
  %v639 = vsel %vm636, %v623, 0
  %v641 = vsel %vm636, %v633, 0
  %v643 = vsel %vm636, %v635, 0
  %645 = vmatprep.subr.mxu0 0.0
  %646 = vmatpush1.xpose.msra.mxu0 %v641
  %647 = vmatprep.subr.mxu0 0.0
  %648 = vmatpush1.xpose.msra.mxu0 %v643
  %649 = vmatprep.subr.mxu0 0.0
  %650 = vmatpush1.xpose.msra.mxu0 0.0
  %651 = vmatprep.subr.mxu0 0.0
  %652 = vmatpush1.xpose.msra.mxu0 0.0
  %653 = vmatprep.subr.mxu0 0.0
  %654 = vmatpush1.xpose.msra.mxu0 0.0
  %655 = vmatprep.subr.mxu0 0.0
  %656 = vmatpush1.xpose.msra.mxu0 0.0
  %657 = vmatprep.subr.mxu0 0.0
  %658 = vmatpush1.xpose.msra.mxu0 0.0
  %659 = vmatprep.subr.mxu0 0.0
  %660 = vmatpush1.xpose.msra.mxu0 0.0
  %661 = vmatprep.subr.mxu0 0.0
  %662 = vmatpush1.xpose.msra.mxu0 0.0
  %663 = vmatprep.subr.mxu0 0.0
  %664 = vmatpush1.xpose.msra.mxu0 0.0
  %665 = vmatprep.subr.mxu0 0.0
  %666 = vmatpush1.xpose.msra.mxu0 0.0
  %667 = vmatprep.subr.mxu0 0.0
  %668 = vmatpush1.xpose.msra.mxu0 0.0
  %669 = vmatprep.subr.mxu0 0.0
  %670 = vmatpush1.xpose.msra.mxu0 0.0
  %671 = vmatprep.subr.mxu0 0.0
  %672 = vmatpush1.xpose.msra.mxu0 0.0
  %673 = vmatprep.subr.mxu0 0.0
  %674 = vmatpush1.xpose.msra.mxu0 0.0
  %675 = vmatprep.subr.mxu0 0.0
  %676 = vmatpush1.xpose.msra.mxu0 0.0
  %677 = vmatprep.subr.mxu0 0.0
  %678 = vmatpush1.xpose.msra.mxu0 0.0
  %679 = vmatprep.subr.mxu0 0.0
  %680 = vmatpush1.xpose.msra.mxu0 0.0
  %681 = vmatprep.subr.mxu0 0.0
  %682 = vmatpush1.xpose.msra.mxu0 0.0
  %683 = vmatprep.subr.mxu0 0.0
  %684 = vmatpush1.xpose.msra.mxu0 0.0
  %685 = vmatprep.subr.mxu0 0.0
  %686 = vmatpush1.xpose.msra.mxu0 0.0
  %687 = vmatprep.subr.mxu0 0.0
  %688 = vmatpush1.xpose.msra.mxu0 0.0
  %689 = vmatprep.subr.mxu0 0.0
  %690 = vmatpush1.xpose.msra.mxu0 0.0
  %691 = vmatprep.subr.mxu0 0.0
  %692 = vmatpush1.xpose.msra.mxu0 0.0
  %693 = vmatprep.subr.mxu0 0.0
  %694 = vmatpush1.xpose.msra.mxu0 0.0
  %695 = vmatprep.subr.mxu0 0.0
  %696 = vmatpush1.xpose.msra.mxu0 0.0
  %697 = vmatprep.subr.mxu0 0.0
  %698 = vmatpush1.xpose.msra.mxu0 0.0
  %699 = vmatprep.subr.mxu0 0.0
  %700 = vmatpush1.xpose.msra.mxu0 0.0
  %701 = vmatprep.subr.mxu0 0.0
  %702 = vmatpush1.xpose.msra.mxu0 0.0
  %703 = vmatprep.subr.mxu0 0.0
  %704 = vmatpush1.xpose.msra.mxu0 0.0
  %705 = vmatprep.subr.mxu0 0.0
  %706 = vmatpush1.xpose.msra.mxu0 0.0
  %707 = vmatprep.subr.mxu0 0.0
  %708 = vmatpush1.xpose.msra.mxu0 0.0
  %709 = vmatprep.mubr.f32.mxu0 0.0
  %710 = vmatmul.mubr.f32.gmra.mrb[0].mxu0 %v637
  %v711 = vpop.f32.mrb[0].mxu0
  %v712 = vadd.f32 0.0, %v711
  %v713 = vpop.f32.mrb[0].mxu0
  %714 = vmatprep.mubr.f32.mxu0 0.0
  %715 = vmatmul.mubr.f32.gmra.mrb[0].mxu0 %v639
  %v716 = vpop.f32.mrb[0].mxu0
  %v717 = vadd.f32 0.0, %v716
  %v718 = vpop.f32.mrb[0].mxu0
  %719 = vdwg.mxu0
  %v720 = vmul.f32 %v712, 0.35355338
  %v721 = vmul.f32 %v717, 0.35355338
  %v722 = vadd.f32 %v720, %v485
  %v723 = vadd.f32 %v721, %v486
  %vm724 = vcmask 80896
  %v725 = vsel %vm724, %v722, -inf
  %726 = vmax.xlane.f32.xlu0 %v725
  %v727 = vpop.xlane.xlu0 %726
  %vm728 = vcmask 74752
  %v729 = vsel %vm728, %v723, -inf
  %730 = vmax.xlane.f32.xlu0 %v729
  %v731 = vpop.xlane.xlu0 %730
  %v732 = vsub.f32 %v722, %v727
  %v733 = vsub.f32 %v723, %v731
  %v734 = vmul.f32 %v732, 1.442695
  %v735 = vpow.pop %v734
  %v736 = vmul.f32 %v733, 1.442695
  %v737 = vpow.pop %v736
  %v738 = vsel %vm724, %v735, 0.0
  %739 = vadd.xlane.f32.xlu0 %v738
  %v740 = vpop.xlane.xlu0 %739
  %v741 = vsel %vm728, %v737, 0.0
  %742 = vadd.xlane.f32.xlu0 %v741
  %v743 = vpop.xlane.xlu0 %742
  %v744 = vrcp.pop %v740
  %v745 = vrcp.pop %v743
  %v746 = vmul.f32 %v735, %v744
  %v747 = vmul.f32 %v737, %v745
  %748 = vrot.lane.b32.xlu0 %v618, 64
  %v749 = vpop.permute.xlu0 %748
  %750 = vrot.lane.b32.xlu0 %v623, 64
  %v751 = vpop.permute.xlu0 %750
  %v754 = vsel %vm724, %v746, 0
  %v757 = vsel %vm724, %v747, 0
  %vm759 = vcmask 1041408
  %v760 = vsel %vm759, %v751, 0
  %762 = vmatprep.subr.mxu0 0.0
  %763 = vmatpush1.msra.mxu0 %v749
  %764 = vmatprep.subr.mxu0 0.0
  %765 = vmatpush1.msra.mxu0 %v760
  %766 = vmatprep.subr.mxu0 0.0
  %767 = vmatpush1.msra.mxu0 0.0
  %768 = vmatprep.subr.mxu0 0.0
  %769 = vmatpush1.msra.mxu0 0.0
  %770 = vmatprep.subr.mxu0 0.0
  %771 = vmatpush1.msra.mxu0 0.0
  %772 = vmatprep.subr.mxu0 0.0
  %773 = vmatpush1.msra.mxu0 0.0
  %774 = vmatprep.subr.mxu0 0.0
  %775 = vmatpush1.msra.mxu0 0.0
  %776 = vmatprep.subr.mxu0 0.0
  %777 = vmatpush1.msra.mxu0 0.0
  %778 = vmatprep.subr.mxu0 0.0
  %779 = vmatpush1.msra.mxu0 0.0
  %780 = vmatprep.subr.mxu0 0.0
  %781 = vmatpush1.msra.mxu0 0.0
  %782 = vmatprep.subr.mxu0 0.0
  %783 = vmatpush1.msra.mxu0 0.0
  %784 = vmatprep.subr.mxu0 0.0
  %785 = vmatpush1.msra.mxu0 0.0
  %786 = vmatprep.subr.mxu0 0.0
  %787 = vmatpush1.msra.mxu0 0.0
  %788 = vmatprep.subr.mxu0 0.0
  %789 = vmatpush1.msra.mxu0 0.0
  %790 = vmatprep.subr.mxu0 0.0
  %791 = vmatpush1.msra.mxu0 0.0
  %792 = vmatprep.subr.mxu0 0.0
  %793 = vmatpush1.msra.mxu0 0.0
  %794 = vmatprep.subr.mxu0 0.0
  %795 = vmatpush1.msra.mxu0 0.0
  %796 = vmatprep.subr.mxu0 0.0
  %797 = vmatpush1.msra.mxu0 0.0
  %798 = vmatprep.subr.mxu0 0.0
  %799 = vmatpush1.msra.mxu0 0.0
  %800 = vmatprep.subr.mxu0 0.0
  %801 = vmatpush1.msra.mxu0 0.0
  %802 = vmatprep.subr.mxu0 0.0
  %803 = vmatpush1.msra.mxu0 0.0
  %804 = vmatprep.subr.mxu0 0.0
  %805 = vmatpush1.msra.mxu0 0.0
  %806 = vmatprep.subr.mxu0 0.0
  %807 = vmatpush1.msra.mxu0 0.0
  %808 = vmatprep.subr.mxu0 0.0
  %809 = vmatpush1.msra.mxu0 0.0
  %810 = vmatprep.subr.mxu0 0.0
  %811 = vmatpush1.msra.mxu0 0.0
  %812 = vmatprep.subr.mxu0 0.0
  %813 = vmatpush1.msra.mxu0 0.0
  %814 = vmatprep.subr.mxu0 0.0
  %815 = vmatpush1.msra.mxu0 0.0
  %816 = vmatprep.subr.mxu0 0.0
  %817 = vmatpush1.msra.mxu0 0.0
  %818 = vmatprep.subr.mxu0 0.0
  %819 = vmatpush1.msra.mxu0 0.0
  %820 = vmatprep.subr.mxu0 0.0
  %821 = vmatpush1.msra.mxu0 0.0
  %822 = vmatprep.subr.mxu0 0.0
  %823 = vmatpush1.msra.mxu0 0.0
  %824 = vmatprep.subr.mxu0 0.0
  %825 = vmatpush1.msra.mxu0 0.0
  %826 = vmatprep.mubr.f32.mxu0 0.0
  %827 = vmatmul.mubr.f32.gmra.mrb[0].mxu0 %v754
  %v828 = vpop.f32.mrb[0].mxu0
  %v829 = vadd.f32 0.0, %v828
  %v830 = vpop.f32.mrb[0].mxu0
  %831 = vmatprep.mubr.f32.mxu0 0.0
  %832 = vmatmul.mubr.f32.gmra.mrb[0].mxu0 %v757
  %v833 = vpop.f32.mrb[0].mxu0
  %v834 = vadd.f32 0.0, %v833
  %v835 = vpop.f32.mrb[0].mxu0
  %836 = vdwg.mxu0
  %837 = vrot.lane.b32.xlu0 %v618, 120
  %v838 = vpop.permute.xlu0 %837
  %839 = vrot.lane.b32.xlu0 %v623, 120
  %v840 = vpop.permute.xlu0 %839
  %841 = vrot.lane.b32.xlu0 %v618, 88
  %v842 = vpop.permute.xlu0 %841
  %843 = vrot.lane.b32.xlu0 %v623, 88
  %v844 = vpop.permute.xlu0 %843
  %v845 = vsel %vm636, %v838, 0
  %v847 = vsel %vm636, %v840, 0
  %v849 = vsel %vm636, %v842, 0
  %v851 = vsel %vm636, %v844, 0
  %853 = vmatprep.subr.mxu0 0.0
  %854 = vmatpush1.xpose.msra.mxu0 %v849
  %855 = vmatprep.subr.mxu0 0.0
  %856 = vmatpush1.xpose.msra.mxu0 %v851
  %857 = vmatprep.subr.mxu0 0.0
  %858 = vmatpush1.xpose.msra.mxu0 0.0
  %859 = vmatprep.subr.mxu0 0.0
  %860 = vmatpush1.xpose.msra.mxu0 0.0
  %861 = vmatprep.subr.mxu0 0.0
  %862 = vmatpush1.xpose.msra.mxu0 0.0
  %863 = vmatprep.subr.mxu0 0.0
  %864 = vmatpush1.xpose.msra.mxu0 0.0
  %865 = vmatprep.subr.mxu0 0.0
  %866 = vmatpush1.xpose.msra.mxu0 0.0
  %867 = vmatprep.subr.mxu0 0.0
  %868 = vmatpush1.xpose.msra.mxu0 0.0
  %869 = vmatprep.subr.mxu0 0.0
  %870 = vmatpush1.xpose.msra.mxu0 0.0
  %871 = vmatprep.subr.mxu0 0.0
  %872 = vmatpush1.xpose.msra.mxu0 0.0
  %873 = vmatprep.subr.mxu0 0.0
  %874 = vmatpush1.xpose.msra.mxu0 0.0
  %875 = vmatprep.subr.mxu0 0.0
  %876 = vmatpush1.xpose.msra.mxu0 0.0
  %877 = vmatprep.subr.mxu0 0.0
  %878 = vmatpush1.xpose.msra.mxu0 0.0
  %879 = vmatprep.subr.mxu0 0.0
  %880 = vmatpush1.xpose.msra.mxu0 0.0
  %881 = vmatprep.subr.mxu0 0.0
  %882 = vmatpush1.xpose.msra.mxu0 0.0
  %883 = vmatprep.subr.mxu0 0.0
  %884 = vmatpush1.xpose.msra.mxu0 0.0
  %885 = vmatprep.subr.mxu0 0.0
  %886 = vmatpush1.xpose.msra.mxu0 0.0
  %887 = vmatprep.subr.mxu0 0.0
  %888 = vmatpush1.xpose.msra.mxu0 0.0
  %889 = vmatprep.subr.mxu0 0.0
  %890 = vmatpush1.xpose.msra.mxu0 0.0
  %891 = vmatprep.subr.mxu0 0.0
  %892 = vmatpush1.xpose.msra.mxu0 0.0
  %893 = vmatprep.subr.mxu0 0.0
  %894 = vmatpush1.xpose.msra.mxu0 0.0
  %895 = vmatprep.subr.mxu0 0.0
  %896 = vmatpush1.xpose.msra.mxu0 0.0
  %897 = vmatprep.subr.mxu0 0.0
  %898 = vmatpush1.xpose.msra.mxu0 0.0
  %899 = vmatprep.subr.mxu0 0.0
  %900 = vmatpush1.xpose.msra.mxu0 0.0
  %901 = vmatprep.subr.mxu0 0.0
  %902 = vmatpush1.xpose.msra.mxu0 0.0
  %903 = vmatprep.subr.mxu0 0.0
  %904 = vmatpush1.xpose.msra.mxu0 0.0
  %905 = vmatprep.subr.mxu0 0.0
  %906 = vmatpush1.xpose.msra.mxu0 0.0
  %907 = vmatprep.subr.mxu0 0.0
  %908 = vmatpush1.xpose.msra.mxu0 0.0
  %909 = vmatprep.subr.mxu0 0.0
  %910 = vmatpush1.xpose.msra.mxu0 0.0
  %911 = vmatprep.subr.mxu0 0.0
  %912 = vmatpush1.xpose.msra.mxu0 0.0
  %913 = vmatprep.subr.mxu0 0.0
  %914 = vmatpush1.xpose.msra.mxu0 0.0
  %915 = vmatprep.subr.mxu0 0.0
  %916 = vmatpush1.xpose.msra.mxu0 0.0
  %917 = vmatprep.mubr.f32.mxu0 0.0
  %918 = vmatmul.mubr.f32.gmra.mrb[0].mxu0 %v845
  %v919 = vpop.f32.mrb[0].mxu0
  %v920 = vadd.f32 0.0, %v919
  %v921 = vpop.f32.mrb[0].mxu0
  %922 = vmatprep.mubr.f32.mxu0 0.0
  %923 = vmatmul.mubr.f32.gmra.mrb[0].mxu0 %v847
  %v924 = vpop.f32.mrb[0].mxu0
  %v925 = vadd.f32 0.0, %v924
  %v926 = vpop.f32.mrb[0].mxu0
  %927 = vdwg.mxu0
  %v928 = vmul.f32 %v920, 0.35355338
  %v929 = vmul.f32 %v925, 0.35355338
  %v930 = vadd.f32 %v928, %v485
  %v931 = vadd.f32 %v929, %v486
  %v932 = vsel %vm724, %v930, -inf
  %933 = vmax.xlane.f32.xlu0 %v932
  %v934 = vpop.xlane.xlu0 %933
  %v935 = vsel %vm728, %v931, -inf
  %936 = vmax.xlane.f32.xlu0 %v935
  %v937 = vpop.xlane.xlu0 %936
  %v938 = vsub.f32 %v930, %v934
  %v939 = vsub.f32 %v931, %v937
  %v940 = vmul.f32 %v938, 1.442695
  %v941 = vpow.pop %v940
  %v942 = vmul.f32 %v939, 1.442695
  %v943 = vpow.pop %v942
  %v944 = vsel %vm724, %v941, 0.0
  %945 = vadd.xlane.f32.xlu0 %v944
  %v946 = vpop.xlane.xlu0 %945
  %v947 = vsel %vm728, %v943, 0.0
  %948 = vadd.xlane.f32.xlu0 %v947
  %v949 = vpop.xlane.xlu0 %948
  %v950 = vrcp.pop %v946
  %v951 = vrcp.pop %v949
  %v952 = vmul.f32 %v941, %v950
  %v953 = vmul.f32 %v943, %v951
  %954 = vrot.lane.b32.xlu0 %v618, 56
  %v955 = vpop.permute.xlu0 %954
  %956 = vrot.lane.b32.xlu0 %v623, 56
  %v957 = vpop.permute.xlu0 %956
  %v960 = vsel %vm724, %v952, 0
  %v963 = vsel %vm724, %v953, 0
  %v965 = vsel %vm759, %v957, 0
  %967 = vmatprep.subr.mxu0 0.0
  %968 = vmatpush1.msra.mxu0 %v955
  %969 = vmatprep.subr.mxu0 0.0
  %970 = vmatpush1.msra.mxu0 %v965
  %971 = vmatprep.subr.mxu0 0.0
  %972 = vmatpush1.msra.mxu0 0.0
  %973 = vmatprep.subr.mxu0 0.0
  %974 = vmatpush1.msra.mxu0 0.0
  %975 = vmatprep.subr.mxu0 0.0
  %976 = vmatpush1.msra.mxu0 0.0
  %977 = vmatprep.subr.mxu0 0.0
  %978 = vmatpush1.msra.mxu0 0.0
  %979 = vmatprep.subr.mxu0 0.0
  %980 = vmatpush1.msra.mxu0 0.0
  %981 = vmatprep.subr.mxu0 0.0
  %982 = vmatpush1.msra.mxu0 0.0
  %983 = vmatprep.subr.mxu0 0.0
  %984 = vmatpush1.msra.mxu0 0.0
  %985 = vmatprep.subr.mxu0 0.0
  %986 = vmatpush1.msra.mxu0 0.0
  %987 = vmatprep.subr.mxu0 0.0
  %988 = vmatpush1.msra.mxu0 0.0
  %989 = vmatprep.subr.mxu0 0.0
  %990 = vmatpush1.msra.mxu0 0.0
  %991 = vmatprep.subr.mxu0 0.0
  %992 = vmatpush1.msra.mxu0 0.0
  %993 = vmatprep.subr.mxu0 0.0
  %994 = vmatpush1.msra.mxu0 0.0
  %995 = vmatprep.subr.mxu0 0.0
  %996 = vmatpush1.msra.mxu0 0.0
  %997 = vmatprep.subr.mxu0 0.0
  %998 = vmatpush1.msra.mxu0 0.0
  %999 = vmatprep.subr.mxu0 0.0
  %1000 = vmatpush1.msra.mxu0 0.0
  %1001 = vmatprep.subr.mxu0 0.0
  %1002 = vmatpush1.msra.mxu0 0.0
  %1003 = vmatprep.subr.mxu0 0.0
  %1004 = vmatpush1.msra.mxu0 0.0
  %1005 = vmatprep.subr.mxu0 0.0
  %1006 = vmatpush1.msra.mxu0 0.0
  %1007 = vmatprep.subr.mxu0 0.0
  %1008 = vmatpush1.msra.mxu0 0.0
  %1009 = vmatprep.subr.mxu0 0.0
  %1010 = vmatpush1.msra.mxu0 0.0
  %1011 = vmatprep.subr.mxu0 0.0
  %1012 = vmatpush1.msra.mxu0 0.0
  %1013 = vmatprep.subr.mxu0 0.0
  %1014 = vmatpush1.msra.mxu0 0.0
  %1015 = vmatprep.subr.mxu0 0.0
  %1016 = vmatpush1.msra.mxu0 0.0
  %1017 = vmatprep.subr.mxu0 0.0
  %1018 = vmatpush1.msra.mxu0 0.0
  %1019 = vmatprep.subr.mxu0 0.0
  %1020 = vmatpush1.msra.mxu0 0.0
  %1021 = vmatprep.subr.mxu0 0.0
  %1022 = vmatpush1.msra.mxu0 0.0
  %1023 = vmatprep.subr.mxu0 0.0
  %1024 = vmatpush1.msra.mxu0 0.0
  %1025 = vmatprep.subr.mxu0 0.0
  %1026 = vmatpush1.msra.mxu0 0.0
  %1027 = vmatprep.subr.mxu0 0.0
  %1028 = vmatpush1.msra.mxu0 0.0
  %1029 = vmatprep.subr.mxu0 0.0
  %1030 = vmatpush1.msra.mxu0 0.0
  %1031 = vmatprep.mubr.f32.mxu0 0.0
  %1032 = vmatmul.mubr.f32.gmra.mrb[0].mxu0 %v960
  %v1033 = vpop.f32.mrb[0].mxu0
  %v1034 = vadd.f32 0.0, %v1033
  %v1035 = vpop.f32.mrb[0].mxu0
  %1036 = vmatprep.mubr.f32.mxu0 0.0
  %1037 = vmatmul.mubr.f32.gmra.mrb[0].mxu0 %v963
  %v1038 = vpop.f32.mrb[0].mxu0
  %v1039 = vadd.f32 0.0, %v1038
  %v1040 = vpop.f32.mrb[0].mxu0
  %1041 = vdwg.mxu0
  %v1043 = vsel %vm636, %v1034, 0
  %v1046 = vsel %vm636, %v1039, 0
  %1048 = vmatprep.subr.mxu0 0.0
  %1049 = vmatpush1.msra.mxu0 %v627
  %1050 = vmatprep.subr.mxu0 0.0
  %1051 = vmatpush1.msra.mxu0 0.0
  %1052 = vmatprep.subr.mxu0 0.0
  %1053 = vmatpush1.msra.mxu0 0.0
  %1054 = vmatprep.subr.mxu0 0.0
  %1055 = vmatpush1.msra.mxu0 0.0
  %1056 = vmatprep.subr.mxu0 0.0
  %1057 = vmatpush1.msra.mxu0 0.0
  %1058 = vmatprep.subr.mxu0 0.0
  %1059 = vmatpush1.msra.mxu0 0.0
  %1060 = vmatprep.subr.mxu0 0.0
  %1061 = vmatpush1.msra.mxu0 0.0
  %1062 = vmatprep.subr.mxu0 0.0
  %1063 = vmatpush1.msra.mxu0 0.0
  %1064 = vmatprep.subr.mxu0 0.0
  %1065 = vmatpush1.msra.mxu0 0.0
  %1066 = vmatprep.subr.mxu0 0.0
  %1067 = vmatpush1.msra.mxu0 0.0
  %1068 = vmatprep.subr.mxu0 0.0
  %1069 = vmatpush1.msra.mxu0 0.0
  %1070 = vmatprep.subr.mxu0 0.0
  %1071 = vmatpush1.msra.mxu0 0.0
  %1072 = vmatprep.subr.mxu0 0.0
  %1073 = vmatpush1.msra.mxu0 0.0
  %1074 = vmatprep.subr.mxu0 0.0
  %1075 = vmatpush1.msra.mxu0 0.0
  %1076 = vmatprep.subr.mxu0 0.0
  %1077 = vmatpush1.msra.mxu0 0.0
  %1078 = vmatprep.subr.mxu0 0.0
  %1079 = vmatpush1.msra.mxu0 0.0
  %1080 = vmatprep.subr.mxu0 0.0
  %1081 = vmatpush1.msra.mxu0 0.0
  %1082 = vmatprep.subr.mxu0 0.0
  %1083 = vmatpush1.msra.mxu0 0.0
  %1084 = vmatprep.subr.mxu0 0.0
  %1085 = vmatpush1.msra.mxu0 0.0
  %1086 = vmatprep.subr.mxu0 0.0
  %1087 = vmatpush1.msra.mxu0 0.0
  %1088 = vmatprep.subr.mxu0 0.0
  %1089 = vmatpush1.msra.mxu0 0.0
  %1090 = vmatprep.subr.mxu0 0.0
  %1091 = vmatpush1.msra.mxu0 0.0
  %1092 = vmatprep.subr.mxu0 0.0
  %1093 = vmatpush1.msra.mxu0 0.0
  %1094 = vmatprep.subr.mxu0 0.0
  %1095 = vmatpush1.msra.mxu0 0.0
  %1096 = vmatprep.subr.mxu0 0.0
  %1097 = vmatpush1.msra.mxu0 0.0
  %1098 = vmatprep.subr.mxu0 0.0
  %1099 = vmatpush1.msra.mxu0 0.0
  %1100 = vmatprep.subr.mxu0 0.0
  %1101 = vmatpush1.msra.mxu0 0.0
  %1102 = vmatprep.subr.mxu0 0.0
  %1103 = vmatpush1.msra.mxu0 0.0
  %1104 = vmatprep.subr.mxu0 0.0
  %1105 = vmatpush1.msra.mxu0 0.0
  %1106 = vmatprep.subr.mxu0 0.0
  %1107 = vmatpush1.msra.mxu0 0.0
  %1108 = vmatprep.subr.mxu0 0.0
  %1109 = vmatpush1.msra.mxu0 0.0
  %1110 = vmatprep.subr.mxu0 0.0
  %1111 = vmatpush1.msra.mxu0 0.0
  %1112 = vmatprep.mubr.f32.mxu0 0.0
  %1113 = vmatmul.mubr.f32.gmra.mrb[0].mxu0 %v1043
  %v1114 = vpop.f32.mrb[0].mxu0
  %v1115 = vadd.f32 0.0, %v1114
  %v1116 = vpop.f32.mrb[0].mxu0
  %1117 = vmatprep.mubr.f32.mxu0 0.0
  %1118 = vmatmul.mubr.f32.gmra.mrb[0].mxu0 %v1046
  %v1119 = vpop.f32.mrb[0].mxu0
  %v1120 = vadd.f32 0.0, %v1119
  %v1121 = vpop.f32.mrb[0].mxu0
  %1122 = vdwg.mxu0
  %v1124 = vsel %vm636, %v829, 0
  %v1127 = vsel %vm636, %v834, 0
  %1129 = vmatprep.subr.mxu0 0.0
  %1130 = vmatpush1.msra.mxu0 %v626
  %1131 = vmatprep.subr.mxu0 0.0
  %1132 = vmatpush1.msra.mxu0 0.0
  %1133 = vmatprep.subr.mxu0 0.0
  %1134 = vmatpush1.msra.mxu0 0.0
  %1135 = vmatprep.subr.mxu0 0.0
  %1136 = vmatpush1.msra.mxu0 0.0
  %1137 = vmatprep.subr.mxu0 0.0
  %1138 = vmatpush1.msra.mxu0 0.0
  %1139 = vmatprep.subr.mxu0 0.0
  %1140 = vmatpush1.msra.mxu0 0.0
  %1141 = vmatprep.subr.mxu0 0.0
  %1142 = vmatpush1.msra.mxu0 0.0
  %1143 = vmatprep.subr.mxu0 0.0
  %1144 = vmatpush1.msra.mxu0 0.0
  %1145 = vmatprep.subr.mxu0 0.0
  %1146 = vmatpush1.msra.mxu0 0.0
  %1147 = vmatprep.subr.mxu0 0.0
  %1148 = vmatpush1.msra.mxu0 0.0
  %1149 = vmatprep.subr.mxu0 0.0
  %1150 = vmatpush1.msra.mxu0 0.0
  %1151 = vmatprep.subr.mxu0 0.0
  %1152 = vmatpush1.msra.mxu0 0.0
  %1153 = vmatprep.subr.mxu0 0.0
  %1154 = vmatpush1.msra.mxu0 0.0
  %1155 = vmatprep.subr.mxu0 0.0
  %1156 = vmatpush1.msra.mxu0 0.0
  %1157 = vmatprep.subr.mxu0 0.0
  %1158 = vmatpush1.msra.mxu0 0.0
  %1159 = vmatprep.subr.mxu0 0.0
  %1160 = vmatpush1.msra.mxu0 0.0
  %1161 = vmatprep.subr.mxu0 0.0
  %1162 = vmatpush1.msra.mxu0 0.0
  %1163 = vmatprep.subr.mxu0 0.0
  %1164 = vmatpush1.msra.mxu0 0.0
  %1165 = vmatprep.subr.mxu0 0.0
  %1166 = vmatpush1.msra.mxu0 0.0
  %1167 = vmatprep.subr.mxu0 0.0
  %1168 = vmatpush1.msra.mxu0 0.0
  %1169 = vmatprep.subr.mxu0 0.0
  %1170 = vmatpush1.msra.mxu0 0.0
  %1171 = vmatprep.subr.mxu0 0.0
  %1172 = vmatpush1.msra.mxu0 0.0
  %1173 = vmatprep.subr.mxu0 0.0
  %1174 = vmatpush1.msra.mxu0 0.0
  %1175 = vmatprep.subr.mxu0 0.0
  %1176 = vmatpush1.msra.mxu0 0.0
  %1177 = vmatprep.subr.mxu0 0.0
  %1178 = vmatpush1.msra.mxu0 0.0
  %1179 = vmatprep.subr.mxu0 0.0
  %1180 = vmatpush1.msra.mxu0 0.0
  %1181 = vmatprep.subr.mxu0 0.0
  %1182 = vmatpush1.msra.mxu0 0.0
  %1183 = vmatprep.subr.mxu0 0.0
  %1184 = vmatpush1.msra.mxu0 0.0
  %1185 = vmatprep.subr.mxu0 0.0
  %1186 = vmatpush1.msra.mxu0 0.0
  %1187 = vmatprep.subr.mxu0 0.0
  %1188 = vmatpush1.msra.mxu0 0.0
  %1189 = vmatprep.subr.mxu0 0.0
  %1190 = vmatpush1.msra.mxu0 0.0
  %1191 = vmatprep.subr.mxu0 0.0
  %1192 = vmatpush1.msra.mxu0 0.0
  %1193 = vmatprep.mubr.f32.mxu0 0.0
  %1194 = vmatmul.mubr.f32.gmra.mrb[0].mxu0 %v1124
  %v1195 = vpop.f32.mrb[0].mxu0
  %v1196 = vadd.f32 %v1115, %v1195
  %v1197 = vpop.f32.mrb[0].mxu0
  %1198 = vmatprep.mubr.f32.mxu0 0.0
  %1199 = vmatmul.mubr.f32.gmra.mrb[0].mxu0 %v1127
  %v1200 = vpop.f32.mrb[0].mxu0
  %v1201 = vadd.f32 %v1120, %v1200
  %v1202 = vpop.f32.mrb[0].mxu0
  %1203 = vdwg.mxu0
  %1204 = vrot.lane.b32.xlu0 %v618, 112
  %v1205 = vpop.permute.xlu0 %1204
  %1206 = vrot.lane.b32.xlu0 %v623, 112
  %v1207 = vpop.permute.xlu0 %1206
  %1208 = vrot.lane.b32.xlu0 %v618, 80
  %v1209 = vpop.permute.xlu0 %1208
  %1210 = vrot.lane.b32.xlu0 %v623, 80
  %v1211 = vpop.permute.xlu0 %1210
  %v1212 = vsel %vm636, %v1205, 0
  %v1214 = vsel %vm636, %v1207, 0
  %v1216 = vsel %vm636, %v1209, 0
  %v1218 = vsel %vm636, %v1211, 0
  %1220 = vmatprep.subr.mxu0 0.0
  %1221 = vmatpush1.xpose.msra.mxu0 %v1216
  %1222 = vmatprep.subr.mxu0 0.0
  %1223 = vmatpush1.xpose.msra.mxu0 %v1218
  %1224 = vmatprep.subr.mxu0 0.0
  %1225 = vmatpush1.xpose.msra.mxu0 0.0
  %1226 = vmatprep.subr.mxu0 0.0
  %1227 = vmatpush1.xpose.msra.mxu0 0.0
  %1228 = vmatprep.subr.mxu0 0.0
  %1229 = vmatpush1.xpose.msra.mxu0 0.0
  %1230 = vmatprep.subr.mxu0 0.0
  %1231 = vmatpush1.xpose.msra.mxu0 0.0
  %1232 = vmatprep.subr.mxu0 0.0
  %1233 = vmatpush1.xpose.msra.mxu0 0.0
  %1234 = vmatprep.subr.mxu0 0.0
  %1235 = vmatpush1.xpose.msra.mxu0 0.0
  %1236 = vmatprep.subr.mxu0 0.0
  %1237 = vmatpush1.xpose.msra.mxu0 0.0
  %1238 = vmatprep.subr.mxu0 0.0
  %1239 = vmatpush1.xpose.msra.mxu0 0.0
  %1240 = vmatprep.subr.mxu0 0.0
  %1241 = vmatpush1.xpose.msra.mxu0 0.0
  %1242 = vmatprep.subr.mxu0 0.0
  %1243 = vmatpush1.xpose.msra.mxu0 0.0
  %1244 = vmatprep.subr.mxu0 0.0
  %1245 = vmatpush1.xpose.msra.mxu0 0.0
  %1246 = vmatprep.subr.mxu0 0.0
  %1247 = vmatpush1.xpose.msra.mxu0 0.0
  %1248 = vmatprep.subr.mxu0 0.0
  %1249 = vmatpush1.xpose.msra.mxu0 0.0
  %1250 = vmatprep.subr.mxu0 0.0
  %1251 = vmatpush1.xpose.msra.mxu0 0.0
  %1252 = vmatprep.subr.mxu0 0.0
  %1253 = vmatpush1.xpose.msra.mxu0 0.0
  %1254 = vmatprep.subr.mxu0 0.0
  %1255 = vmatpush1.xpose.msra.mxu0 0.0
  %1256 = vmatprep.subr.mxu0 0.0
  %1257 = vmatpush1.xpose.msra.mxu0 0.0
  %1258 = vmatprep.subr.mxu0 0.0
  %1259 = vmatpush1.xpose.msra.mxu0 0.0
  %1260 = vmatprep.subr.mxu0 0.0
  %1261 = vmatpush1.xpose.msra.mxu0 0.0
  %1262 = vmatprep.subr.mxu0 0.0
  %1263 = vmatpush1.xpose.msra.mxu0 0.0
  %1264 = vmatprep.subr.mxu0 0.0
  %1265 = vmatpush1.xpose.msra.mxu0 0.0
  %1266 = vmatprep.subr.mxu0 0.0
  %1267 = vmatpush1.xpose.msra.mxu0 0.0
  %1268 = vmatprep.subr.mxu0 0.0
  %1269 = vmatpush1.xpose.msra.mxu0 0.0
  %1270 = vmatprep.subr.mxu0 0.0
  %1271 = vmatpush1.xpose.msra.mxu0 0.0
  %1272 = vmatprep.subr.mxu0 0.0
  %1273 = vmatpush1.xpose.msra.mxu0 0.0
  %1274 = vmatprep.subr.mxu0 0.0
  %1275 = vmatpush1.xpose.msra.mxu0 0.0
  %1276 = vmatprep.subr.mxu0 0.0
  %1277 = vmatpush1.xpose.msra.mxu0 0.0
  %1278 = vmatprep.subr.mxu0 0.0
  %1279 = vmatpush1.xpose.msra.mxu0 0.0
  %1280 = vmatprep.subr.mxu0 0.0
  %1281 = vmatpush1.xpose.msra.mxu0 0.0
  %1282 = vmatprep.subr.mxu0 0.0
  %1283 = vmatpush1.xpose.msra.mxu0 0.0
  %1284 = vmatprep.mubr.f32.mxu0 0.0
  %1285 = vmatmul.mubr.f32.gmra.mrb[0].mxu0 %v1212
  %v1286 = vpop.f32.mrb[0].mxu0
  %v1287 = vadd.f32 0.0, %v1286
  %v1288 = vpop.f32.mrb[0].mxu0
  %1289 = vmatprep.mubr.f32.mxu0 0.0
  %1290 = vmatmul.mubr.f32.gmra.mrb[0].mxu0 %v1214
  %v1291 = vpop.f32.mrb[0].mxu0
  %v1292 = vadd.f32 0.0, %v1291
  %v1293 = vpop.f32.mrb[0].mxu0
  %1294 = vdwg.mxu0
  %v1295 = vmul.f32 %v1287, 0.35355338
  %v1296 = vmul.f32 %v1292, 0.35355338
  %v1297 = vadd.f32 %v1295, %v485
  %v1298 = vadd.f32 %v1296, %v486
  %v1299 = vsel %vm724, %v1297, -inf
  %1300 = vmax.xlane.f32.xlu0 %v1299
  %v1301 = vpop.xlane.xlu0 %1300
  %v1302 = vsel %vm728, %v1298, -inf
  %1303 = vmax.xlane.f32.xlu0 %v1302
  %v1304 = vpop.xlane.xlu0 %1303
  %v1305 = vsub.f32 %v1297, %v1301
  %v1306 = vsub.f32 %v1298, %v1304
  %v1307 = vmul.f32 %v1305, 1.442695
  %v1308 = vpow.pop %v1307
  %v1309 = vmul.f32 %v1306, 1.442695
  %v1310 = vpow.pop %v1309
  %v1311 = vsel %vm724, %v1308, 0.0
  %1312 = vadd.xlane.f32.xlu0 %v1311
  %v1313 = vpop.xlane.xlu0 %1312
  %v1314 = vsel %vm728, %v1310, 0.0
  %1315 = vadd.xlane.f32.xlu0 %v1314
  %v1316 = vpop.xlane.xlu0 %1315
  %v1317 = vrcp.pop %v1313
  %v1318 = vrcp.pop %v1316
  %v1319 = vmul.f32 %v1308, %v1317
  %v1320 = vmul.f32 %v1310, %v1318
  %1321 = vrot.lane.b32.xlu0 %v618, 48
  %v1322 = vpop.permute.xlu0 %1321
  %1323 = vrot.lane.b32.xlu0 %v623, 48
  %v1324 = vpop.permute.xlu0 %1323
  %v1327 = vsel %vm724, %v1319, 0
  %v1330 = vsel %vm724, %v1320, 0
  %v1332 = vsel %vm759, %v1324, 0
  %1334 = vmatprep.subr.mxu0 0.0
  %1335 = vmatpush1.msra.mxu0 %v1322
  %1336 = vmatprep.subr.mxu0 0.0
  %1337 = vmatpush1.msra.mxu0 %v1332
  %1338 = vmatprep.subr.mxu0 0.0
  %1339 = vmatpush1.msra.mxu0 0.0
  %1340 = vmatprep.subr.mxu0 0.0
  %1341 = vmatpush1.msra.mxu0 0.0
  %1342 = vmatprep.subr.mxu0 0.0
  %1343 = vmatpush1.msra.mxu0 0.0
  %1344 = vmatprep.subr.mxu0 0.0
  %1345 = vmatpush1.msra.mxu0 0.0
  %1346 = vmatprep.subr.mxu0 0.0
  %1347 = vmatpush1.msra.mxu0 0.0
  %1348 = vmatprep.subr.mxu0 0.0
  %1349 = vmatpush1.msra.mxu0 0.0
  %1350 = vmatprep.subr.mxu0 0.0
  %1351 = vmatpush1.msra.mxu0 0.0
  %1352 = vmatprep.subr.mxu0 0.0
  %1353 = vmatpush1.msra.mxu0 0.0
  %1354 = vmatprep.subr.mxu0 0.0
  %1355 = vmatpush1.msra.mxu0 0.0
  %1356 = vmatprep.subr.mxu0 0.0
  %1357 = vmatpush1.msra.mxu0 0.0
  %1358 = vmatprep.subr.mxu0 0.0
  %1359 = vmatpush1.msra.mxu0 0.0
  %1360 = vmatprep.subr.mxu0 0.0
  %1361 = vmatpush1.msra.mxu0 0.0
  %1362 = vmatprep.subr.mxu0 0.0
  %1363 = vmatpush1.msra.mxu0 0.0
  %1364 = vmatprep.subr.mxu0 0.0
  %1365 = vmatpush1.msra.mxu0 0.0
  %1366 = vmatprep.subr.mxu0 0.0
  %1367 = vmatpush1.msra.mxu0 0.0
  %1368 = vmatprep.subr.mxu0 0.0
  %1369 = vmatpush1.msra.mxu0 0.0
  %1370 = vmatprep.subr.mxu0 0.0
  %1371 = vmatpush1.msra.mxu0 0.0
  %1372 = vmatprep.subr.mxu0 0.0
  %1373 = vmatpush1.msra.mxu0 0.0
  %1374 = vmatprep.subr.mxu0 0.0
  %1375 = vmatpush1.msra.mxu0 0.0
  %1376 = vmatprep.subr.mxu0 0.0
  %1377 = vmatpush1.msra.mxu0 0.0
  %1378 = vmatprep.subr.mxu0 0.0
  %1379 = vmatpush1.msra.mxu0 0.0
  %1380 = vmatprep.subr.mxu0 0.0
  %1381 = vmatpush1.msra.mxu0 0.0
  %1382 = vmatprep.subr.mxu0 0.0
  %1383 = vmatpush1.msra.mxu0 0.0
  %1384 = vmatprep.subr.mxu0 0.0
  %1385 = vmatpush1.msra.mxu0 0.0
  %1386 = vmatprep.subr.mxu0 0.0
  %1387 = vmatpush1.msra.mxu0 0.0
  %1388 = vmatprep.subr.mxu0 0.0
  %1389 = vmatpush1.msra.mxu0 0.0
  %1390 = vmatprep.subr.mxu0 0.0
  %1391 = vmatpush1.msra.mxu0 0.0
  %1392 = vmatprep.subr.mxu0 0.0
  %1393 = vmatpush1.msra.mxu0 0.0
  %1394 = vmatprep.subr.mxu0 0.0
  %1395 = vmatpush1.msra.mxu0 0.0
  %1396 = vmatprep.subr.mxu0 0.0
  %1397 = vmatpush1.msra.mxu0 0.0
  %1398 = vmatprep.mubr.f32.mxu0 0.0
  %1399 = vmatmul.mubr.f32.gmra.mrb[0].mxu0 %v1327
  %v1400 = vpop.f32.mrb[0].mxu0
  %v1401 = vadd.f32 0.0, %v1400
  %v1402 = vpop.f32.mrb[0].mxu0
  %1403 = vmatprep.mubr.f32.mxu0 0.0
  %1404 = vmatmul.mubr.f32.gmra.mrb[0].mxu0 %v1330
  %v1405 = vpop.f32.mrb[0].mxu0
  %v1406 = vadd.f32 0.0, %v1405
  %v1407 = vpop.f32.mrb[0].mxu0
  %1408 = vdwg.mxu0
  %v1410 = vsel %vm636, %v1401, 0
  %v1413 = vsel %vm636, %v1406, 0
  %1415 = vmatprep.subr.mxu0 0.0
  %1416 = vmatpush1.msra.mxu0 %v628
  %1417 = vmatprep.subr.mxu0 0.0
  %1418 = vmatpush1.msra.mxu0 0.0
  %1419 = vmatprep.subr.mxu0 0.0
  %1420 = vmatpush1.msra.mxu0 0.0
  %1421 = vmatprep.subr.mxu0 0.0
  %1422 = vmatpush1.msra.mxu0 0.0
  %1423 = vmatprep.subr.mxu0 0.0
  %1424 = vmatpush1.msra.mxu0 0.0
  %1425 = vmatprep.subr.mxu0 0.0
  %1426 = vmatpush1.msra.mxu0 0.0
  %1427 = vmatprep.subr.mxu0 0.0
  %1428 = vmatpush1.msra.mxu0 0.0
  %1429 = vmatprep.subr.mxu0 0.0
  %1430 = vmatpush1.msra.mxu0 0.0
  %1431 = vmatprep.subr.mxu0 0.0
  %1432 = vmatpush1.msra.mxu0 0.0
  %1433 = vmatprep.subr.mxu0 0.0
  %1434 = vmatpush1.msra.mxu0 0.0
  %1435 = vmatprep.subr.mxu0 0.0
  %1436 = vmatpush1.msra.mxu0 0.0
  %1437 = vmatprep.subr.mxu0 0.0
  %1438 = vmatpush1.msra.mxu0 0.0
  %1439 = vmatprep.subr.mxu0 0.0
  %1440 = vmatpush1.msra.mxu0 0.0
  %1441 = vmatprep.subr.mxu0 0.0
  %1442 = vmatpush1.msra.mxu0 0.0
  %1443 = vmatprep.subr.mxu0 0.0
  %1444 = vmatpush1.msra.mxu0 0.0
  %1445 = vmatprep.subr.mxu0 0.0
  %1446 = vmatpush1.msra.mxu0 0.0
  %1447 = vmatprep.subr.mxu0 0.0
  %1448 = vmatpush1.msra.mxu0 0.0
  %1449 = vmatprep.subr.mxu0 0.0
  %1450 = vmatpush1.msra.mxu0 0.0
  %1451 = vmatprep.subr.mxu0 0.0
  %1452 = vmatpush1.msra.mxu0 0.0
  %1453 = vmatprep.subr.mxu0 0.0
  %1454 = vmatpush1.msra.mxu0 0.0
  %1455 = vmatprep.subr.mxu0 0.0
  %1456 = vmatpush1.msra.mxu0 0.0
  %1457 = vmatprep.subr.mxu0 0.0
  %1458 = vmatpush1.msra.mxu0 0.0
  %1459 = vmatprep.subr.mxu0 0.0
  %1460 = vmatpush1.msra.mxu0 0.0
  %1461 = vmatprep.subr.mxu0 0.0
  %1462 = vmatpush1.msra.mxu0 0.0
  %1463 = vmatprep.subr.mxu0 0.0
  %1464 = vmatpush1.msra.mxu0 0.0
  %1465 = vmatprep.subr.mxu0 0.0
  %1466 = vmatpush1.msra.mxu0 0.0
  %1467 = vmatprep.subr.mxu0 0.0
  %1468 = vmatpush1.msra.mxu0 0.0
  %1469 = vmatprep.subr.mxu0 0.0
  %1470 = vmatpush1.msra.mxu0 0.0
  %1471 = vmatprep.subr.mxu0 0.0
  %1472 = vmatpush1.msra.mxu0 0.0
  %1473 = vmatprep.subr.mxu0 0.0
  %1474 = vmatpush1.msra.mxu0 0.0
  %1475 = vmatprep.subr.mxu0 0.0
  %1476 = vmatpush1.msra.mxu0 0.0
  %1477 = vmatprep.subr.mxu0 0.0
  %1478 = vmatpush1.msra.mxu0 0.0
  %1479 = vmatprep.mubr.f32.mxu0 0.0
  %1480 = vmatmul.mubr.f32.gmra.mrb[0].mxu0 %v1410
  %v1481 = vpop.f32.mrb[0].mxu0
  %v1482 = vadd.f32 0.0, %v1481
  %v1483 = vpop.f32.mrb[0].mxu0
  %1484 = vmatprep.mubr.f32.mxu0 0.0
  %1485 = vmatmul.mubr.f32.gmra.mrb[0].mxu0 %v1413
  %v1486 = vpop.f32.mrb[0].mxu0
  %v1487 = vadd.f32 0.0, %v1486
  %v1488 = vpop.f32.mrb[0].mxu0
  %1489 = vdwg.mxu0
  %v1490 = vadd.f32 %v1196, %v1482
  %v1491 = vadd.f32 %v1201, %v1487
  %1492 = vrot.lane.b32.xlu0 %v618, 104
  %v1493 = vpop.permute.xlu0 %1492
  %1494 = vrot.lane.b32.xlu0 %v623, 104
  %v1495 = vpop.permute.xlu0 %1494
  %1496 = vrot.lane.b32.xlu0 %v618, 72
  %v1497 = vpop.permute.xlu0 %1496
  %1498 = vrot.lane.b32.xlu0 %v623, 72
  %v1499 = vpop.permute.xlu0 %1498
  %v1500 = vsel %vm636, %v1493, 0
  %v1502 = vsel %vm636, %v1495, 0
  %v1504 = vsel %vm636, %v1497, 0
  %v1506 = vsel %vm636, %v1499, 0
  %1508 = vmatprep.subr.mxu0 0.0
  %1509 = vmatpush1.xpose.msra.mxu0 %v1504
  %1510 = vmatprep.subr.mxu0 0.0
  %1511 = vmatpush1.xpose.msra.mxu0 %v1506
  %1512 = vmatprep.subr.mxu0 0.0
  %1513 = vmatpush1.xpose.msra.mxu0 0.0
  %1514 = vmatprep.subr.mxu0 0.0
  %1515 = vmatpush1.xpose.msra.mxu0 0.0
  %1516 = vmatprep.subr.mxu0 0.0
  %1517 = vmatpush1.xpose.msra.mxu0 0.0
  %1518 = vmatprep.subr.mxu0 0.0
  %1519 = vmatpush1.xpose.msra.mxu0 0.0
  %1520 = vmatprep.subr.mxu0 0.0
  %1521 = vmatpush1.xpose.msra.mxu0 0.0
  %1522 = vmatprep.subr.mxu0 0.0
  %1523 = vmatpush1.xpose.msra.mxu0 0.0
  %1524 = vmatprep.subr.mxu0 0.0
  %1525 = vmatpush1.xpose.msra.mxu0 0.0
  %1526 = vmatprep.subr.mxu0 0.0
  %1527 = vmatpush1.xpose.msra.mxu0 0.0
  %1528 = vmatprep.subr.mxu0 0.0
  %1529 = vmatpush1.xpose.msra.mxu0 0.0
  %1530 = vmatprep.subr.mxu0 0.0
  %1531 = vmatpush1.xpose.msra.mxu0 0.0
  %1532 = vmatprep.subr.mxu0 0.0
  %1533 = vmatpush1.xpose.msra.mxu0 0.0
  %1534 = vmatprep.subr.mxu0 0.0
  %1535 = vmatpush1.xpose.msra.mxu0 0.0
  %1536 = vmatprep.subr.mxu0 0.0
  %1537 = vmatpush1.xpose.msra.mxu0 0.0
  %1538 = vmatprep.subr.mxu0 0.0
  %1539 = vmatpush1.xpose.msra.mxu0 0.0
  %1540 = vmatprep.subr.mxu0 0.0
  %1541 = vmatpush1.xpose.msra.mxu0 0.0
  %1542 = vmatprep.subr.mxu0 0.0
  %1543 = vmatpush1.xpose.msra.mxu0 0.0
  %1544 = vmatprep.subr.mxu0 0.0
  %1545 = vmatpush1.xpose.msra.mxu0 0.0
  %1546 = vmatprep.subr.mxu0 0.0
  %1547 = vmatpush1.xpose.msra.mxu0 0.0
  %1548 = vmatprep.subr.mxu0 0.0
  %1549 = vmatpush1.xpose.msra.mxu0 0.0
  %1550 = vmatprep.subr.mxu0 0.0
  %1551 = vmatpush1.xpose.msra.mxu0 0.0
  %1552 = vmatprep.subr.mxu0 0.0
  %1553 = vmatpush1.xpose.msra.mxu0 0.0
  %1554 = vmatprep.subr.mxu0 0.0
  %1555 = vmatpush1.xpose.msra.mxu0 0.0
  %1556 = vmatprep.subr.mxu0 0.0
  %1557 = vmatpush1.xpose.msra.mxu0 0.0
  %1558 = vmatprep.subr.mxu0 0.0
  %1559 = vmatpush1.xpose.msra.mxu0 0.0
  %1560 = vmatprep.subr.mxu0 0.0
  %1561 = vmatpush1.xpose.msra.mxu0 0.0
  %1562 = vmatprep.subr.mxu0 0.0
  %1563 = vmatpush1.xpose.msra.mxu0 0.0
  %1564 = vmatprep.subr.mxu0 0.0
  %1565 = vmatpush1.xpose.msra.mxu0 0.0
  %1566 = vmatprep.subr.mxu0 0.0
  %1567 = vmatpush1.xpose.msra.mxu0 0.0
  %1568 = vmatprep.subr.mxu0 0.0
  %1569 = vmatpush1.xpose.msra.mxu0 0.0
  %1570 = vmatprep.subr.mxu0 0.0
  %1571 = vmatpush1.xpose.msra.mxu0 0.0
  %1572 = vmatprep.mubr.f32.mxu0 0.0
  %1573 = vmatmul.mubr.f32.gmra.mrb[0].mxu0 %v1500
  %v1574 = vpop.f32.mrb[0].mxu0
  %v1575 = vadd.f32 0.0, %v1574
  %v1576 = vpop.f32.mrb[0].mxu0
  %1577 = vmatprep.mubr.f32.mxu0 0.0
  %1578 = vmatmul.mubr.f32.gmra.mrb[0].mxu0 %v1502
  %v1579 = vpop.f32.mrb[0].mxu0
  %v1580 = vadd.f32 0.0, %v1579
  %v1581 = vpop.f32.mrb[0].mxu0
  %1582 = vdwg.mxu0
  %v1583 = vmul.f32 %v1575, 0.35355338
  %v1584 = vmul.f32 %v1580, 0.35355338
  %v1585 = vadd.f32 %v1583, %v485
  %v1586 = vadd.f32 %v1584, %v486
  %v1587 = vsel %vm724, %v1585, -inf
  %1588 = vmax.xlane.f32.xlu0 %v1587
  %v1589 = vpop.xlane.xlu0 %1588
  %v1590 = vsel %vm728, %v1586, -inf
  %1591 = vmax.xlane.f32.xlu0 %v1590
  %v1592 = vpop.xlane.xlu0 %1591
  %v1593 = vsub.f32 %v1585, %v1589
  %v1594 = vsub.f32 %v1586, %v1592
  %v1595 = vmul.f32 %v1593, 1.442695
  %v1596 = vpow.pop %v1595
  %v1597 = vmul.f32 %v1594, 1.442695
  %v1598 = vpow.pop %v1597
  %v1599 = vsel %vm724, %v1596, 0.0
  %1600 = vadd.xlane.f32.xlu0 %v1599
  %v1601 = vpop.xlane.xlu0 %1600
  %v1602 = vsel %vm728, %v1598, 0.0
  %1603 = vadd.xlane.f32.xlu0 %v1602
  %v1604 = vpop.xlane.xlu0 %1603
  %v1605 = vrcp.pop %v1601
  %v1606 = vrcp.pop %v1604
  %v1607 = vmul.f32 %v1596, %v1605
  %v1608 = vmul.f32 %v1598, %v1606
  %1609 = vrot.lane.b32.xlu0 %v618, 40
  %v1610 = vpop.permute.xlu0 %1609
  %1611 = vrot.lane.b32.xlu0 %v623, 40
  %v1612 = vpop.permute.xlu0 %1611
  %v1615 = vsel %vm724, %v1607, 0
  %v1618 = vsel %vm724, %v1608, 0
  %v1620 = vsel %vm759, %v1612, 0
  %1622 = vmatprep.subr.mxu0 0.0
  %1623 = vmatpush1.msra.mxu0 %v1610
  %1624 = vmatprep.subr.mxu0 0.0
  %1625 = vmatpush1.msra.mxu0 %v1620
  %1626 = vmatprep.subr.mxu0 0.0
  %1627 = vmatpush1.msra.mxu0 0.0
  %1628 = vmatprep.subr.mxu0 0.0
  %1629 = vmatpush1.msra.mxu0 0.0
  %1630 = vmatprep.subr.mxu0 0.0
  %1631 = vmatpush1.msra.mxu0 0.0
  %1632 = vmatprep.subr.mxu0 0.0
  %1633 = vmatpush1.msra.mxu0 0.0
  %1634 = vmatprep.subr.mxu0 0.0
  %1635 = vmatpush1.msra.mxu0 0.0
  %1636 = vmatprep.subr.mxu0 0.0
  %1637 = vmatpush1.msra.mxu0 0.0
  %1638 = vmatprep.subr.mxu0 0.0
  %1639 = vmatpush1.msra.mxu0 0.0
  %1640 = vmatprep.subr.mxu0 0.0
  %1641 = vmatpush1.msra.mxu0 0.0
  %1642 = vmatprep.subr.mxu0 0.0
  %1643 = vmatpush1.msra.mxu0 0.0
  %1644 = vmatprep.subr.mxu0 0.0
  %1645 = vmatpush1.msra.mxu0 0.0
  %1646 = vmatprep.subr.mxu0 0.0
  %1647 = vmatpush1.msra.mxu0 0.0
  %1648 = vmatprep.subr.mxu0 0.0
  %1649 = vmatpush1.msra.mxu0 0.0
  %1650 = vmatprep.subr.mxu0 0.0
  %1651 = vmatpush1.msra.mxu0 0.0
  %1652 = vmatprep.subr.mxu0 0.0
  %1653 = vmatpush1.msra.mxu0 0.0
  %1654 = vmatprep.subr.mxu0 0.0
  %1655 = vmatpush1.msra.mxu0 0.0
  %1656 = vmatprep.subr.mxu0 0.0
  %1657 = vmatpush1.msra.mxu0 0.0
  %1658 = vmatprep.subr.mxu0 0.0
  %1659 = vmatpush1.msra.mxu0 0.0
  %1660 = vmatprep.subr.mxu0 0.0
  %1661 = vmatpush1.msra.mxu0 0.0
  %1662 = vmatprep.subr.mxu0 0.0
  %1663 = vmatpush1.msra.mxu0 0.0
  %1664 = vmatprep.subr.mxu0 0.0
  %1665 = vmatpush1.msra.mxu0 0.0
  %1666 = vmatprep.subr.mxu0 0.0
  %1667 = vmatpush1.msra.mxu0 0.0
  %1668 = vmatprep.subr.mxu0 0.0
  %1669 = vmatpush1.msra.mxu0 0.0
  %1670 = vmatprep.subr.mxu0 0.0
  %1671 = vmatpush1.msra.mxu0 0.0
  %1672 = vmatprep.subr.mxu0 0.0
  %1673 = vmatpush1.msra.mxu0 0.0
  %1674 = vmatprep.subr.mxu0 0.0
  %1675 = vmatpush1.msra.mxu0 0.0
  %1676 = vmatprep.subr.mxu0 0.0
  %1677 = vmatpush1.msra.mxu0 0.0
  %1678 = vmatprep.subr.mxu0 0.0
  %1679 = vmatpush1.msra.mxu0 0.0
  %1680 = vmatprep.subr.mxu0 0.0
  %1681 = vmatpush1.msra.mxu0 0.0
  %1682 = vmatprep.subr.mxu0 0.0
  %1683 = vmatpush1.msra.mxu0 0.0
  %1684 = vmatprep.subr.mxu0 0.0
  %1685 = vmatpush1.msra.mxu0 0.0
  %1686 = vmatprep.mubr.f32.mxu0 0.0
  %1687 = vmatmul.mubr.f32.gmra.mrb[0].mxu0 %v1615
  %v1688 = vpop.f32.mrb[0].mxu0
  %v1689 = vadd.f32 0.0, %v1688
  %v1690 = vpop.f32.mrb[0].mxu0
  %1691 = vmatprep.mubr.f32.mxu0 0.0
  %1692 = vmatmul.mubr.f32.gmra.mrb[0].mxu0 %v1618
  %v1693 = vpop.f32.mrb[0].mxu0
  %v1694 = vadd.f32 0.0, %v1693
  %v1695 = vpop.f32.mrb[0].mxu0
  %1696 = vdwg.mxu0
  %v1698 = vsel %vm636, %v1689, 0
  %v1701 = vsel %vm636, %v1694, 0
  %1703 = vmatprep.subr.mxu0 0.0
  %1704 = vmatpush1.msra.mxu0 %v629
  %1705 = vmatprep.subr.mxu0 0.0
  %1706 = vmatpush1.msra.mxu0 0.0
  %1707 = vmatprep.subr.mxu0 0.0
  %1708 = vmatpush1.msra.mxu0 0.0
  %1709 = vmatprep.subr.mxu0 0.0
  %1710 = vmatpush1.msra.mxu0 0.0
  %1711 = vmatprep.subr.mxu0 0.0
  %1712 = vmatpush1.msra.mxu0 0.0
  %1713 = vmatprep.subr.mxu0 0.0
  %1714 = vmatpush1.msra.mxu0 0.0
  %1715 = vmatprep.subr.mxu0 0.0
  %1716 = vmatpush1.msra.mxu0 0.0
  %1717 = vmatprep.subr.mxu0 0.0
  %1718 = vmatpush1.msra.mxu0 0.0
  %1719 = vmatprep.subr.mxu0 0.0
  %1720 = vmatpush1.msra.mxu0 0.0
  %1721 = vmatprep.subr.mxu0 0.0
  %1722 = vmatpush1.msra.mxu0 0.0
  %1723 = vmatprep.subr.mxu0 0.0
  %1724 = vmatpush1.msra.mxu0 0.0
  %1725 = vmatprep.subr.mxu0 0.0
  %1726 = vmatpush1.msra.mxu0 0.0
  %1727 = vmatprep.subr.mxu0 0.0
  %1728 = vmatpush1.msra.mxu0 0.0
  %1729 = vmatprep.subr.mxu0 0.0
  %1730 = vmatpush1.msra.mxu0 0.0
  %1731 = vmatprep.subr.mxu0 0.0
  %1732 = vmatpush1.msra.mxu0 0.0
  %1733 = vmatprep.subr.mxu0 0.0
  %1734 = vmatpush1.msra.mxu0 0.0
  %1735 = vmatprep.subr.mxu0 0.0
  %1736 = vmatpush1.msra.mxu0 0.0
  %1737 = vmatprep.subr.mxu0 0.0
  %1738 = vmatpush1.msra.mxu0 0.0
  %1739 = vmatprep.subr.mxu0 0.0
  %1740 = vmatpush1.msra.mxu0 0.0
  %1741 = vmatprep.subr.mxu0 0.0
  %1742 = vmatpush1.msra.mxu0 0.0
  %1743 = vmatprep.subr.mxu0 0.0
  %1744 = vmatpush1.msra.mxu0 0.0
  %1745 = vmatprep.subr.mxu0 0.0
  %1746 = vmatpush1.msra.mxu0 0.0
  %1747 = vmatprep.subr.mxu0 0.0
  %1748 = vmatpush1.msra.mxu0 0.0
  %1749 = vmatprep.subr.mxu0 0.0
  %1750 = vmatpush1.msra.mxu0 0.0
  %1751 = vmatprep.subr.mxu0 0.0
  %1752 = vmatpush1.msra.mxu0 0.0
  %1753 = vmatprep.subr.mxu0 0.0
  %1754 = vmatpush1.msra.mxu0 0.0
  %1755 = vmatprep.subr.mxu0 0.0
  %1756 = vmatpush1.msra.mxu0 0.0
  %1757 = vmatprep.subr.mxu0 0.0
  %1758 = vmatpush1.msra.mxu0 0.0
  %1759 = vmatprep.subr.mxu0 0.0
  %1760 = vmatpush1.msra.mxu0 0.0
  %1761 = vmatprep.subr.mxu0 0.0
  %1762 = vmatpush1.msra.mxu0 0.0
  %1763 = vmatprep.subr.mxu0 0.0
  %1764 = vmatpush1.msra.mxu0 0.0
  %1765 = vmatprep.subr.mxu0 0.0
  %1766 = vmatpush1.msra.mxu0 0.0
  %1767 = vmatprep.mubr.f32.mxu0 0.0
  %1768 = vmatmul.mubr.f32.gmra.mrb[0].mxu0 %v1698
  %v1769 = vpop.f32.mrb[0].mxu0
  %v1770 = vadd.f32 0.0, %v1769
  %v1771 = vpop.f32.mrb[0].mxu0
  %1772 = vmatprep.mubr.f32.mxu0 0.0
  %1773 = vmatmul.mubr.f32.gmra.mrb[0].mxu0 %v1701
  %v1774 = vpop.f32.mrb[0].mxu0
  %v1775 = vadd.f32 0.0, %v1774
  %v1776 = vpop.f32.mrb[0].mxu0
  %1777 = vdwg.mxu0
  %v1778 = vadd.f32 %v1490, %v1770
  %v1779 = vadd.f32 %v1491, %v1775
  %v1780 = vld [vmem:[%s13] sm:$0x1]
  %v1782 = vlaneseq
  %v1783 = vshrl.u32 %v1782, 7
  %v1784 = vsub.s32 0, %v1783
  %v1785 = vrot.slane %v1780, %v1784
  %v1787 = vadd.f32 %v1778, %v1785
  %v1788 = vadd.f32 %v1779, %v1785
  %v1789 = vld [vmem:[%s14] sm:$0x1]
  %v1791 = vlaneseq
  %v1792 = vshrl.u32 %v1791, 7
  %v1793 = vsub.s32 0, %v1792
  %v1794 = vrot.slane %v1789, %v1793
  %v1796 = vmul.f32 %v1787, %v1794
  %v1797 = vmul.f32 %v1788, %v1794
  %v1798 = vadd.f32 %v483, %v1796
  %v1799 = vadd.f32 %v484, %v1797
  %v1800 = vld [vmem:[%s15] sm:$0x1]
  %v1801 = vld [vmem:[%s16] sm:$0x1]
  %v1802 = vsel %vm489, %v1798, 0.0
  %1803 = vadd.xlane.f32.xlu0 %v1802
  %v1804 = vpop.xlane.xlu0 %1803
  %v1805 = vsel %vm493, %v1799, 0.0
  %1806 = vadd.xlane.f32.xlu0 %v1805
  %v1807 = vpop.xlane.xlu0 %1806
  %v1808 = vmul.f32 %v1804, %v497
  %v1809 = vmul.f32 %v1807, %v497
  %v1810 = vsub.f32 %v1798, %v1808
  %v1811 = vsub.f32 %v1799, %v1809
  %v1812 = vmul.f32 %v1810, %v1810
  %v1813 = vmul.f32 %v1811, %v1811
  %v1814 = vsel %vm489, %v1812, 0.0
  %1815 = vadd.xlane.f32.xlu0 %v1814
  %v1816 = vpop.xlane.xlu0 %1815
  %v1817 = vsel %vm493, %v1813, 0.0
  %1818 = vadd.xlane.f32.xlu0 %v1817
  %v1819 = vpop.xlane.xlu0 %1818
  %v1820 = vmul.f32 %v1816, %v497
  %v1821 = vmul.f32 %v1819, %v497
  %v1822 = vadd.f32 %v1820, 1e-06
  %v1823 = vadd.f32 %v1821, 1e-06
  %v1824 = vrsqrt.pop %v1822
  %v1825 = vrsqrt.pop %v1823
  %v1826 = vmul.f32 %v1810, %v1824
  %v1827 = vmul.f32 %v1811, %v1825
  %v1829 = vlaneseq
  %v1830 = vshrl.u32 %v1829, 7
  %v1831 = vsub.s32 0, %v1830
  %v1832 = vrot.slane %v1800, %v1831
  %v1834 = vmul.f32 %v1826, %v1832
  %v1835 = vmul.f32 %v1827, %v1832
  %v1837 = vlaneseq
  %v1838 = vshrl.u32 %v1837, 7
  %v1839 = vsub.s32 0, %v1838
  %v1840 = vrot.slane %v1801, %v1839
  %v1842 = vadd.f32 %v1834, %v1840
  %v1843 = vadd.f32 %v1835, %v1840
  %v1844 = vld [vmem:[%s17] sm:$0xff]
  %v1845 = vld [vmem:[%s17 + $0x8] sm:$0xff]
  %v1846 = vld [vmem:[%s17 + $0x10] sm:$0xff]
  %v1847 = vld [vmem:[%s17 + $0x18] sm:$0xff]
  %v1848 = vld [vmem:[%s18] sm:$0x1]
  %v1850 = vlaneseq
  %v1851 = vshrl.u32 %v1850, 7
  %v1852 = vsub.s32 0, %v1851
  %v1853 = vrot.slane %v1848, %v1852
  %v1856 = vsel %vm489, %v1842, 0
  %v1859 = vsel %vm489, %v1843, 0
  %1861 = vmatprep.subr.mxu0 0.0
  %1862 = vmatpush1.msra.mxu0 %v1844
  %1863 = vmatprep.subr.mxu0 0.0
  %1864 = vmatpush1.msra.mxu0 %v1845
  %1865 = vmatprep.subr.mxu0 0.0
  %1866 = vmatpush1.msra.mxu0 %v1846
  %1867 = vmatprep.subr.mxu0 0.0
  %1868 = vmatpush1.msra.mxu0 %v1847
  %1869 = vmatprep.subr.mxu0 0.0
  %1870 = vmatpush1.msra.mxu0 0.0
  %1871 = vmatprep.subr.mxu0 0.0
  %1872 = vmatpush1.msra.mxu0 0.0
  %1873 = vmatprep.subr.mxu0 0.0
  %1874 = vmatpush1.msra.mxu0 0.0
  %1875 = vmatprep.subr.mxu0 0.0
  %1876 = vmatpush1.msra.mxu0 0.0
  %1877 = vmatprep.subr.mxu0 0.0
  %1878 = vmatpush1.msra.mxu0 0.0
  %1879 = vmatprep.subr.mxu0 0.0
  %1880 = vmatpush1.msra.mxu0 0.0
  %1881 = vmatprep.subr.mxu0 0.0
  %1882 = vmatpush1.msra.mxu0 0.0
  %1883 = vmatprep.subr.mxu0 0.0
  %1884 = vmatpush1.msra.mxu0 0.0
  %1885 = vmatprep.subr.mxu0 0.0
  %1886 = vmatpush1.msra.mxu0 0.0
  %1887 = vmatprep.subr.mxu0 0.0
  %1888 = vmatpush1.msra.mxu0 0.0
  %1889 = vmatprep.subr.mxu0 0.0
  %1890 = vmatpush1.msra.mxu0 0.0
  %1891 = vmatprep.subr.mxu0 0.0
  %1892 = vmatpush1.msra.mxu0 0.0
  %1893 = vmatprep.subr.mxu0 0.0
  %1894 = vmatpush1.msra.mxu0 0.0
  %1895 = vmatprep.subr.mxu0 0.0
  %1896 = vmatpush1.msra.mxu0 0.0
  %1897 = vmatprep.subr.mxu0 0.0
  %1898 = vmatpush1.msra.mxu0 0.0
  %1899 = vmatprep.subr.mxu0 0.0
  %1900 = vmatpush1.msra.mxu0 0.0
  %1901 = vmatprep.subr.mxu0 0.0
  %1902 = vmatpush1.msra.mxu0 0.0
  %1903 = vmatprep.subr.mxu0 0.0
  %1904 = vmatpush1.msra.mxu0 0.0
  %1905 = vmatprep.subr.mxu0 0.0
  %1906 = vmatpush1.msra.mxu0 0.0
  %1907 = vmatprep.subr.mxu0 0.0
  %1908 = vmatpush1.msra.mxu0 0.0
  %1909 = vmatprep.subr.mxu0 0.0
  %1910 = vmatpush1.msra.mxu0 0.0
  %1911 = vmatprep.subr.mxu0 0.0
  %1912 = vmatpush1.msra.mxu0 0.0
  %1913 = vmatprep.subr.mxu0 0.0
  %1914 = vmatpush1.msra.mxu0 0.0
  %1915 = vmatprep.subr.mxu0 0.0
  %1916 = vmatpush1.msra.mxu0 0.0
  %1917 = vmatprep.subr.mxu0 0.0
  %1918 = vmatpush1.msra.mxu0 0.0
  %1919 = vmatprep.subr.mxu0 0.0
  %1920 = vmatpush1.msra.mxu0 0.0
  %1921 = vmatprep.subr.mxu0 0.0
  %1922 = vmatpush1.msra.mxu0 0.0
  %1923 = vmatprep.subr.mxu0 0.0
  %1924 = vmatpush1.msra.mxu0 0.0
  %1925 = vmatprep.mubr.f32.mxu0 0.0
  %1926 = vmatmul.mubr.f32.gmra.mrb[0].mxu0 %v1856
  %v1927 = vpop.f32.mrb[0].mxu0
  %v1928 = vadd.f32 %v1853, %v1927
  %v1929 = vpop.f32.mrb[0].mxu0
  %1930 = vmatprep.mubr.f32.mxu0 0.0
  %1931 = vmatmul.mubr.f32.gmra.mrb[0].mxu0 %v1859
  %v1932 = vpop.f32.mrb[0].mxu0
  %v1933 = vadd.f32 %v1853, %v1932
  %v1934 = vpop.f32.mrb[0].mxu0
  %1935 = vdwg.mxu0
  %v1936 = vmul.f32 %v1928, 0.5
  %v1937 = vmul.f32 %v1933, 0.5
  %v1938 = vmul.f32 %v1928, 0.044715
  %v1939 = vmul.f32 %v1933, 0.044715
  %v1940 = vmul.f32 %v1938, %v1928
  %v1941 = vmul.f32 %v1939, %v1933
  %v1942 = vmul.f32 %v1940, %v1928
  %v1943 = vmul.f32 %v1941, %v1933
  %v1944 = vadd.f32 %v1928, %v1942
  %v1945 = vadd.f32 %v1933, %v1943
  %v1946 = vmul.f32 %v1944, 0.7978846
  %v1947 = vmul.f32 %v1945, 0.7978846
  %v1948 = vtanh.pop %v1946
  %v1949 = vtanh.pop %v1947
  %v1950 = vadd.f32 %v1948, 1.0
  %v1951 = vadd.f32 %v1949, 1.0
  %v1952 = vmul.f32 %v1936, %v1950
  %v1953 = vmul.f32 %v1937, %v1951
  %v1954 = vld [vmem:[%s19] sm:$0xff]
  %v1955 = vld [vmem:[%s19 + $0x8] sm:$0xff]
  %v1956 = vld [vmem:[%s19 + $0x10] sm:$0xff]
  %v1957 = vld [vmem:[%s19 + $0x18] sm:$0xff]
  %v1958 = vld [vmem:[%s19 + $0x20] sm:$0xff]
  %v1959 = vld [vmem:[%s19 + $0x28] sm:$0xff]
  %v1960 = vld [vmem:[%s19 + $0x30] sm:$0xff]
  %v1961 = vld [vmem:[%s19 + $0x38] sm:$0xff]
  %v1962 = vld [vmem:[%s19 + $0x40] sm:$0xff]
  %v1963 = vld [vmem:[%s19 + $0x48] sm:$0xff]
  %v1964 = vld [vmem:[%s19 + $0x50] sm:$0xff]
  %v1965 = vld [vmem:[%s19 + $0x58] sm:$0xff]
  %v1966 = vld [vmem:[%s19 + $0x60] sm:$0xff]
  %v1967 = vld [vmem:[%s19 + $0x68] sm:$0xff]
  %v1968 = vld [vmem:[%s19 + $0x70] sm:$0xff]
  %v1969 = vld [vmem:[%s19 + $0x78] sm:$0xff]
  %v1970 = vld [vmem:[%s20] sm:$0x1]
  %v1972 = vlaneseq
  %v1973 = vshrl.u32 %v1972, 7
  %v1974 = vsub.s32 0, %v1973
  %v1975 = vrot.slane %v1970, %v1974
  %1977 = vmatprep.subr.mxu0 0.0
  %1978 = vmatpush1.msra.mxu0 %v1954
  %1979 = vmatprep.subr.mxu0 0.0
  %1980 = vmatpush1.msra.mxu0 %v1955
  %1981 = vmatprep.subr.mxu0 0.0
  %1982 = vmatpush1.msra.mxu0 %v1956
  %1983 = vmatprep.subr.mxu0 0.0
  %1984 = vmatpush1.msra.mxu0 %v1957
  %1985 = vmatprep.subr.mxu0 0.0
  %1986 = vmatpush1.msra.mxu0 %v1958
  %1987 = vmatprep.subr.mxu0 0.0
  %1988 = vmatpush1.msra.mxu0 %v1959
  %1989 = vmatprep.subr.mxu0 0.0
  %1990 = vmatpush1.msra.mxu0 %v1960
  %1991 = vmatprep.subr.mxu0 0.0
  %1992 = vmatpush1.msra.mxu0 %v1961
  %1993 = vmatprep.subr.mxu0 0.0
  %1994 = vmatpush1.msra.mxu0 %v1962
  %1995 = vmatprep.subr.mxu0 0.0
  %1996 = vmatpush1.msra.mxu0 %v1963
  %1997 = vmatprep.subr.mxu0 0.0
  %1998 = vmatpush1.msra.mxu0 %v1964
  %1999 = vmatprep.subr.mxu0 0.0
  %2000 = vmatpush1.msra.mxu0 %v1965
  %2001 = vmatprep.subr.mxu0 0.0
  %2002 = vmatpush1.msra.mxu0 %v1966
  %2003 = vmatprep.subr.mxu0 0.0
  %2004 = vmatpush1.msra.mxu0 %v1967
  %2005 = vmatprep.subr.mxu0 0.0
  %2006 = vmatpush1.msra.mxu0 %v1968
  %2007 = vmatprep.subr.mxu0 0.0
  %2008 = vmatpush1.msra.mxu0 %v1969
  %2009 = vmatprep.subr.mxu0 0.0
  %2010 = vmatpush1.msra.mxu0 0.0
  %2011 = vmatprep.subr.mxu0 0.0
  %2012 = vmatpush1.msra.mxu0 0.0
  %2013 = vmatprep.subr.mxu0 0.0
  %2014 = vmatpush1.msra.mxu0 0.0
  %2015 = vmatprep.subr.mxu0 0.0
  %2016 = vmatpush1.msra.mxu0 0.0
  %2017 = vmatprep.subr.mxu0 0.0
  %2018 = vmatpush1.msra.mxu0 0.0
  %2019 = vmatprep.subr.mxu0 0.0
  %2020 = vmatpush1.msra.mxu0 0.0
  %2021 = vmatprep.subr.mxu0 0.0
  %2022 = vmatpush1.msra.mxu0 0.0
  %2023 = vmatprep.subr.mxu0 0.0
  %2024 = vmatpush1.msra.mxu0 0.0
  %2025 = vmatprep.subr.mxu0 0.0
  %2026 = vmatpush1.msra.mxu0 0.0
  %2027 = vmatprep.subr.mxu0 0.0
  %2028 = vmatpush1.msra.mxu0 0.0
  %2029 = vmatprep.subr.mxu0 0.0
  %2030 = vmatpush1.msra.mxu0 0.0
  %2031 = vmatprep.subr.mxu0 0.0
  %2032 = vmatpush1.msra.mxu0 0.0
  %2033 = vmatprep.subr.mxu0 0.0
  %2034 = vmatpush1.msra.mxu0 0.0
  %2035 = vmatprep.subr.mxu0 0.0
  %2036 = vmatpush1.msra.mxu0 0.0
  %2037 = vmatprep.subr.mxu0 0.0
  %2038 = vmatpush1.msra.mxu0 0.0
  %2039 = vmatprep.subr.mxu0 0.0
  %2040 = vmatpush1.msra.mxu0 0.0
  %2041 = vmatprep.mubr.f32.mxu0 0.0
  %2042 = vmatmul.mubr.f32.gmra.mrb[0].mxu0 %v1952
  %v2043 = vpop.f32.mrb[0].mxu0
  %v2044 = vadd.f32 %v1975, %v2043
  %v2045 = vpop.f32.mrb[0].mxu0
  %2046 = vmatprep.mubr.f32.mxu0 0.0
  %2047 = vmatmul.mubr.f32.gmra.mrb[0].mxu0 %v1953
  %v2048 = vpop.f32.mrb[0].mxu0
  %v2049 = vadd.f32 %v1975, %v2048
  %v2050 = vpop.f32.mrb[0].mxu0
  %2051 = vdwg.mxu0
  %v2052 = vld [vmem:[%s21] sm:$0x1]
  %v2054 = vlaneseq
  %v2055 = vshrl.u32 %v2054, 7
  %v2056 = vsub.s32 0, %v2055
  %v2057 = vrot.slane %v2052, %v2056
  %v2059 = vmul.f32 %v2044, %v2057
  %v2060 = vmul.f32 %v2049, %v2057
  %v2061 = vadd.f32 %v1798, %v2059
  %v2062 = vadd.f32 %v1799, %v2060
  %s2063 = scalar_lea.vmem %s8, 1
  %v2064 = vld [vmem:[%s2063] sm:$0x1]
  %s2065 = scalar_lea.vmem %s9, 1
  %v2066 = vld [vmem:[%s2065] sm:$0x1]
  %v2067 = vsel %vm489, %v2061, 0.0
  %2068 = vadd.xlane.f32.xlu0 %v2067
  %v2069 = vpop.xlane.xlu0 %2068
  %v2070 = vsel %vm493, %v2062, 0.0
  %2071 = vadd.xlane.f32.xlu0 %v2070
  %v2072 = vpop.xlane.xlu0 %2071
  %v2073 = vmul.f32 %v2069, %v497
  %v2074 = vmul.f32 %v2072, %v497
  %v2075 = vsub.f32 %v2061, %v2073
  %v2076 = vsub.f32 %v2062, %v2074
  %v2077 = vmul.f32 %v2075, %v2075
  %v2078 = vmul.f32 %v2076, %v2076
  %v2079 = vsel %vm489, %v2077, 0.0
  %2080 = vadd.xlane.f32.xlu0 %v2079
  %v2081 = vpop.xlane.xlu0 %2080
  %v2082 = vsel %vm493, %v2078, 0.0
  %2083 = vadd.xlane.f32.xlu0 %v2082
  %v2084 = vpop.xlane.xlu0 %2083
  %v2085 = vmul.f32 %v2081, %v497
  %v2086 = vmul.f32 %v2084, %v497
  %v2087 = vadd.f32 %v2085, 1e-06
  %v2088 = vadd.f32 %v2086, 1e-06
  %v2089 = vrsqrt.pop %v2087
  %v2090 = vrsqrt.pop %v2088
  %v2091 = vmul.f32 %v2075, %v2089
  %v2092 = vmul.f32 %v2076, %v2090
  %v2094 = vlaneseq
  %v2095 = vshrl.u32 %v2094, 7
  %v2096 = vsub.s32 0, %v2095
  %v2097 = vrot.slane %v2064, %v2096
  %v2099 = vmul.f32 %v2091, %v2097
  %v2100 = vmul.f32 %v2092, %v2097
  %v2102 = vlaneseq
  %v2103 = vshrl.u32 %v2102, 7
  %v2104 = vsub.s32 0, %v2103
  %v2105 = vrot.slane %v2066, %v2104
  %v2107 = vadd.f32 %v2099, %v2105
  %v2108 = vadd.f32 %v2100, %v2105
  %s2109 = scalar_lea.vmem %s10, 32
  %v2110 = vld [vmem:[%s2109] sm:$0xff]
  %v2111 = vld [vmem:[%s2109 + $0x8] sm:$0xff]
  %v2112 = vld [vmem:[%s2109 + $0x10] sm:$0xff]
  %v2113 = vld [vmem:[%s2109 + $0x18] sm:$0xff]
  %s2114 = scalar_lea.vmem %s11, 1
  %v2115 = vld [vmem:[%s2114] sm:$0x1]
  %v2117 = vlaneseq
  %v2118 = vshrl.u32 %v2117, 7
  %v2119 = vsub.s32 0, %v2118
  %v2120 = vrot.slane %v2115, %v2119
  %v2123 = vsel %vm489, %v2107, 0
  %v2126 = vsel %vm489, %v2108, 0
  %2128 = vmatprep.subr.mxu0 0.0
  %2129 = vmatpush1.msra.mxu0 %v2110
  %2130 = vmatprep.subr.mxu0 0.0
  %2131 = vmatpush1.msra.mxu0 %v2111
  %2132 = vmatprep.subr.mxu0 0.0
  %2133 = vmatpush1.msra.mxu0 %v2112
  %2134 = vmatprep.subr.mxu0 0.0
  %2135 = vmatpush1.msra.mxu0 %v2113
  %2136 = vmatprep.subr.mxu0 0.0
  %2137 = vmatpush1.msra.mxu0 0.0
  %2138 = vmatprep.subr.mxu0 0.0
  %2139 = vmatpush1.msra.mxu0 0.0
  %2140 = vmatprep.subr.mxu0 0.0
  %2141 = vmatpush1.msra.mxu0 0.0
  %2142 = vmatprep.subr.mxu0 0.0
  %2143 = vmatpush1.msra.mxu0 0.0
  %2144 = vmatprep.subr.mxu0 0.0
  %2145 = vmatpush1.msra.mxu0 0.0
  %2146 = vmatprep.subr.mxu0 0.0
  %2147 = vmatpush1.msra.mxu0 0.0
  %2148 = vmatprep.subr.mxu0 0.0
  %2149 = vmatpush1.msra.mxu0 0.0
  %2150 = vmatprep.subr.mxu0 0.0
  %2151 = vmatpush1.msra.mxu0 0.0
  %2152 = vmatprep.subr.mxu0 0.0
  %2153 = vmatpush1.msra.mxu0 0.0
  %2154 = vmatprep.subr.mxu0 0.0
  %2155 = vmatpush1.msra.mxu0 0.0
  %2156 = vmatprep.subr.mxu0 0.0
  %2157 = vmatpush1.msra.mxu0 0.0
  %2158 = vmatprep.subr.mxu0 0.0
  %2159 = vmatpush1.msra.mxu0 0.0
  %2160 = vmatprep.subr.mxu0 0.0
  %2161 = vmatpush1.msra.mxu0 0.0
  %2162 = vmatprep.subr.mxu0 0.0
  %2163 = vmatpush1.msra.mxu0 0.0
  %2164 = vmatprep.subr.mxu0 0.0
  %2165 = vmatpush1.msra.mxu0 0.0
  %2166 = vmatprep.subr.mxu0 0.0
  %2167 = vmatpush1.msra.mxu0 0.0
  %2168 = vmatprep.subr.mxu0 0.0
  %2169 = vmatpush1.msra.mxu0 0.0
  %2170 = vmatprep.subr.mxu0 0.0
  %2171 = vmatpush1.msra.mxu0 0.0
  %2172 = vmatprep.subr.mxu0 0.0
  %2173 = vmatpush1.msra.mxu0 0.0
  %2174 = vmatprep.subr.mxu0 0.0
  %2175 = vmatpush1.msra.mxu0 0.0
  %2176 = vmatprep.subr.mxu0 0.0
  %2177 = vmatpush1.msra.mxu0 0.0
  %2178 = vmatprep.subr.mxu0 0.0
  %2179 = vmatpush1.msra.mxu0 0.0
  %2180 = vmatprep.subr.mxu0 0.0
  %2181 = vmatpush1.msra.mxu0 0.0
  %2182 = vmatprep.subr.mxu0 0.0
  %2183 = vmatpush1.msra.mxu0 0.0
  %2184 = vmatprep.subr.mxu0 0.0
  %2185 = vmatpush1.msra.mxu0 0.0
  %2186 = vmatprep.subr.mxu0 0.0
  %2187 = vmatpush1.msra.mxu0 0.0
  %2188 = vmatprep.subr.mxu0 0.0
  %2189 = vmatpush1.msra.mxu0 0.0
  %2190 = vmatprep.subr.mxu0 0.0
  %2191 = vmatpush1.msra.mxu0 0.0
  %2192 = vmatprep.mubr.f32.mxu0 0.0
  %2193 = vmatmul.mubr.f32.gmra.mrb[0].mxu0 %v2123
  %v2194 = vpop.f32.mrb[0].mxu0
  %v2195 = vadd.f32 %v2120, %v2194
  %v2196 = vpop.f32.mrb[0].mxu0
  %2197 = vmatprep.mubr.f32.mxu0 0.0
  %2198 = vmatmul.mubr.f32.gmra.mrb[0].mxu0 %v2126
  %v2199 = vpop.f32.mrb[0].mxu0
  %v2200 = vadd.f32 %v2120, %v2199
  %v2201 = vpop.f32.mrb[0].mxu0
  %2202 = vdwg.mxu0
  %s2203 = scalar_lea.vmem %s12, 32
  %v2204 = vld [vmem:[%s2203] sm:$0xff]
  %v2205 = vld [vmem:[%s2203 + $0x8] sm:$0xff]
  %v2206 = vld [vmem:[%s2203 + $0x10] sm:$0xff]
  %v2207 = vld [vmem:[%s2203 + $0x18] sm:$0xff]
  %2210 = vrot.lane.b32.xlu0 %v2195, 96
  %v2211 = vpop.permute.xlu0 %2210
  %2212 = vrot.lane.b32.xlu0 %v2200, 96
  %v2213 = vpop.permute.xlu0 %2212
  %v2214 = vsel %vm636, %v2195, 0
  %v2216 = vsel %vm636, %v2200, 0
  %v2218 = vsel %vm636, %v2211, 0
  %v2220 = vsel %vm636, %v2213, 0
  %2222 = vmatprep.subr.mxu0 0.0
  %2223 = vmatpush1.xpose.msra.mxu0 %v2218
  %2224 = vmatprep.subr.mxu0 0.0
  %2225 = vmatpush1.xpose.msra.mxu0 %v2220
  %2226 = vmatprep.subr.mxu0 0.0
  %2227 = vmatpush1.xpose.msra.mxu0 0.0
  %2228 = vmatprep.subr.mxu0 0.0
  %2229 = vmatpush1.xpose.msra.mxu0 0.0
  %2230 = vmatprep.subr.mxu0 0.0
  %2231 = vmatpush1.xpose.msra.mxu0 0.0
  %2232 = vmatprep.subr.mxu0 0.0
  %2233 = vmatpush1.xpose.msra.mxu0 0.0
  %2234 = vmatprep.subr.mxu0 0.0
  %2235 = vmatpush1.xpose.msra.mxu0 0.0
  %2236 = vmatprep.subr.mxu0 0.0
  %2237 = vmatpush1.xpose.msra.mxu0 0.0
  %2238 = vmatprep.subr.mxu0 0.0
  %2239 = vmatpush1.xpose.msra.mxu0 0.0
  %2240 = vmatprep.subr.mxu0 0.0
  %2241 = vmatpush1.xpose.msra.mxu0 0.0
  %2242 = vmatprep.subr.mxu0 0.0
  %2243 = vmatpush1.xpose.msra.mxu0 0.0
  %2244 = vmatprep.subr.mxu0 0.0
  %2245 = vmatpush1.xpose.msra.mxu0 0.0
  %2246 = vmatprep.subr.mxu0 0.0
  %2247 = vmatpush1.xpose.msra.mxu0 0.0
  %2248 = vmatprep.subr.mxu0 0.0
  %2249 = vmatpush1.xpose.msra.mxu0 0.0
  %2250 = vmatprep.subr.mxu0 0.0
  %2251 = vmatpush1.xpose.msra.mxu0 0.0
  %2252 = vmatprep.subr.mxu0 0.0
  %2253 = vmatpush1.xpose.msra.mxu0 0.0
  %2254 = vmatprep.subr.mxu0 0.0
  %2255 = vmatpush1.xpose.msra.mxu0 0.0
  %2256 = vmatprep.subr.mxu0 0.0
  %2257 = vmatpush1.xpose.msra.mxu0 0.0
  %2258 = vmatprep.subr.mxu0 0.0
  %2259 = vmatpush1.xpose.msra.mxu0 0.0
  %2260 = vmatprep.subr.mxu0 0.0
  %2261 = vmatpush1.xpose.msra.mxu0 0.0
  %2262 = vmatprep.subr.mxu0 0.0
  %2263 = vmatpush1.xpose.msra.mxu0 0.0
  %2264 = vmatprep.subr.mxu0 0.0
  %2265 = vmatpush1.xpose.msra.mxu0 0.0
  %2266 = vmatprep.subr.mxu0 0.0
  %2267 = vmatpush1.xpose.msra.mxu0 0.0
  %2268 = vmatprep.subr.mxu0 0.0
  %2269 = vmatpush1.xpose.msra.mxu0 0.0
  %2270 = vmatprep.subr.mxu0 0.0
  %2271 = vmatpush1.xpose.msra.mxu0 0.0
  %2272 = vmatprep.subr.mxu0 0.0
  %2273 = vmatpush1.xpose.msra.mxu0 0.0
  %2274 = vmatprep.subr.mxu0 0.0
  %2275 = vmatpush1.xpose.msra.mxu0 0.0
  %2276 = vmatprep.subr.mxu0 0.0
  %2277 = vmatpush1.xpose.msra.mxu0 0.0
  %2278 = vmatprep.subr.mxu0 0.0
  %2279 = vmatpush1.xpose.msra.mxu0 0.0
  %2280 = vmatprep.subr.mxu0 0.0
  %2281 = vmatpush1.xpose.msra.mxu0 0.0
  %2282 = vmatprep.subr.mxu0 0.0
  %2283 = vmatpush1.xpose.msra.mxu0 0.0
  %2284 = vmatprep.subr.mxu0 0.0
  %2285 = vmatpush1.xpose.msra.mxu0 0.0
  %2286 = vmatprep.mubr.f32.mxu0 0.0
  %2287 = vmatmul.mubr.f32.gmra.mrb[0].mxu0 %v2214
  %v2288 = vpop.f32.mrb[0].mxu0
  %v2289 = vadd.f32 0.0, %v2288
  %v2290 = vpop.f32.mrb[0].mxu0
  %2291 = vmatprep.mubr.f32.mxu0 0.0
  %2292 = vmatmul.mubr.f32.gmra.mrb[0].mxu0 %v2216
  %v2293 = vpop.f32.mrb[0].mxu0
  %v2294 = vadd.f32 0.0, %v2293
  %v2295 = vpop.f32.mrb[0].mxu0
  %2296 = vdwg.mxu0
  %v2297 = vmul.f32 %v2289, 0.35355338
  %v2298 = vmul.f32 %v2294, 0.35355338
  %v2299 = vadd.f32 %v2297, %v485
  %v2300 = vadd.f32 %v2298, %v486
  %v2301 = vsel %vm724, %v2299, -inf
  %2302 = vmax.xlane.f32.xlu0 %v2301
  %v2303 = vpop.xlane.xlu0 %2302
  %v2304 = vsel %vm728, %v2300, -inf
  %2305 = vmax.xlane.f32.xlu0 %v2304
  %v2306 = vpop.xlane.xlu0 %2305
  %v2307 = vsub.f32 %v2299, %v2303
  %v2308 = vsub.f32 %v2300, %v2306
  %v2309 = vmul.f32 %v2307, 1.442695
  %v2310 = vpow.pop %v2309
  %v2311 = vmul.f32 %v2308, 1.442695
  %v2312 = vpow.pop %v2311
  %v2313 = vsel %vm724, %v2310, 0.0
  %2314 = vadd.xlane.f32.xlu0 %v2313
  %v2315 = vpop.xlane.xlu0 %2314
  %v2316 = vsel %vm728, %v2312, 0.0
  %2317 = vadd.xlane.f32.xlu0 %v2316
  %v2318 = vpop.xlane.xlu0 %2317
  %v2319 = vrcp.pop %v2315
  %v2320 = vrcp.pop %v2318
  %v2321 = vmul.f32 %v2310, %v2319
  %v2322 = vmul.f32 %v2312, %v2320
  %2323 = vrot.lane.b32.xlu0 %v2195, 64
  %v2324 = vpop.permute.xlu0 %2323
  %2325 = vrot.lane.b32.xlu0 %v2200, 64
  %v2326 = vpop.permute.xlu0 %2325
  %v2329 = vsel %vm724, %v2321, 0
  %v2332 = vsel %vm724, %v2322, 0
  %v2334 = vsel %vm759, %v2326, 0
  %2336 = vmatprep.subr.mxu0 0.0
  %2337 = vmatpush1.msra.mxu0 %v2324
  %2338 = vmatprep.subr.mxu0 0.0
  %2339 = vmatpush1.msra.mxu0 %v2334
  %2340 = vmatprep.subr.mxu0 0.0
  %2341 = vmatpush1.msra.mxu0 0.0
  %2342 = vmatprep.subr.mxu0 0.0
  %2343 = vmatpush1.msra.mxu0 0.0
  %2344 = vmatprep.subr.mxu0 0.0
  %2345 = vmatpush1.msra.mxu0 0.0
  %2346 = vmatprep.subr.mxu0 0.0
  %2347 = vmatpush1.msra.mxu0 0.0
  %2348 = vmatprep.subr.mxu0 0.0
  %2349 = vmatpush1.msra.mxu0 0.0
  %2350 = vmatprep.subr.mxu0 0.0
  %2351 = vmatpush1.msra.mxu0 0.0
  %2352 = vmatprep.subr.mxu0 0.0
  %2353 = vmatpush1.msra.mxu0 0.0
  %2354 = vmatprep.subr.mxu0 0.0
  %2355 = vmatpush1.msra.mxu0 0.0
  %2356 = vmatprep.subr.mxu0 0.0
  %2357 = vmatpush1.msra.mxu0 0.0
  %2358 = vmatprep.subr.mxu0 0.0
  %2359 = vmatpush1.msra.mxu0 0.0
  %2360 = vmatprep.subr.mxu0 0.0
  %2361 = vmatpush1.msra.mxu0 0.0
  %2362 = vmatprep.subr.mxu0 0.0
  %2363 = vmatpush1.msra.mxu0 0.0
  %2364 = vmatprep.subr.mxu0 0.0
  %2365 = vmatpush1.msra.mxu0 0.0
  %2366 = vmatprep.subr.mxu0 0.0
  %2367 = vmatpush1.msra.mxu0 0.0
  %2368 = vmatprep.subr.mxu0 0.0
  %2369 = vmatpush1.msra.mxu0 0.0
  %2370 = vmatprep.subr.mxu0 0.0
  %2371 = vmatpush1.msra.mxu0 0.0
  %2372 = vmatprep.subr.mxu0 0.0
  %2373 = vmatpush1.msra.mxu0 0.0
  %2374 = vmatprep.subr.mxu0 0.0
  %2375 = vmatpush1.msra.mxu0 0.0
  %2376 = vmatprep.subr.mxu0 0.0
  %2377 = vmatpush1.msra.mxu0 0.0
  %2378 = vmatprep.subr.mxu0 0.0
  %2379 = vmatpush1.msra.mxu0 0.0
  %2380 = vmatprep.subr.mxu0 0.0
  %2381 = vmatpush1.msra.mxu0 0.0
  %2382 = vmatprep.subr.mxu0 0.0
  %2383 = vmatpush1.msra.mxu0 0.0
  %2384 = vmatprep.subr.mxu0 0.0
  %2385 = vmatpush1.msra.mxu0 0.0
  %2386 = vmatprep.subr.mxu0 0.0
  %2387 = vmatpush1.msra.mxu0 0.0
  %2388 = vmatprep.subr.mxu0 0.0
  %2389 = vmatpush1.msra.mxu0 0.0
  %2390 = vmatprep.subr.mxu0 0.0
  %2391 = vmatpush1.msra.mxu0 0.0
  %2392 = vmatprep.subr.mxu0 0.0
  %2393 = vmatpush1.msra.mxu0 0.0
  %2394 = vmatprep.subr.mxu0 0.0
  %2395 = vmatpush1.msra.mxu0 0.0
  %2396 = vmatprep.subr.mxu0 0.0
  %2397 = vmatpush1.msra.mxu0 0.0
  %2398 = vmatprep.subr.mxu0 0.0
  %2399 = vmatpush1.msra.mxu0 0.0
  %2400 = vmatprep.mubr.f32.mxu0 0.0
  %2401 = vmatmul.mubr.f32.gmra.mrb[0].mxu0 %v2329
  %v2402 = vpop.f32.mrb[0].mxu0
  %v2403 = vadd.f32 0.0, %v2402
  %v2404 = vpop.f32.mrb[0].mxu0
  %2405 = vmatprep.mubr.f32.mxu0 0.0
  %2406 = vmatmul.mubr.f32.gmra.mrb[0].mxu0 %v2332
  %v2407 = vpop.f32.mrb[0].mxu0
  %v2408 = vadd.f32 0.0, %v2407
  %v2409 = vpop.f32.mrb[0].mxu0
  %2410 = vdwg.mxu0
  %2411 = vrot.lane.b32.xlu0 %v2195, 120
  %v2412 = vpop.permute.xlu0 %2411
  %2413 = vrot.lane.b32.xlu0 %v2200, 120
  %v2414 = vpop.permute.xlu0 %2413
  %2415 = vrot.lane.b32.xlu0 %v2195, 88
  %v2416 = vpop.permute.xlu0 %2415
  %2417 = vrot.lane.b32.xlu0 %v2200, 88
  %v2418 = vpop.permute.xlu0 %2417
  %v2419 = vsel %vm636, %v2412, 0
  %v2421 = vsel %vm636, %v2414, 0
  %v2423 = vsel %vm636, %v2416, 0
  %v2425 = vsel %vm636, %v2418, 0
  %2427 = vmatprep.subr.mxu0 0.0
  %2428 = vmatpush1.xpose.msra.mxu0 %v2423
  %2429 = vmatprep.subr.mxu0 0.0
  %2430 = vmatpush1.xpose.msra.mxu0 %v2425
  %2431 = vmatprep.subr.mxu0 0.0
  %2432 = vmatpush1.xpose.msra.mxu0 0.0
  %2433 = vmatprep.subr.mxu0 0.0
  %2434 = vmatpush1.xpose.msra.mxu0 0.0
  %2435 = vmatprep.subr.mxu0 0.0
  %2436 = vmatpush1.xpose.msra.mxu0 0.0
  %2437 = vmatprep.subr.mxu0 0.0
  %2438 = vmatpush1.xpose.msra.mxu0 0.0
  %2439 = vmatprep.subr.mxu0 0.0
  %2440 = vmatpush1.xpose.msra.mxu0 0.0
  %2441 = vmatprep.subr.mxu0 0.0
  %2442 = vmatpush1.xpose.msra.mxu0 0.0
  %2443 = vmatprep.subr.mxu0 0.0
  %2444 = vmatpush1.xpose.msra.mxu0 0.0
  %2445 = vmatprep.subr.mxu0 0.0
  %2446 = vmatpush1.xpose.msra.mxu0 0.0
  %2447 = vmatprep.subr.mxu0 0.0
  %2448 = vmatpush1.xpose.msra.mxu0 0.0
  %2449 = vmatprep.subr.mxu0 0.0
  %2450 = vmatpush1.xpose.msra.mxu0 0.0
  %2451 = vmatprep.subr.mxu0 0.0
  %2452 = vmatpush1.xpose.msra.mxu0 0.0
  %2453 = vmatprep.subr.mxu0 0.0
  %2454 = vmatpush1.xpose.msra.mxu0 0.0
  %2455 = vmatprep.subr.mxu0 0.0
  %2456 = vmatpush1.xpose.msra.mxu0 0.0
  %2457 = vmatprep.subr.mxu0 0.0
  %2458 = vmatpush1.xpose.msra.mxu0 0.0
  %2459 = vmatprep.subr.mxu0 0.0
  %2460 = vmatpush1.xpose.msra.mxu0 0.0
  %2461 = vmatprep.subr.mxu0 0.0
  %2462 = vmatpush1.xpose.msra.mxu0 0.0
  %2463 = vmatprep.subr.mxu0 0.0
  %2464 = vmatpush1.xpose.msra.mxu0 0.0
  %2465 = vmatprep.subr.mxu0 0.0
  %2466 = vmatpush1.xpose.msra.mxu0 0.0
  %2467 = vmatprep.subr.mxu0 0.0
  %2468 = vmatpush1.xpose.msra.mxu0 0.0
  %2469 = vmatprep.subr.mxu0 0.0
  %2470 = vmatpush1.xpose.msra.mxu0 0.0
  %2471 = vmatprep.subr.mxu0 0.0
  %2472 = vmatpush1.xpose.msra.mxu0 0.0
  %2473 = vmatprep.subr.mxu0 0.0
  %2474 = vmatpush1.xpose.msra.mxu0 0.0
  %2475 = vmatprep.subr.mxu0 0.0
  %2476 = vmatpush1.xpose.msra.mxu0 0.0
  %2477 = vmatprep.subr.mxu0 0.0
  %2478 = vmatpush1.xpose.msra.mxu0 0.0
  %2479 = vmatprep.subr.mxu0 0.0
  %2480 = vmatpush1.xpose.msra.mxu0 0.0
  %2481 = vmatprep.subr.mxu0 0.0
  %2482 = vmatpush1.xpose.msra.mxu0 0.0
  %2483 = vmatprep.subr.mxu0 0.0
  %2484 = vmatpush1.xpose.msra.mxu0 0.0
  %2485 = vmatprep.subr.mxu0 0.0
  %2486 = vmatpush1.xpose.msra.mxu0 0.0
  %2487 = vmatprep.subr.mxu0 0.0
  %2488 = vmatpush1.xpose.msra.mxu0 0.0
  %2489 = vmatprep.subr.mxu0 0.0
  %2490 = vmatpush1.xpose.msra.mxu0 0.0
  %2491 = vmatprep.mubr.f32.mxu0 0.0
  %2492 = vmatmul.mubr.f32.gmra.mrb[0].mxu0 %v2419
  %v2493 = vpop.f32.mrb[0].mxu0
  %v2494 = vadd.f32 0.0, %v2493
  %v2495 = vpop.f32.mrb[0].mxu0
  %2496 = vmatprep.mubr.f32.mxu0 0.0
  %2497 = vmatmul.mubr.f32.gmra.mrb[0].mxu0 %v2421
  %v2498 = vpop.f32.mrb[0].mxu0
  %v2499 = vadd.f32 0.0, %v2498
  %v2500 = vpop.f32.mrb[0].mxu0
  %2501 = vdwg.mxu0
  %v2502 = vmul.f32 %v2494, 0.35355338
  %v2503 = vmul.f32 %v2499, 0.35355338
  %v2504 = vadd.f32 %v2502, %v485
  %v2505 = vadd.f32 %v2503, %v486
  %v2506 = vsel %vm724, %v2504, -inf
  %2507 = vmax.xlane.f32.xlu0 %v2506
  %v2508 = vpop.xlane.xlu0 %2507
  %v2509 = vsel %vm728, %v2505, -inf
  %2510 = vmax.xlane.f32.xlu0 %v2509
  %v2511 = vpop.xlane.xlu0 %2510
  %v2512 = vsub.f32 %v2504, %v2508
  %v2513 = vsub.f32 %v2505, %v2511
  %v2514 = vmul.f32 %v2512, 1.442695
  %v2515 = vpow.pop %v2514
  %v2516 = vmul.f32 %v2513, 1.442695
  %v2517 = vpow.pop %v2516
  %v2518 = vsel %vm724, %v2515, 0.0
  %2519 = vadd.xlane.f32.xlu0 %v2518
  %v2520 = vpop.xlane.xlu0 %2519
  %v2521 = vsel %vm728, %v2517, 0.0
  %2522 = vadd.xlane.f32.xlu0 %v2521
  %v2523 = vpop.xlane.xlu0 %2522
  %v2524 = vrcp.pop %v2520
  %v2525 = vrcp.pop %v2523
  %v2526 = vmul.f32 %v2515, %v2524
  %v2527 = vmul.f32 %v2517, %v2525
  %2528 = vrot.lane.b32.xlu0 %v2195, 56
  %v2529 = vpop.permute.xlu0 %2528
  %2530 = vrot.lane.b32.xlu0 %v2200, 56
  %v2531 = vpop.permute.xlu0 %2530
  %v2534 = vsel %vm724, %v2526, 0
  %v2537 = vsel %vm724, %v2527, 0
  %v2539 = vsel %vm759, %v2531, 0
  %2541 = vmatprep.subr.mxu0 0.0
  %2542 = vmatpush1.msra.mxu0 %v2529
  %2543 = vmatprep.subr.mxu0 0.0
  %2544 = vmatpush1.msra.mxu0 %v2539
  %2545 = vmatprep.subr.mxu0 0.0
  %2546 = vmatpush1.msra.mxu0 0.0
  %2547 = vmatprep.subr.mxu0 0.0
  %2548 = vmatpush1.msra.mxu0 0.0
  %2549 = vmatprep.subr.mxu0 0.0
  %2550 = vmatpush1.msra.mxu0 0.0
  %2551 = vmatprep.subr.mxu0 0.0
  %2552 = vmatpush1.msra.mxu0 0.0
  %2553 = vmatprep.subr.mxu0 0.0
  %2554 = vmatpush1.msra.mxu0 0.0
  %2555 = vmatprep.subr.mxu0 0.0
  %2556 = vmatpush1.msra.mxu0 0.0
  %2557 = vmatprep.subr.mxu0 0.0
  %2558 = vmatpush1.msra.mxu0 0.0
  %2559 = vmatprep.subr.mxu0 0.0
  %2560 = vmatpush1.msra.mxu0 0.0
  %2561 = vmatprep.subr.mxu0 0.0
  %2562 = vmatpush1.msra.mxu0 0.0
  %2563 = vmatprep.subr.mxu0 0.0
  %2564 = vmatpush1.msra.mxu0 0.0
  %2565 = vmatprep.subr.mxu0 0.0
  %2566 = vmatpush1.msra.mxu0 0.0
  %2567 = vmatprep.subr.mxu0 0.0
  %2568 = vmatpush1.msra.mxu0 0.0
  %2569 = vmatprep.subr.mxu0 0.0
  %2570 = vmatpush1.msra.mxu0 0.0
  %2571 = vmatprep.subr.mxu0 0.0
  %2572 = vmatpush1.msra.mxu0 0.0
  %2573 = vmatprep.subr.mxu0 0.0
  %2574 = vmatpush1.msra.mxu0 0.0
  %2575 = vmatprep.subr.mxu0 0.0
  %2576 = vmatpush1.msra.mxu0 0.0
  %2577 = vmatprep.subr.mxu0 0.0
  %2578 = vmatpush1.msra.mxu0 0.0
  %2579 = vmatprep.subr.mxu0 0.0
  %2580 = vmatpush1.msra.mxu0 0.0
  %2581 = vmatprep.subr.mxu0 0.0
  %2582 = vmatpush1.msra.mxu0 0.0
  %2583 = vmatprep.subr.mxu0 0.0
  %2584 = vmatpush1.msra.mxu0 0.0
  %2585 = vmatprep.subr.mxu0 0.0
  %2586 = vmatpush1.msra.mxu0 0.0
  %2587 = vmatprep.subr.mxu0 0.0
  %2588 = vmatpush1.msra.mxu0 0.0
  %2589 = vmatprep.subr.mxu0 0.0
  %2590 = vmatpush1.msra.mxu0 0.0
  %2591 = vmatprep.subr.mxu0 0.0
  %2592 = vmatpush1.msra.mxu0 0.0
  %2593 = vmatprep.subr.mxu0 0.0
  %2594 = vmatpush1.msra.mxu0 0.0
  %2595 = vmatprep.subr.mxu0 0.0
  %2596 = vmatpush1.msra.mxu0 0.0
  %2597 = vmatprep.subr.mxu0 0.0
  %2598 = vmatpush1.msra.mxu0 0.0
  %2599 = vmatprep.subr.mxu0 0.0
  %2600 = vmatpush1.msra.mxu0 0.0
  %2601 = vmatprep.subr.mxu0 0.0
  %2602 = vmatpush1.msra.mxu0 0.0
  %2603 = vmatprep.subr.mxu0 0.0
  %2604 = vmatpush1.msra.mxu0 0.0
  %2605 = vmatprep.mubr.f32.mxu0 0.0
  %2606 = vmatmul.mubr.f32.gmra.mrb[0].mxu0 %v2534
  %v2607 = vpop.f32.mrb[0].mxu0
  %v2608 = vadd.f32 0.0, %v2607
  %v2609 = vpop.f32.mrb[0].mxu0
  %2610 = vmatprep.mubr.f32.mxu0 0.0
  %2611 = vmatmul.mubr.f32.gmra.mrb[0].mxu0 %v2537
  %v2612 = vpop.f32.mrb[0].mxu0
  %v2613 = vadd.f32 0.0, %v2612
  %v2614 = vpop.f32.mrb[0].mxu0
  %2615 = vdwg.mxu0
  %v2617 = vsel %vm636, %v2608, 0
  %v2620 = vsel %vm636, %v2613, 0
  %2622 = vmatprep.subr.mxu0 0.0
  %2623 = vmatpush1.msra.mxu0 %v2205
  %2624 = vmatprep.subr.mxu0 0.0
  %2625 = vmatpush1.msra.mxu0 0.0
  %2626 = vmatprep.subr.mxu0 0.0
  %2627 = vmatpush1.msra.mxu0 0.0
  %2628 = vmatprep.subr.mxu0 0.0
  %2629 = vmatpush1.msra.mxu0 0.0
  %2630 = vmatprep.subr.mxu0 0.0
  %2631 = vmatpush1.msra.mxu0 0.0
  %2632 = vmatprep.subr.mxu0 0.0
  %2633 = vmatpush1.msra.mxu0 0.0
  %2634 = vmatprep.subr.mxu0 0.0
  %2635 = vmatpush1.msra.mxu0 0.0
  %2636 = vmatprep.subr.mxu0 0.0
  %2637 = vmatpush1.msra.mxu0 0.0
  %2638 = vmatprep.subr.mxu0 0.0
  %2639 = vmatpush1.msra.mxu0 0.0
  %2640 = vmatprep.subr.mxu0 0.0
  %2641 = vmatpush1.msra.mxu0 0.0
  %2642 = vmatprep.subr.mxu0 0.0
  %2643 = vmatpush1.msra.mxu0 0.0
  %2644 = vmatprep.subr.mxu0 0.0
  %2645 = vmatpush1.msra.mxu0 0.0
  %2646 = vmatprep.subr.mxu0 0.0
  %2647 = vmatpush1.msra.mxu0 0.0
  %2648 = vmatprep.subr.mxu0 0.0
  %2649 = vmatpush1.msra.mxu0 0.0
  %2650 = vmatprep.subr.mxu0 0.0
  %2651 = vmatpush1.msra.mxu0 0.0
  %2652 = vmatprep.subr.mxu0 0.0
  %2653 = vmatpush1.msra.mxu0 0.0
  %2654 = vmatprep.subr.mxu0 0.0
  %2655 = vmatpush1.msra.mxu0 0.0
  %2656 = vmatprep.subr.mxu0 0.0
  %2657 = vmatpush1.msra.mxu0 0.0
  %2658 = vmatprep.subr.mxu0 0.0
  %2659 = vmatpush1.msra.mxu0 0.0
  %2660 = vmatprep.subr.mxu0 0.0
  %2661 = vmatpush1.msra.mxu0 0.0
  %2662 = vmatprep.subr.mxu0 0.0
  %2663 = vmatpush1.msra.mxu0 0.0
  %2664 = vmatprep.subr.mxu0 0.0
  %2665 = vmatpush1.msra.mxu0 0.0
  %2666 = vmatprep.subr.mxu0 0.0
  %2667 = vmatpush1.msra.mxu0 0.0
  %2668 = vmatprep.subr.mxu0 0.0
  %2669 = vmatpush1.msra.mxu0 0.0
  %2670 = vmatprep.subr.mxu0 0.0
  %2671 = vmatpush1.msra.mxu0 0.0
  %2672 = vmatprep.subr.mxu0 0.0
  %2673 = vmatpush1.msra.mxu0 0.0
  %2674 = vmatprep.subr.mxu0 0.0
  %2675 = vmatpush1.msra.mxu0 0.0
  %2676 = vmatprep.subr.mxu0 0.0
  %2677 = vmatpush1.msra.mxu0 0.0
  %2678 = vmatprep.subr.mxu0 0.0
  %2679 = vmatpush1.msra.mxu0 0.0
  %2680 = vmatprep.subr.mxu0 0.0
  %2681 = vmatpush1.msra.mxu0 0.0
  %2682 = vmatprep.subr.mxu0 0.0
  %2683 = vmatpush1.msra.mxu0 0.0
  %2684 = vmatprep.subr.mxu0 0.0
  %2685 = vmatpush1.msra.mxu0 0.0
  %2686 = vmatprep.mubr.f32.mxu0 0.0
  %2687 = vmatmul.mubr.f32.gmra.mrb[0].mxu0 %v2617
  %v2688 = vpop.f32.mrb[0].mxu0
  %v2689 = vadd.f32 0.0, %v2688
  %v2690 = vpop.f32.mrb[0].mxu0
  %2691 = vmatprep.mubr.f32.mxu0 0.0
  %2692 = vmatmul.mubr.f32.gmra.mrb[0].mxu0 %v2620
  %v2693 = vpop.f32.mrb[0].mxu0
  %v2694 = vadd.f32 0.0, %v2693
  %v2695 = vpop.f32.mrb[0].mxu0
  %2696 = vdwg.mxu0
  %v2698 = vsel %vm636, %v2403, 0
  %v2701 = vsel %vm636, %v2408, 0
  %2703 = vmatprep.subr.mxu0 0.0
  %2704 = vmatpush1.msra.mxu0 %v2204
  %2705 = vmatprep.subr.mxu0 0.0
  %2706 = vmatpush1.msra.mxu0 0.0
  %2707 = vmatprep.subr.mxu0 0.0
  %2708 = vmatpush1.msra.mxu0 0.0
  %2709 = vmatprep.subr.mxu0 0.0
  %2710 = vmatpush1.msra.mxu0 0.0
  %2711 = vmatprep.subr.mxu0 0.0
  %2712 = vmatpush1.msra.mxu0 0.0
  %2713 = vmatprep.subr.mxu0 0.0
  %2714 = vmatpush1.msra.mxu0 0.0
  %2715 = vmatprep.subr.mxu0 0.0
  %2716 = vmatpush1.msra.mxu0 0.0
  %2717 = vmatprep.subr.mxu0 0.0
  %2718 = vmatpush1.msra.mxu0 0.0
  %2719 = vmatprep.subr.mxu0 0.0
  %2720 = vmatpush1.msra.mxu0 0.0
  %2721 = vmatprep.subr.mxu0 0.0
  %2722 = vmatpush1.msra.mxu0 0.0
  %2723 = vmatprep.subr.mxu0 0.0
  %2724 = vmatpush1.msra.mxu0 0.0
  %2725 = vmatprep.subr.mxu0 0.0
  %2726 = vmatpush1.msra.mxu0 0.0
  %2727 = vmatprep.subr.mxu0 0.0
  %2728 = vmatpush1.msra.mxu0 0.0
  %2729 = vmatprep.subr.mxu0 0.0
  %2730 = vmatpush1.msra.mxu0 0.0
  %2731 = vmatprep.subr.mxu0 0.0
  %2732 = vmatpush1.msra.mxu0 0.0
  %2733 = vmatprep.subr.mxu0 0.0
  %2734 = vmatpush1.msra.mxu0 0.0
  %2735 = vmatprep.subr.mxu0 0.0
  %2736 = vmatpush1.msra.mxu0 0.0
  %2737 = vmatprep.subr.mxu0 0.0
  %2738 = vmatpush1.msra.mxu0 0.0
  %2739 = vmatprep.subr.mxu0 0.0
  %2740 = vmatpush1.msra.mxu0 0.0
  %2741 = vmatprep.subr.mxu0 0.0
  %2742 = vmatpush1.msra.mxu0 0.0
  %2743 = vmatprep.subr.mxu0 0.0
  %2744 = vmatpush1.msra.mxu0 0.0
  %2745 = vmatprep.subr.mxu0 0.0
  %2746 = vmatpush1.msra.mxu0 0.0
  %2747 = vmatprep.subr.mxu0 0.0
  %2748 = vmatpush1.msra.mxu0 0.0
  %2749 = vmatprep.subr.mxu0 0.0
  %2750 = vmatpush1.msra.mxu0 0.0
  %2751 = vmatprep.subr.mxu0 0.0
  %2752 = vmatpush1.msra.mxu0 0.0
  %2753 = vmatprep.subr.mxu0 0.0
  %2754 = vmatpush1.msra.mxu0 0.0
  %2755 = vmatprep.subr.mxu0 0.0
  %2756 = vmatpush1.msra.mxu0 0.0
  %2757 = vmatprep.subr.mxu0 0.0
  %2758 = vmatpush1.msra.mxu0 0.0
  %2759 = vmatprep.subr.mxu0 0.0
  %2760 = vmatpush1.msra.mxu0 0.0
  %2761 = vmatprep.subr.mxu0 0.0
  %2762 = vmatpush1.msra.mxu0 0.0
  %2763 = vmatprep.subr.mxu0 0.0
  %2764 = vmatpush1.msra.mxu0 0.0
  %2765 = vmatprep.subr.mxu0 0.0
  %2766 = vmatpush1.msra.mxu0 0.0
  %2767 = vmatprep.mubr.f32.mxu0 0.0
  %2768 = vmatmul.mubr.f32.gmra.mrb[0].mxu0 %v2698
  %v2769 = vpop.f32.mrb[0].mxu0
  %v2770 = vadd.f32 %v2689, %v2769
  %v2771 = vpop.f32.mrb[0].mxu0
  %2772 = vmatprep.mubr.f32.mxu0 0.0
  %2773 = vmatmul.mubr.f32.gmra.mrb[0].mxu0 %v2701
  %v2774 = vpop.f32.mrb[0].mxu0
  %v2775 = vadd.f32 %v2694, %v2774
  %v2776 = vpop.f32.mrb[0].mxu0
  %2777 = vdwg.mxu0
  %2778 = vrot.lane.b32.xlu0 %v2195, 112
  %v2779 = vpop.permute.xlu0 %2778
  %2780 = vrot.lane.b32.xlu0 %v2200, 112
  %v2781 = vpop.permute.xlu0 %2780
  %2782 = vrot.lane.b32.xlu0 %v2195, 80
  %v2783 = vpop.permute.xlu0 %2782
  %2784 = vrot.lane.b32.xlu0 %v2200, 80
  %v2785 = vpop.permute.xlu0 %2784
  %v2786 = vsel %vm636, %v2779, 0
  %v2788 = vsel %vm636, %v2781, 0
  %v2790 = vsel %vm636, %v2783, 0
  %v2792 = vsel %vm636, %v2785, 0
  %2794 = vmatprep.subr.mxu0 0.0
  %2795 = vmatpush1.xpose.msra.mxu0 %v2790
  %2796 = vmatprep.subr.mxu0 0.0
  %2797 = vmatpush1.xpose.msra.mxu0 %v2792
  %2798 = vmatprep.subr.mxu0 0.0
  %2799 = vmatpush1.xpose.msra.mxu0 0.0
  %2800 = vmatprep.subr.mxu0 0.0
  %2801 = vmatpush1.xpose.msra.mxu0 0.0
  %2802 = vmatprep.subr.mxu0 0.0
  %2803 = vmatpush1.xpose.msra.mxu0 0.0
  %2804 = vmatprep.subr.mxu0 0.0
  %2805 = vmatpush1.xpose.msra.mxu0 0.0
  %2806 = vmatprep.subr.mxu0 0.0
  %2807 = vmatpush1.xpose.msra.mxu0 0.0
  %2808 = vmatprep.subr.mxu0 0.0
  %2809 = vmatpush1.xpose.msra.mxu0 0.0
  %2810 = vmatprep.subr.mxu0 0.0
  %2811 = vmatpush1.xpose.msra.mxu0 0.0
  %2812 = vmatprep.subr.mxu0 0.0
  %2813 = vmatpush1.xpose.msra.mxu0 0.0
  %2814 = vmatprep.subr.mxu0 0.0
  %2815 = vmatpush1.xpose.msra.mxu0 0.0
  %2816 = vmatprep.subr.mxu0 0.0
  %2817 = vmatpush1.xpose.msra.mxu0 0.0
  %2818 = vmatprep.subr.mxu0 0.0
  %2819 = vmatpush1.xpose.msra.mxu0 0.0
  %2820 = vmatprep.subr.mxu0 0.0
  %2821 = vmatpush1.xpose.msra.mxu0 0.0
  %2822 = vmatprep.subr.mxu0 0.0
  %2823 = vmatpush1.xpose.msra.mxu0 0.0
  %2824 = vmatprep.subr.mxu0 0.0
  %2825 = vmatpush1.xpose.msra.mxu0 0.0
  %2826 = vmatprep.subr.mxu0 0.0
  %2827 = vmatpush1.xpose.msra.mxu0 0.0
  %2828 = vmatprep.subr.mxu0 0.0
  %2829 = vmatpush1.xpose.msra.mxu0 0.0
  %2830 = vmatprep.subr.mxu0 0.0
  %2831 = vmatpush1.xpose.msra.mxu0 0.0
  %2832 = vmatprep.subr.mxu0 0.0
  %2833 = vmatpush1.xpose.msra.mxu0 0.0
  %2834 = vmatprep.subr.mxu0 0.0
  %2835 = vmatpush1.xpose.msra.mxu0 0.0
  %2836 = vmatprep.subr.mxu0 0.0
  %2837 = vmatpush1.xpose.msra.mxu0 0.0
  %2838 = vmatprep.subr.mxu0 0.0
  %2839 = vmatpush1.xpose.msra.mxu0 0.0
  %2840 = vmatprep.subr.mxu0 0.0
  %2841 = vmatpush1.xpose.msra.mxu0 0.0
  %2842 = vmatprep.subr.mxu0 0.0
  %2843 = vmatpush1.xpose.msra.mxu0 0.0
  %2844 = vmatprep.subr.mxu0 0.0
  %2845 = vmatpush1.xpose.msra.mxu0 0.0
  %2846 = vmatprep.subr.mxu0 0.0
  %2847 = vmatpush1.xpose.msra.mxu0 0.0
  %2848 = vmatprep.subr.mxu0 0.0
  %2849 = vmatpush1.xpose.msra.mxu0 0.0
  %2850 = vmatprep.subr.mxu0 0.0
  %2851 = vmatpush1.xpose.msra.mxu0 0.0
  %2852 = vmatprep.subr.mxu0 0.0
  %2853 = vmatpush1.xpose.msra.mxu0 0.0
  %2854 = vmatprep.subr.mxu0 0.0
  %2855 = vmatpush1.xpose.msra.mxu0 0.0
  %2856 = vmatprep.subr.mxu0 0.0
  %2857 = vmatpush1.xpose.msra.mxu0 0.0
  %2858 = vmatprep.mubr.f32.mxu0 0.0
  %2859 = vmatmul.mubr.f32.gmra.mrb[0].mxu0 %v2786
  %v2860 = vpop.f32.mrb[0].mxu0
  %v2861 = vadd.f32 0.0, %v2860
  %v2862 = vpop.f32.mrb[0].mxu0
  %2863 = vmatprep.mubr.f32.mxu0 0.0
  %2864 = vmatmul.mubr.f32.gmra.mrb[0].mxu0 %v2788
  %v2865 = vpop.f32.mrb[0].mxu0
  %v2866 = vadd.f32 0.0, %v2865
  %v2867 = vpop.f32.mrb[0].mxu0
  %2868 = vdwg.mxu0
  %v2869 = vmul.f32 %v2861, 0.35355338
  %v2870 = vmul.f32 %v2866, 0.35355338
  %v2871 = vadd.f32 %v2869, %v485
  %v2872 = vadd.f32 %v2870, %v486
  %v2873 = vsel %vm724, %v2871, -inf
  %2874 = vmax.xlane.f32.xlu0 %v2873
  %v2875 = vpop.xlane.xlu0 %2874
  %v2876 = vsel %vm728, %v2872, -inf
  %2877 = vmax.xlane.f32.xlu0 %v2876
  %v2878 = vpop.xlane.xlu0 %2877
  %v2879 = vsub.f32 %v2871, %v2875
  %v2880 = vsub.f32 %v2872, %v2878
  %v2881 = vmul.f32 %v2879, 1.442695
  %v2882 = vpow.pop %v2881
  %v2883 = vmul.f32 %v2880, 1.442695
  %v2884 = vpow.pop %v2883
  %v2885 = vsel %vm724, %v2882, 0.0
  %2886 = vadd.xlane.f32.xlu0 %v2885
  %v2887 = vpop.xlane.xlu0 %2886
  %v2888 = vsel %vm728, %v2884, 0.0
  %2889 = vadd.xlane.f32.xlu0 %v2888
  %v2890 = vpop.xlane.xlu0 %2889
  %v2891 = vrcp.pop %v2887
  %v2892 = vrcp.pop %v2890
  %v2893 = vmul.f32 %v2882, %v2891
  %v2894 = vmul.f32 %v2884, %v2892
  %2895 = vrot.lane.b32.xlu0 %v2195, 48
  %v2896 = vpop.permute.xlu0 %2895
  %2897 = vrot.lane.b32.xlu0 %v2200, 48
  %v2898 = vpop.permute.xlu0 %2897
  %v2901 = vsel %vm724, %v2893, 0
  %v2904 = vsel %vm724, %v2894, 0
  %v2906 = vsel %vm759, %v2898, 0
  %2908 = vmatprep.subr.mxu0 0.0
  %2909 = vmatpush1.msra.mxu0 %v2896
  %2910 = vmatprep.subr.mxu0 0.0
  %2911 = vmatpush1.msra.mxu0 %v2906
  %2912 = vmatprep.subr.mxu0 0.0
  %2913 = vmatpush1.msra.mxu0 0.0
  %2914 = vmatprep.subr.mxu0 0.0
  %2915 = vmatpush1.msra.mxu0 0.0
  %2916 = vmatprep.subr.mxu0 0.0
  %2917 = vmatpush1.msra.mxu0 0.0
  %2918 = vmatprep.subr.mxu0 0.0
  %2919 = vmatpush1.msra.mxu0 0.0
  %2920 = vmatprep.subr.mxu0 0.0
  %2921 = vmatpush1.msra.mxu0 0.0
  %2922 = vmatprep.subr.mxu0 0.0
  %2923 = vmatpush1.msra.mxu0 0.0
  %2924 = vmatprep.subr.mxu0 0.0
  %2925 = vmatpush1.msra.mxu0 0.0
  %2926 = vmatprep.subr.mxu0 0.0
  %2927 = vmatpush1.msra.mxu0 0.0
  %2928 = vmatprep.subr.mxu0 0.0
  %2929 = vmatpush1.msra.mxu0 0.0
  %2930 = vmatprep.subr.mxu0 0.0
  %2931 = vmatpush1.msra.mxu0 0.0
  %2932 = vmatprep.subr.mxu0 0.0
  %2933 = vmatpush1.msra.mxu0 0.0
  %2934 = vmatprep.subr.mxu0 0.0
  %2935 = vmatpush1.msra.mxu0 0.0
  %2936 = vmatprep.subr.mxu0 0.0
  %2937 = vmatpush1.msra.mxu0 0.0
  %2938 = vmatprep.subr.mxu0 0.0
  %2939 = vmatpush1.msra.mxu0 0.0
  %2940 = vmatprep.subr.mxu0 0.0
  %2941 = vmatpush1.msra.mxu0 0.0
  %2942 = vmatprep.subr.mxu0 0.0
  %2943 = vmatpush1.msra.mxu0 0.0
  %2944 = vmatprep.subr.mxu0 0.0
  %2945 = vmatpush1.msra.mxu0 0.0
  %2946 = vmatprep.subr.mxu0 0.0
  %2947 = vmatpush1.msra.mxu0 0.0
  %2948 = vmatprep.subr.mxu0 0.0
  %2949 = vmatpush1.msra.mxu0 0.0
  %2950 = vmatprep.subr.mxu0 0.0
  %2951 = vmatpush1.msra.mxu0 0.0
  %2952 = vmatprep.subr.mxu0 0.0
  %2953 = vmatpush1.msra.mxu0 0.0
  %2954 = vmatprep.subr.mxu0 0.0
  %2955 = vmatpush1.msra.mxu0 0.0
  %2956 = vmatprep.subr.mxu0 0.0
  %2957 = vmatpush1.msra.mxu0 0.0
  %2958 = vmatprep.subr.mxu0 0.0
  %2959 = vmatpush1.msra.mxu0 0.0
  %2960 = vmatprep.subr.mxu0 0.0
  %2961 = vmatpush1.msra.mxu0 0.0
  %2962 = vmatprep.subr.mxu0 0.0
  %2963 = vmatpush1.msra.mxu0 0.0
  %2964 = vmatprep.subr.mxu0 0.0
  %2965 = vmatpush1.msra.mxu0 0.0
  %2966 = vmatprep.subr.mxu0 0.0
  %2967 = vmatpush1.msra.mxu0 0.0
  %2968 = vmatprep.subr.mxu0 0.0
  %2969 = vmatpush1.msra.mxu0 0.0
  %2970 = vmatprep.subr.mxu0 0.0
  %2971 = vmatpush1.msra.mxu0 0.0
  %2972 = vmatprep.mubr.f32.mxu0 0.0
  %2973 = vmatmul.mubr.f32.gmra.mrb[0].mxu0 %v2901
  %v2974 = vpop.f32.mrb[0].mxu0
  %v2975 = vadd.f32 0.0, %v2974
  %v2976 = vpop.f32.mrb[0].mxu0
  %2977 = vmatprep.mubr.f32.mxu0 0.0
  %2978 = vmatmul.mubr.f32.gmra.mrb[0].mxu0 %v2904
  %v2979 = vpop.f32.mrb[0].mxu0
  %v2980 = vadd.f32 0.0, %v2979
  %v2981 = vpop.f32.mrb[0].mxu0
  %2982 = vdwg.mxu0
  %v2984 = vsel %vm636, %v2975, 0
  %v2987 = vsel %vm636, %v2980, 0
  %2989 = vmatprep.subr.mxu0 0.0
  %2990 = vmatpush1.msra.mxu0 %v2206
  %2991 = vmatprep.subr.mxu0 0.0
  %2992 = vmatpush1.msra.mxu0 0.0
  %2993 = vmatprep.subr.mxu0 0.0
  %2994 = vmatpush1.msra.mxu0 0.0
  %2995 = vmatprep.subr.mxu0 0.0
  %2996 = vmatpush1.msra.mxu0 0.0
  %2997 = vmatprep.subr.mxu0 0.0
  %2998 = vmatpush1.msra.mxu0 0.0
  %2999 = vmatprep.subr.mxu0 0.0
  %3000 = vmatpush1.msra.mxu0 0.0
  %3001 = vmatprep.subr.mxu0 0.0
  %3002 = vmatpush1.msra.mxu0 0.0
  %3003 = vmatprep.subr.mxu0 0.0
  %3004 = vmatpush1.msra.mxu0 0.0
  %3005 = vmatprep.subr.mxu0 0.0
  %3006 = vmatpush1.msra.mxu0 0.0
  %3007 = vmatprep.subr.mxu0 0.0
  %3008 = vmatpush1.msra.mxu0 0.0
  %3009 = vmatprep.subr.mxu0 0.0
  %3010 = vmatpush1.msra.mxu0 0.0
  %3011 = vmatprep.subr.mxu0 0.0
  %3012 = vmatpush1.msra.mxu0 0.0
  %3013 = vmatprep.subr.mxu0 0.0
  %3014 = vmatpush1.msra.mxu0 0.0
  %3015 = vmatprep.subr.mxu0 0.0
  %3016 = vmatpush1.msra.mxu0 0.0
  %3017 = vmatprep.subr.mxu0 0.0
  %3018 = vmatpush1.msra.mxu0 0.0
  %3019 = vmatprep.subr.mxu0 0.0
  %3020 = vmatpush1.msra.mxu0 0.0
  %3021 = vmatprep.subr.mxu0 0.0
  %3022 = vmatpush1.msra.mxu0 0.0
  %3023 = vmatprep.subr.mxu0 0.0
  %3024 = vmatpush1.msra.mxu0 0.0
  %3025 = vmatprep.subr.mxu0 0.0
  %3026 = vmatpush1.msra.mxu0 0.0
  %3027 = vmatprep.subr.mxu0 0.0
  %3028 = vmatpush1.msra.mxu0 0.0
  %3029 = vmatprep.subr.mxu0 0.0
  %3030 = vmatpush1.msra.mxu0 0.0
  %3031 = vmatprep.subr.mxu0 0.0
  %3032 = vmatpush1.msra.mxu0 0.0
  %3033 = vmatprep.subr.mxu0 0.0
  %3034 = vmatpush1.msra.mxu0 0.0
  %3035 = vmatprep.subr.mxu0 0.0
  %3036 = vmatpush1.msra.mxu0 0.0
  %3037 = vmatprep.subr.mxu0 0.0
  %3038 = vmatpush1.msra.mxu0 0.0
  %3039 = vmatprep.subr.mxu0 0.0
  %3040 = vmatpush1.msra.mxu0 0.0
  %3041 = vmatprep.subr.mxu0 0.0
  %3042 = vmatpush1.msra.mxu0 0.0
  %3043 = vmatprep.subr.mxu0 0.0
  %3044 = vmatpush1.msra.mxu0 0.0
  %3045 = vmatprep.subr.mxu0 0.0
  %3046 = vmatpush1.msra.mxu0 0.0
  %3047 = vmatprep.subr.mxu0 0.0
  %3048 = vmatpush1.msra.mxu0 0.0
  %3049 = vmatprep.subr.mxu0 0.0
  %3050 = vmatpush1.msra.mxu0 0.0
  %3051 = vmatprep.subr.mxu0 0.0
  %3052 = vmatpush1.msra.mxu0 0.0
  %3053 = vmatprep.mubr.f32.mxu0 0.0
  %3054 = vmatmul.mubr.f32.gmra.mrb[0].mxu0 %v2984
  %v3055 = vpop.f32.mrb[0].mxu0
  %v3056 = vadd.f32 0.0, %v3055
  %v3057 = vpop.f32.mrb[0].mxu0
  %3058 = vmatprep.mubr.f32.mxu0 0.0
  %3059 = vmatmul.mubr.f32.gmra.mrb[0].mxu0 %v2987
  %v3060 = vpop.f32.mrb[0].mxu0
  %v3061 = vadd.f32 0.0, %v3060
  %v3062 = vpop.f32.mrb[0].mxu0
  %3063 = vdwg.mxu0
  %v3064 = vadd.f32 %v2770, %v3056
  %v3065 = vadd.f32 %v2775, %v3061
  %3066 = vrot.lane.b32.xlu0 %v2195, 104
  %v3067 = vpop.permute.xlu0 %3066
  %3068 = vrot.lane.b32.xlu0 %v2200, 104
  %v3069 = vpop.permute.xlu0 %3068
  %3070 = vrot.lane.b32.xlu0 %v2195, 72
  %v3071 = vpop.permute.xlu0 %3070
  %3072 = vrot.lane.b32.xlu0 %v2200, 72
  %v3073 = vpop.permute.xlu0 %3072
  %v3074 = vsel %vm636, %v3067, 0
  %v3076 = vsel %vm636, %v3069, 0
  %v3078 = vsel %vm636, %v3071, 0
  %v3080 = vsel %vm636, %v3073, 0
  %3082 = vmatprep.subr.mxu0 0.0
  %3083 = vmatpush1.xpose.msra.mxu0 %v3078
  %3084 = vmatprep.subr.mxu0 0.0
  %3085 = vmatpush1.xpose.msra.mxu0 %v3080
  %3086 = vmatprep.subr.mxu0 0.0
  %3087 = vmatpush1.xpose.msra.mxu0 0.0
  %3088 = vmatprep.subr.mxu0 0.0
  %3089 = vmatpush1.xpose.msra.mxu0 0.0
  %3090 = vmatprep.subr.mxu0 0.0
  %3091 = vmatpush1.xpose.msra.mxu0 0.0
  %3092 = vmatprep.subr.mxu0 0.0
  %3093 = vmatpush1.xpose.msra.mxu0 0.0
  %3094 = vmatprep.subr.mxu0 0.0
  %3095 = vmatpush1.xpose.msra.mxu0 0.0
  %3096 = vmatprep.subr.mxu0 0.0
  %3097 = vmatpush1.xpose.msra.mxu0 0.0
  %3098 = vmatprep.subr.mxu0 0.0
  %3099 = vmatpush1.xpose.msra.mxu0 0.0
  %3100 = vmatprep.subr.mxu0 0.0
  %3101 = vmatpush1.xpose.msra.mxu0 0.0
  %3102 = vmatprep.subr.mxu0 0.0
  %3103 = vmatpush1.xpose.msra.mxu0 0.0
  %3104 = vmatprep.subr.mxu0 0.0
  %3105 = vmatpush1.xpose.msra.mxu0 0.0
  %3106 = vmatprep.subr.mxu0 0.0
  %3107 = vmatpush1.xpose.msra.mxu0 0.0
  %3108 = vmatprep.subr.mxu0 0.0
  %3109 = vmatpush1.xpose.msra.mxu0 0.0
  %3110 = vmatprep.subr.mxu0 0.0
  %3111 = vmatpush1.xpose.msra.mxu0 0.0
  %3112 = vmatprep.subr.mxu0 0.0
  %3113 = vmatpush1.xpose.msra.mxu0 0.0
  %3114 = vmatprep.subr.mxu0 0.0
  %3115 = vmatpush1.xpose.msra.mxu0 0.0
  %3116 = vmatprep.subr.mxu0 0.0
  %3117 = vmatpush1.xpose.msra.mxu0 0.0
  %3118 = vmatprep.subr.mxu0 0.0
  %3119 = vmatpush1.xpose.msra.mxu0 0.0
  %3120 = vmatprep.subr.mxu0 0.0
  %3121 = vmatpush1.xpose.msra.mxu0 0.0
  %3122 = vmatprep.subr.mxu0 0.0
  %3123 = vmatpush1.xpose.msra.mxu0 0.0
  %3124 = vmatprep.subr.mxu0 0.0
  %3125 = vmatpush1.xpose.msra.mxu0 0.0
  %3126 = vmatprep.subr.mxu0 0.0
  %3127 = vmatpush1.xpose.msra.mxu0 0.0
  %3128 = vmatprep.subr.mxu0 0.0
  %3129 = vmatpush1.xpose.msra.mxu0 0.0
  %3130 = vmatprep.subr.mxu0 0.0
  %3131 = vmatpush1.xpose.msra.mxu0 0.0
  %3132 = vmatprep.subr.mxu0 0.0
  %3133 = vmatpush1.xpose.msra.mxu0 0.0
  %3134 = vmatprep.subr.mxu0 0.0
  %3135 = vmatpush1.xpose.msra.mxu0 0.0
  %3136 = vmatprep.subr.mxu0 0.0
  %3137 = vmatpush1.xpose.msra.mxu0 0.0
  %3138 = vmatprep.subr.mxu0 0.0
  %3139 = vmatpush1.xpose.msra.mxu0 0.0
  %3140 = vmatprep.subr.mxu0 0.0
  %3141 = vmatpush1.xpose.msra.mxu0 0.0
  %3142 = vmatprep.subr.mxu0 0.0
  %3143 = vmatpush1.xpose.msra.mxu0 0.0
  %3144 = vmatprep.subr.mxu0 0.0
  %3145 = vmatpush1.xpose.msra.mxu0 0.0
  %3146 = vmatprep.mubr.f32.mxu0 0.0
  %3147 = vmatmul.mubr.f32.gmra.mrb[0].mxu0 %v3074
  %v3148 = vpop.f32.mrb[0].mxu0
  %v3149 = vadd.f32 0.0, %v3148
  %v3150 = vpop.f32.mrb[0].mxu0
  %3151 = vmatprep.mubr.f32.mxu0 0.0
  %3152 = vmatmul.mubr.f32.gmra.mrb[0].mxu0 %v3076
  %v3153 = vpop.f32.mrb[0].mxu0
  %v3154 = vadd.f32 0.0, %v3153
  %v3155 = vpop.f32.mrb[0].mxu0
  %3156 = vdwg.mxu0
  %v3157 = vmul.f32 %v3149, 0.35355338
  %v3158 = vmul.f32 %v3154, 0.35355338
  %v3159 = vadd.f32 %v3157, %v485
  %v3160 = vadd.f32 %v3158, %v486
  %v3161 = vsel %vm724, %v3159, -inf
  %3162 = vmax.xlane.f32.xlu0 %v3161
  %v3163 = vpop.xlane.xlu0 %3162
  %v3164 = vsel %vm728, %v3160, -inf
  %3165 = vmax.xlane.f32.xlu0 %v3164
  %v3166 = vpop.xlane.xlu0 %3165
  %v3167 = vsub.f32 %v3159, %v3163
  %v3168 = vsub.f32 %v3160, %v3166
  %v3169 = vmul.f32 %v3167, 1.442695
  %v3170 = vpow.pop %v3169
  %v3171 = vmul.f32 %v3168, 1.442695
  %v3172 = vpow.pop %v3171
  %v3173 = vsel %vm724, %v3170, 0.0
  %3174 = vadd.xlane.f32.xlu0 %v3173
  %v3175 = vpop.xlane.xlu0 %3174
  %v3176 = vsel %vm728, %v3172, 0.0
  %3177 = vadd.xlane.f32.xlu0 %v3176
  %v3178 = vpop.xlane.xlu0 %3177
  %v3179 = vrcp.pop %v3175
  %v3180 = vrcp.pop %v3178
  %v3181 = vmul.f32 %v3170, %v3179
  %v3182 = vmul.f32 %v3172, %v3180
  %3183 = vrot.lane.b32.xlu0 %v2195, 40
  %v3184 = vpop.permute.xlu0 %3183
  %3185 = vrot.lane.b32.xlu0 %v2200, 40
  %v3186 = vpop.permute.xlu0 %3185
  %v3189 = vsel %vm724, %v3181, 0
  %v3192 = vsel %vm724, %v3182, 0
  %v3194 = vsel %vm759, %v3186, 0
  %3196 = vmatprep.subr.mxu0 0.0
  %3197 = vmatpush1.msra.mxu0 %v3184
  %3198 = vmatprep.subr.mxu0 0.0
  %3199 = vmatpush1.msra.mxu0 %v3194
  %3200 = vmatprep.subr.mxu0 0.0
  %3201 = vmatpush1.msra.mxu0 0.0
  %3202 = vmatprep.subr.mxu0 0.0
  %3203 = vmatpush1.msra.mxu0 0.0
  %3204 = vmatprep.subr.mxu0 0.0
  %3205 = vmatpush1.msra.mxu0 0.0
  %3206 = vmatprep.subr.mxu0 0.0
  %3207 = vmatpush1.msra.mxu0 0.0
  %3208 = vmatprep.subr.mxu0 0.0
  %3209 = vmatpush1.msra.mxu0 0.0
  %3210 = vmatprep.subr.mxu0 0.0
  %3211 = vmatpush1.msra.mxu0 0.0
  %3212 = vmatprep.subr.mxu0 0.0
  %3213 = vmatpush1.msra.mxu0 0.0
  %3214 = vmatprep.subr.mxu0 0.0
  %3215 = vmatpush1.msra.mxu0 0.0
  %3216 = vmatprep.subr.mxu0 0.0
  %3217 = vmatpush1.msra.mxu0 0.0
  %3218 = vmatprep.subr.mxu0 0.0
  %3219 = vmatpush1.msra.mxu0 0.0
  %3220 = vmatprep.subr.mxu0 0.0
  %3221 = vmatpush1.msra.mxu0 0.0
  %3222 = vmatprep.subr.mxu0 0.0
  %3223 = vmatpush1.msra.mxu0 0.0
  %3224 = vmatprep.subr.mxu0 0.0
  %3225 = vmatpush1.msra.mxu0 0.0
  %3226 = vmatprep.subr.mxu0 0.0
  %3227 = vmatpush1.msra.mxu0 0.0
  %3228 = vmatprep.subr.mxu0 0.0
  %3229 = vmatpush1.msra.mxu0 0.0
  %3230 = vmatprep.subr.mxu0 0.0
  %3231 = vmatpush1.msra.mxu0 0.0
  %3232 = vmatprep.subr.mxu0 0.0
  %3233 = vmatpush1.msra.mxu0 0.0
  %3234 = vmatprep.subr.mxu0 0.0
  %3235 = vmatpush1.msra.mxu0 0.0
  %3236 = vmatprep.subr.mxu0 0.0
  %3237 = vmatpush1.msra.mxu0 0.0
  %3238 = vmatprep.subr.mxu0 0.0
  %3239 = vmatpush1.msra.mxu0 0.0
  %3240 = vmatprep.subr.mxu0 0.0
  %3241 = vmatpush1.msra.mxu0 0.0
  %3242 = vmatprep.subr.mxu0 0.0
  %3243 = vmatpush1.msra.mxu0 0.0
  %3244 = vmatprep.subr.mxu0 0.0
  %3245 = vmatpush1.msra.mxu0 0.0
  %3246 = vmatprep.subr.mxu0 0.0
  %3247 = vmatpush1.msra.mxu0 0.0
  %3248 = vmatprep.subr.mxu0 0.0
  %3249 = vmatpush1.msra.mxu0 0.0
  %3250 = vmatprep.subr.mxu0 0.0
  %3251 = vmatpush1.msra.mxu0 0.0
  %3252 = vmatprep.subr.mxu0 0.0
  %3253 = vmatpush1.msra.mxu0 0.0
  %3254 = vmatprep.subr.mxu0 0.0
  %3255 = vmatpush1.msra.mxu0 0.0
  %3256 = vmatprep.subr.mxu0 0.0
  %3257 = vmatpush1.msra.mxu0 0.0
  %3258 = vmatprep.subr.mxu0 0.0
  %3259 = vmatpush1.msra.mxu0 0.0
  %3260 = vmatprep.mubr.f32.mxu0 0.0
  %3261 = vmatmul.mubr.f32.gmra.mrb[0].mxu0 %v3189
  %v3262 = vpop.f32.mrb[0].mxu0
  %v3263 = vadd.f32 0.0, %v3262
  %v3264 = vpop.f32.mrb[0].mxu0
  %3265 = vmatprep.mubr.f32.mxu0 0.0
  %3266 = vmatmul.mubr.f32.gmra.mrb[0].mxu0 %v3192
  %v3267 = vpop.f32.mrb[0].mxu0
  %v3268 = vadd.f32 0.0, %v3267
  %v3269 = vpop.f32.mrb[0].mxu0
  %3270 = vdwg.mxu0
  %v3272 = vsel %vm636, %v3263, 0
  %v3275 = vsel %vm636, %v3268, 0
  %3277 = vmatprep.subr.mxu0 0.0
  %3278 = vmatpush1.msra.mxu0 %v2207
  %3279 = vmatprep.subr.mxu0 0.0
  %3280 = vmatpush1.msra.mxu0 0.0
  %3281 = vmatprep.subr.mxu0 0.0
  %3282 = vmatpush1.msra.mxu0 0.0
  %3283 = vmatprep.subr.mxu0 0.0
  %3284 = vmatpush1.msra.mxu0 0.0
  %3285 = vmatprep.subr.mxu0 0.0
  %3286 = vmatpush1.msra.mxu0 0.0
  %3287 = vmatprep.subr.mxu0 0.0
  %3288 = vmatpush1.msra.mxu0 0.0
  %3289 = vmatprep.subr.mxu0 0.0
  %3290 = vmatpush1.msra.mxu0 0.0
  %3291 = vmatprep.subr.mxu0 0.0
  %3292 = vmatpush1.msra.mxu0 0.0
  %3293 = vmatprep.subr.mxu0 0.0
  %3294 = vmatpush1.msra.mxu0 0.0
  %3295 = vmatprep.subr.mxu0 0.0
  %3296 = vmatpush1.msra.mxu0 0.0
  %3297 = vmatprep.subr.mxu0 0.0
  %3298 = vmatpush1.msra.mxu0 0.0
  %3299 = vmatprep.subr.mxu0 0.0
  %3300 = vmatpush1.msra.mxu0 0.0
  %3301 = vmatprep.subr.mxu0 0.0
  %3302 = vmatpush1.msra.mxu0 0.0
  %3303 = vmatprep.subr.mxu0 0.0
  %3304 = vmatpush1.msra.mxu0 0.0
  %3305 = vmatprep.subr.mxu0 0.0
  %3306 = vmatpush1.msra.mxu0 0.0
  %3307 = vmatprep.subr.mxu0 0.0
  %3308 = vmatpush1.msra.mxu0 0.0
  %3309 = vmatprep.subr.mxu0 0.0
  %3310 = vmatpush1.msra.mxu0 0.0
  %3311 = vmatprep.subr.mxu0 0.0
  %3312 = vmatpush1.msra.mxu0 0.0
  %3313 = vmatprep.subr.mxu0 0.0
  %3314 = vmatpush1.msra.mxu0 0.0
  %3315 = vmatprep.subr.mxu0 0.0
  %3316 = vmatpush1.msra.mxu0 0.0
  %3317 = vmatprep.subr.mxu0 0.0
  %3318 = vmatpush1.msra.mxu0 0.0
  %3319 = vmatprep.subr.mxu0 0.0
  %3320 = vmatpush1.msra.mxu0 0.0
  %3321 = vmatprep.subr.mxu0 0.0
  %3322 = vmatpush1.msra.mxu0 0.0
  %3323 = vmatprep.subr.mxu0 0.0
  %3324 = vmatpush1.msra.mxu0 0.0
  %3325 = vmatprep.subr.mxu0 0.0
  %3326 = vmatpush1.msra.mxu0 0.0
  %3327 = vmatprep.subr.mxu0 0.0
  %3328 = vmatpush1.msra.mxu0 0.0
  %3329 = vmatprep.subr.mxu0 0.0
  %3330 = vmatpush1.msra.mxu0 0.0
  %3331 = vmatprep.subr.mxu0 0.0
  %3332 = vmatpush1.msra.mxu0 0.0
  %3333 = vmatprep.subr.mxu0 0.0
  %3334 = vmatpush1.msra.mxu0 0.0
  %3335 = vmatprep.subr.mxu0 0.0
  %3336 = vmatpush1.msra.mxu0 0.0
  %3337 = vmatprep.subr.mxu0 0.0
  %3338 = vmatpush1.msra.mxu0 0.0
  %3339 = vmatprep.subr.mxu0 0.0
  %3340 = vmatpush1.msra.mxu0 0.0
  %3341 = vmatprep.mubr.f32.mxu0 0.0
  %3342 = vmatmul.mubr.f32.gmra.mrb[0].mxu0 %v3272
  %v3343 = vpop.f32.mrb[0].mxu0
  %v3344 = vadd.f32 0.0, %v3343
  %v3345 = vpop.f32.mrb[0].mxu0
  %3346 = vmatprep.mubr.f32.mxu0 0.0
  %3347 = vmatmul.mubr.f32.gmra.mrb[0].mxu0 %v3275
  %v3348 = vpop.f32.mrb[0].mxu0
  %v3349 = vadd.f32 0.0, %v3348
  %v3350 = vpop.f32.mrb[0].mxu0
  %3351 = vdwg.mxu0
  %v3352 = vadd.f32 %v3064, %v3344
  %v3353 = vadd.f32 %v3065, %v3349
  %s3354 = scalar_lea.vmem %s13, 1
  %v3355 = vld [vmem:[%s3354] sm:$0x1]
  %v3357 = vlaneseq
  %v3358 = vshrl.u32 %v3357, 7
  %v3359 = vsub.s32 0, %v3358
  %v3360 = vrot.slane %v3355, %v3359
  %v3362 = vadd.f32 %v3352, %v3360
  %v3363 = vadd.f32 %v3353, %v3360
  %s3364 = scalar_lea.vmem %s14, 1
  %v3365 = vld [vmem:[%s3364] sm:$0x1]
  %v3367 = vlaneseq
  %v3368 = vshrl.u32 %v3367, 7
  %v3369 = vsub.s32 0, %v3368
  %v3370 = vrot.slane %v3365, %v3369
  %v3372 = vmul.f32 %v3362, %v3370
  %v3373 = vmul.f32 %v3363, %v3370
  %v3374 = vadd.f32 %v2061, %v3372
  %v3375 = vadd.f32 %v2062, %v3373
  %s3376 = scalar_lea.vmem %s15, 1
  %v3377 = vld [vmem:[%s3376] sm:$0x1]
  %s3378 = scalar_lea.vmem %s16, 1
  %v3379 = vld [vmem:[%s3378] sm:$0x1]
  %v3380 = vsel %vm489, %v3374, 0.0
  %3381 = vadd.xlane.f32.xlu0 %v3380
  %v3382 = vpop.xlane.xlu0 %3381
  %v3383 = vsel %vm493, %v3375, 0.0
  %3384 = vadd.xlane.f32.xlu0 %v3383
  %v3385 = vpop.xlane.xlu0 %3384
  %v3386 = vmul.f32 %v3382, %v497
  %v3387 = vmul.f32 %v3385, %v497
  %v3388 = vsub.f32 %v3374, %v3386
  %v3389 = vsub.f32 %v3375, %v3387
  %v3390 = vmul.f32 %v3388, %v3388
  %v3391 = vmul.f32 %v3389, %v3389
  %v3392 = vsel %vm489, %v3390, 0.0
  %3393 = vadd.xlane.f32.xlu0 %v3392
  %v3394 = vpop.xlane.xlu0 %3393
  %v3395 = vsel %vm493, %v3391, 0.0
  %3396 = vadd.xlane.f32.xlu0 %v3395
  %v3397 = vpop.xlane.xlu0 %3396
  %v3398 = vmul.f32 %v3394, %v497
  %v3399 = vmul.f32 %v3397, %v497
  %v3400 = vadd.f32 %v3398, 1e-06
  %v3401 = vadd.f32 %v3399, 1e-06
  %v3402 = vrsqrt.pop %v3400
  %v3403 = vrsqrt.pop %v3401
  %v3404 = vmul.f32 %v3388, %v3402
  %v3405 = vmul.f32 %v3389, %v3403
  %v3407 = vlaneseq
  %v3408 = vshrl.u32 %v3407, 7
  %v3409 = vsub.s32 0, %v3408
  %v3410 = vrot.slane %v3377, %v3409
  %v3412 = vmul.f32 %v3404, %v3410
  %v3413 = vmul.f32 %v3405, %v3410
  %v3415 = vlaneseq
  %v3416 = vshrl.u32 %v3415, 7
  %v3417 = vsub.s32 0, %v3416
  %v3418 = vrot.slane %v3379, %v3417
  %v3420 = vadd.f32 %v3412, %v3418
  %v3421 = vadd.f32 %v3413, %v3418
  %s3422 = scalar_lea.vmem %s17, 32
  %v3423 = vld [vmem:[%s3422] sm:$0xff]
  %v3424 = vld [vmem:[%s3422 + $0x8] sm:$0xff]
  %v3425 = vld [vmem:[%s3422 + $0x10] sm:$0xff]
  %v3426 = vld [vmem:[%s3422 + $0x18] sm:$0xff]
  %s3427 = scalar_lea.vmem %s18, 1
  %v3428 = vld [vmem:[%s3427] sm:$0x1]
  %v3430 = vlaneseq
  %v3431 = vshrl.u32 %v3430, 7
  %v3432 = vsub.s32 0, %v3431
  %v3433 = vrot.slane %v3428, %v3432
  %v3436 = vsel %vm489, %v3420, 0
  %v3439 = vsel %vm489, %v3421, 0
  %3441 = vmatprep.subr.mxu0 0.0
  %3442 = vmatpush1.msra.mxu0 %v3423
  %3443 = vmatprep.subr.mxu0 0.0
  %3444 = vmatpush1.msra.mxu0 %v3424
  %3445 = vmatprep.subr.mxu0 0.0
  %3446 = vmatpush1.msra.mxu0 %v3425
  %3447 = vmatprep.subr.mxu0 0.0
  %3448 = vmatpush1.msra.mxu0 %v3426
  %3449 = vmatprep.subr.mxu0 0.0
  %3450 = vmatpush1.msra.mxu0 0.0
  %3451 = vmatprep.subr.mxu0 0.0
  %3452 = vmatpush1.msra.mxu0 0.0
  %3453 = vmatprep.subr.mxu0 0.0
  %3454 = vmatpush1.msra.mxu0 0.0
  %3455 = vmatprep.subr.mxu0 0.0
  %3456 = vmatpush1.msra.mxu0 0.0
  %3457 = vmatprep.subr.mxu0 0.0
  %3458 = vmatpush1.msra.mxu0 0.0
  %3459 = vmatprep.subr.mxu0 0.0
  %3460 = vmatpush1.msra.mxu0 0.0
  %3461 = vmatprep.subr.mxu0 0.0
  %3462 = vmatpush1.msra.mxu0 0.0
  %3463 = vmatprep.subr.mxu0 0.0
  %3464 = vmatpush1.msra.mxu0 0.0
  %3465 = vmatprep.subr.mxu0 0.0
  %3466 = vmatpush1.msra.mxu0 0.0
  %3467 = vmatprep.subr.mxu0 0.0
  %3468 = vmatpush1.msra.mxu0 0.0
  %3469 = vmatprep.subr.mxu0 0.0
  %3470 = vmatpush1.msra.mxu0 0.0
  %3471 = vmatprep.subr.mxu0 0.0
  %3472 = vmatpush1.msra.mxu0 0.0
  %3473 = vmatprep.subr.mxu0 0.0
  %3474 = vmatpush1.msra.mxu0 0.0
  %3475 = vmatprep.subr.mxu0 0.0
  %3476 = vmatpush1.msra.mxu0 0.0
  %3477 = vmatprep.subr.mxu0 0.0
  %3478 = vmatpush1.msra.mxu0 0.0
  %3479 = vmatprep.subr.mxu0 0.0
  %3480 = vmatpush1.msra.mxu0 0.0
  %3481 = vmatprep.subr.mxu0 0.0
  %3482 = vmatpush1.msra.mxu0 0.0
  %3483 = vmatprep.subr.mxu0 0.0
  %3484 = vmatpush1.msra.mxu0 0.0
  %3485 = vmatprep.subr.mxu0 0.0
  %3486 = vmatpush1.msra.mxu0 0.0
  %3487 = vmatprep.subr.mxu0 0.0
  %3488 = vmatpush1.msra.mxu0 0.0
  %3489 = vmatprep.subr.mxu0 0.0
  %3490 = vmatpush1.msra.mxu0 0.0
  %3491 = vmatprep.subr.mxu0 0.0
  %3492 = vmatpush1.msra.mxu0 0.0
  %3493 = vmatprep.subr.mxu0 0.0
  %3494 = vmatpush1.msra.mxu0 0.0
  %3495 = vmatprep.subr.mxu0 0.0
  %3496 = vmatpush1.msra.mxu0 0.0
  %3497 = vmatprep.subr.mxu0 0.0
  %3498 = vmatpush1.msra.mxu0 0.0
  %3499 = vmatprep.subr.mxu0 0.0
  %3500 = vmatpush1.msra.mxu0 0.0
  %3501 = vmatprep.subr.mxu0 0.0
  %3502 = vmatpush1.msra.mxu0 0.0
  %3503 = vmatprep.subr.mxu0 0.0
  %3504 = vmatpush1.msra.mxu0 0.0
  %3505 = vmatprep.mubr.f32.mxu0 0.0
  %3506 = vmatmul.mubr.f32.gmra.mrb[0].mxu0 %v3436
  %v3507 = vpop.f32.mrb[0].mxu0
  %v3508 = vadd.f32 %v3433, %v3507
  %v3509 = vpop.f32.mrb[0].mxu0
  %3510 = vmatprep.mubr.f32.mxu0 0.0
  %3511 = vmatmul.mubr.f32.gmra.mrb[0].mxu0 %v3439
  %v3512 = vpop.f32.mrb[0].mxu0
  %v3513 = vadd.f32 %v3433, %v3512
  %v3514 = vpop.f32.mrb[0].mxu0
  %3515 = vdwg.mxu0
  %v3516 = vmul.f32 %v3508, 0.5
  %v3517 = vmul.f32 %v3513, 0.5
  %v3518 = vmul.f32 %v3508, 0.044715
  %v3519 = vmul.f32 %v3513, 0.044715
  %v3520 = vmul.f32 %v3518, %v3508
  %v3521 = vmul.f32 %v3519, %v3513
  %v3522 = vmul.f32 %v3520, %v3508
  %v3523 = vmul.f32 %v3521, %v3513
  %v3524 = vadd.f32 %v3508, %v3522
  %v3525 = vadd.f32 %v3513, %v3523
  %v3526 = vmul.f32 %v3524, 0.7978846
  %v3527 = vmul.f32 %v3525, 0.7978846
  %v3528 = vtanh.pop %v3526
  %v3529 = vtanh.pop %v3527
  %v3530 = vadd.f32 %v3528, 1.0
  %v3531 = vadd.f32 %v3529, 1.0
  %v3532 = vmul.f32 %v3516, %v3530
  %v3533 = vmul.f32 %v3517, %v3531
  %s3534 = scalar_lea.vmem %s19, 128
  %v3535 = vld [vmem:[%s3534] sm:$0xff]
  %v3536 = vld [vmem:[%s3534 + $0x8] sm:$0xff]
  %v3537 = vld [vmem:[%s3534 + $0x10] sm:$0xff]
  %v3538 = vld [vmem:[%s3534 + $0x18] sm:$0xff]
  %v3539 = vld [vmem:[%s3534 + $0x20] sm:$0xff]
  %v3540 = vld [vmem:[%s3534 + $0x28] sm:$0xff]
  %v3541 = vld [vmem:[%s3534 + $0x30] sm:$0xff]
  %v3542 = vld [vmem:[%s3534 + $0x38] sm:$0xff]
  %v3543 = vld [vmem:[%s3534 + $0x40] sm:$0xff]
  %v3544 = vld [vmem:[%s3534 + $0x48] sm:$0xff]
  %v3545 = vld [vmem:[%s3534 + $0x50] sm:$0xff]
  %v3546 = vld [vmem:[%s3534 + $0x58] sm:$0xff]
  %v3547 = vld [vmem:[%s3534 + $0x60] sm:$0xff]
  %v3548 = vld [vmem:[%s3534 + $0x68] sm:$0xff]
  %v3549 = vld [vmem:[%s3534 + $0x70] sm:$0xff]
  %v3550 = vld [vmem:[%s3534 + $0x78] sm:$0xff]
  %s3551 = scalar_lea.vmem %s20, 1
  %v3552 = vld [vmem:[%s3551] sm:$0x1]
  %v3554 = vlaneseq
  %v3555 = vshrl.u32 %v3554, 7
  %v3556 = vsub.s32 0, %v3555
  %v3557 = vrot.slane %v3552, %v3556
  %3559 = vmatprep.subr.mxu0 0.0
  %3560 = vmatpush1.msra.mxu0 %v3535
  %3561 = vmatprep.subr.mxu0 0.0
  %3562 = vmatpush1.msra.mxu0 %v3536
  %3563 = vmatprep.subr.mxu0 0.0
  %3564 = vmatpush1.msra.mxu0 %v3537
  %3565 = vmatprep.subr.mxu0 0.0
  %3566 = vmatpush1.msra.mxu0 %v3538
  %3567 = vmatprep.subr.mxu0 0.0
  %3568 = vmatpush1.msra.mxu0 %v3539
  %3569 = vmatprep.subr.mxu0 0.0
  %3570 = vmatpush1.msra.mxu0 %v3540
  %3571 = vmatprep.subr.mxu0 0.0
  %3572 = vmatpush1.msra.mxu0 %v3541
  %3573 = vmatprep.subr.mxu0 0.0
  %3574 = vmatpush1.msra.mxu0 %v3542
  %3575 = vmatprep.subr.mxu0 0.0
  %3576 = vmatpush1.msra.mxu0 %v3543
  %3577 = vmatprep.subr.mxu0 0.0
  %3578 = vmatpush1.msra.mxu0 %v3544
  %3579 = vmatprep.subr.mxu0 0.0
  %3580 = vmatpush1.msra.mxu0 %v3545
  %3581 = vmatprep.subr.mxu0 0.0
  %3582 = vmatpush1.msra.mxu0 %v3546
  %3583 = vmatprep.subr.mxu0 0.0
  %3584 = vmatpush1.msra.mxu0 %v3547
  %3585 = vmatprep.subr.mxu0 0.0
  %3586 = vmatpush1.msra.mxu0 %v3548
  %3587 = vmatprep.subr.mxu0 0.0
  %3588 = vmatpush1.msra.mxu0 %v3549
  %3589 = vmatprep.subr.mxu0 0.0
  %3590 = vmatpush1.msra.mxu0 %v3550
  %3591 = vmatprep.subr.mxu0 0.0
  %3592 = vmatpush1.msra.mxu0 0.0
  %3593 = vmatprep.subr.mxu0 0.0
  %3594 = vmatpush1.msra.mxu0 0.0
  %3595 = vmatprep.subr.mxu0 0.0
  %3596 = vmatpush1.msra.mxu0 0.0
  %3597 = vmatprep.subr.mxu0 0.0
  %3598 = vmatpush1.msra.mxu0 0.0
  %3599 = vmatprep.subr.mxu0 0.0
  %3600 = vmatpush1.msra.mxu0 0.0
  %3601 = vmatprep.subr.mxu0 0.0
  %3602 = vmatpush1.msra.mxu0 0.0
  %3603 = vmatprep.subr.mxu0 0.0
  %3604 = vmatpush1.msra.mxu0 0.0
  %3605 = vmatprep.subr.mxu0 0.0
  %3606 = vmatpush1.msra.mxu0 0.0
  %3607 = vmatprep.subr.mxu0 0.0
  %3608 = vmatpush1.msra.mxu0 0.0
  %3609 = vmatprep.subr.mxu0 0.0
  %3610 = vmatpush1.msra.mxu0 0.0
  %3611 = vmatprep.subr.mxu0 0.0
  %3612 = vmatpush1.msra.mxu0 0.0
  %3613 = vmatprep.subr.mxu0 0.0
  %3614 = vmatpush1.msra.mxu0 0.0
  %3615 = vmatprep.subr.mxu0 0.0
  %3616 = vmatpush1.msra.mxu0 0.0
  %3617 = vmatprep.subr.mxu0 0.0
  %3618 = vmatpush1.msra.mxu0 0.0
  %3619 = vmatprep.subr.mxu0 0.0
  %3620 = vmatpush1.msra.mxu0 0.0
  %3621 = vmatprep.subr.mxu0 0.0
  %3622 = vmatpush1.msra.mxu0 0.0
  %3623 = vmatprep.mubr.f32.mxu0 0.0
  %3624 = vmatmul.mubr.f32.gmra.mrb[0].mxu0 %v3532
  %v3625 = vpop.f32.mrb[0].mxu0
  %v3626 = vadd.f32 %v3557, %v3625
  %v3627 = vpop.f32.mrb[0].mxu0
  %3628 = vmatprep.mubr.f32.mxu0 0.0
  %3629 = vmatmul.mubr.f32.gmra.mrb[0].mxu0 %v3533
  %v3630 = vpop.f32.mrb[0].mxu0
  %v3631 = vadd.f32 %v3557, %v3630
  %v3632 = vpop.f32.mrb[0].mxu0
  %3633 = vdwg.mxu0
  %s3634 = scalar_lea.vmem %s21, 1
  %v3635 = vld [vmem:[%s3634] sm:$0x1]
  %v3637 = vlaneseq
  %v3638 = vshrl.u32 %v3637, 7
  %v3639 = vsub.s32 0, %v3638
  %v3640 = vrot.slane %v3635, %v3639
  %v3642 = vmul.f32 %v3626, %v3640
  %v3643 = vmul.f32 %v3631, %v3640
  %v3644 = vadd.f32 %v3374, %v3642
  %v3645 = vadd.f32 %v3375, %v3643
  %v3646 = vld [vmem:[%s22] sm:$0x1]
  %v3647 = vld [vmem:[%s23] sm:$0x1]
  %v3648 = vsel %vm489, %v3644, 0.0
  %3649 = vadd.xlane.f32.xlu0 %v3648
  %v3650 = vpop.xlane.xlu0 %3649
  %v3651 = vsel %vm493, %v3645, 0.0
  %3652 = vadd.xlane.f32.xlu0 %v3651
  %v3653 = vpop.xlane.xlu0 %3652
  %v3654 = vmul.f32 %v3650, %v497
  %v3655 = vmul.f32 %v3653, %v497
  %v3656 = vsub.f32 %v3644, %v3654
  %v3657 = vsub.f32 %v3645, %v3655
  %v3658 = vmul.f32 %v3656, %v3656
  %v3659 = vmul.f32 %v3657, %v3657
  %v3660 = vsel %vm489, %v3658, 0.0
  %3661 = vadd.xlane.f32.xlu0 %v3660
  %v3662 = vpop.xlane.xlu0 %3661
  %v3663 = vsel %vm493, %v3659, 0.0
  %3664 = vadd.xlane.f32.xlu0 %v3663
  %v3665 = vpop.xlane.xlu0 %3664
  %v3666 = vmul.f32 %v3662, %v497
  %v3667 = vmul.f32 %v3665, %v497
  %v3668 = vadd.f32 %v3666, 1e-06
  %v3669 = vadd.f32 %v3667, 1e-06
  %v3670 = vrsqrt.pop %v3668
  %v3671 = vrsqrt.pop %v3669
  %v3672 = vmul.f32 %v3656, %v3670
  %v3673 = vmul.f32 %v3657, %v3671
  %v3675 = vlaneseq
  %v3676 = vshrl.u32 %v3675, 7
  %v3677 = vsub.s32 0, %v3676
  %v3678 = vrot.slane %v3646, %v3677
  %v3680 = vmul.f32 %v3672, %v3678
  %v3681 = vmul.f32 %v3673, %v3678
  %v3683 = vlaneseq
  %v3684 = vshrl.u32 %v3683, 7
  %v3685 = vsub.s32 0, %v3684
  %v3686 = vrot.slane %v3647, %v3685
  %v3688 = vadd.f32 %v3680, %v3686
  %v3689 = vadd.f32 %v3681, %v3686
  %3690 = vst.msk [vmem:[%s24] sm:$0xff] %vm489, %v3688
  %3691 = vst.msk [vmem:[%s24 + $0x8] sm:$0x3] %vm493, %v3689
  // Predicated region
  $region98: #{_forward_impl.1} parent=0 // pred_check
    _
  $region99: #{_forward_impl.1} parent=0 // pred_check_branch
    %3693 = sbr.rel (0) target = $region101
  $region100: #{_forward_impl.1} parent=0 // pred_region
    _
  $region101: #{_forward_impl.1} parent=0 // pred_fallthru
    _
  // Predicated region
  $region102: #{_forward_impl.1} parent=0 // pred_check
    _
  $region103: #{_forward_impl.1} parent=0 // pred_check_branch
    %3695 = sbr.rel (0) target = $region105
  $region104: #{_forward_impl.1} parent=0 // pred_region
    _
  $region105: #{_forward_impl.1} parent=0 // pred_fallthru
    _

</llo_original>
